<compile_context>
chip_gen: v7x
topology: tpu7x:2x2x1
jax: 0.10.0
libtpu: 0.0.40
codegen_flags: <defaults>
</compile_context>

<pallas_src>
import jax
import jax.numpy as jnp
from jax import lax
from jax.experimental import pallas as pl
from jax.experimental.pallas import tpu as pltpu

BN_EPS = 1e-5
# Explicit scoped-VMEM budget: above every generation's default (16/32 MiB), with
# headroom below v7x's 64 MiB physical ceiling.
_VMEM_LIMIT = 48 * 1024 * 1024


def _pick_tile(n, target, align=16):
    """Row-tile size for an outer 'parallel' axis.

    Aims for: >=2 tiles whenever possible (v7x has 2 TensorCores), alignment to 16
    (bf16 sublane pairs) or at least 8, roughly balanced tiles. Callers pad the tail
    with pl.cdiv-sized grids.
    """
    if n <= 8:
        return n                                   # full-extent block is always legal
    if n < 2 * align:
        align = 8
    n_tiles = max(2, pl.cdiv(n, target))
    return min(n, pl.cdiv(pl.cdiv(n, n_tiles), align) * align)


# ---------------------------------------------------------------------------
# conv1x1 (per-pixel matmul) + fused partial BN statistics, bf16 output
# ---------------------------------------------------------------------------

def _mm_stats_kernel(x_ref, w_ref, y_ref, stat_ref):
    # x_ref: (tm, Cin) bf16; w_ref: (Cin, Cout) bf16 (resident across the grid);
    # y_ref: (tm, Cout) bf16; stat_ref: (1, 2, Cout) f32 partial [sum; sum-of-squares].
    y = jnp.dot(x_ref[...], w_ref[...], preferred_element_type=jnp.float32)
    y_ref[...] = y.astype(y_ref.dtype)                       # downcast AFTER stats
    stat_ref[0, 0:1, :] = jnp.sum(y, axis=0, keepdims=True)
    stat_ref[0, 1:2, :] = jnp.sum(y * y, axis=0, keepdims=True)


def conv1x1_pallas(x_2d, w, target_tile=2048):
    """x_2d: [M, Cin], w: [Cin, Cout] -> (y [M, Cout] bf16, mean [Cout], var [Cout])."""
    M, Cin = x_2d.shape
    Cout = w.shape[1]
    tm = _pick_tile(M, target_tile, align=16)
    n_tiles = pl.cdiv(M, tm)
    Mp = n_tiles * tm
    xb = x_2d.astype(jnp.bfloat16)
    if Mp != M:
        # conv has no bias -> zero-padded rows produce exactly-zero outputs and do not
        # perturb the BN partial sums (would break if a bias term were ever added).
        xb = jnp.pad(xb, ((0, Mp - M), (0, 0)))
    y, stats = pl.pallas_call(
        _mm_stats_kernel,
        out_shape=(jax.ShapeDtypeStruct((Mp, Cout), jnp.bfloat16),
                   jax.ShapeDtypeStruct((n_tiles, 2, Cout), jnp.float32)),
        grid_spec=pltpu.PrefetchScalarGridSpec(
            num_scalar_prefetch=0, grid=(n_tiles,),
            in_specs=[pl.BlockSpec((tm, Cin), lambda i: (i, 0)),
                      pl.BlockSpec((Cin, Cout), lambda i: (0, 0))],   # weights resident
            out_specs=(pl.BlockSpec((tm, Cout), lambda i: (i, 0)),
                       pl.BlockSpec((1, 2, Cout), lambda i: (i, 0, 0)))),
        compiler_params=pltpu.CompilerParams(
            dimension_semantics=("parallel",),
            vmem_limit_bytes=_VMEM_LIMIT),
    )(xb, w.astype(jnp.bfloat16))
    s = jnp.sum(stats[:, 0, :], axis=0)
    ss = jnp.sum(stats[:, 1, :], axis=0)
    mean = s / M
    # TODO(synk): E[y^2]-E[y]^2 from f32 partial sums can cancel at very large M /
    #             large |mean|; switch to a Welford-style per-tile combine then.
    var = ss / M - mean * mean          # biased variance, like PyTorch BN normalization
    return y[:M], mean, var


# ---------------------------------------------------------------------------
# conv3x3 (stride=1, pad=1): in-kernel halo + im2col matmul + partial BN stats
# ---------------------------------------------------------------------------

def _conv3x3_kernel(x_ref, w_ref, y_ref, stat_ref, xp_ref, patch_ref):
    # x_ref: (1, H, W, Cin) bf16 (unpadded); w_ref: (9*Cin, Cout) bf16 (resident)
    # y_ref: (1, H, W, Cout) bf16; stat_ref: (1, 2, Cout) f32
    # xp_ref: (H+2, W+2, Cin) bf16 scratch -- in-kernel halo padding
    # patch_ref: (H*W, 9*Cin) bf16 scratch -- im2col patches (fine for tiny Cin)
    H, W, Cout = y_ref.shape[1], y_ref.shape[2], y_ref.shape[3]
    Cin = x_ref.shape[3]
    xp_ref[...] = jnp.zeros_like(xp_ref)
    xp_ref[1:H + 1, 1:W + 1, :] = x_ref[0]
    for tap in range(9):
        ky, kx = tap // 3, tap % 3
        patch_ref[:, tap * Cin:(tap + 1) * Cin] = (
            xp_ref[ky:ky + H, kx:kx + W, :].reshape(H * W, Cin))
    y = jnp.dot(patch_ref[...], w_ref[...], preferred_element_type=jnp.float32)
    y_ref[0] = y.reshape(H, W, Cout).astype(y_ref.dtype)      # downcast AFTER stats
    stat_ref[0, 0:1, :] = jnp.sum(y, axis=0, keepdims=True)
    stat_ref[0, 1:2, :] = jnp.sum(y * y, axis=0, keepdims=True)


def conv3x3_pallas(x_nhwc, w_hwio):
    """x: [B, H, W, Cin], w: [3, 3, Cin, Cout] -> (y [B,H,W,Cout] bf16, mean, var)."""
    B, H, W, Cin = x_nhwc.shape
    Cout = w_hwio.shape[-1]
    w9 = w_hwio.reshape(9 * Cin, Cout).astype(jnp.bfloat16)
    y, stats = pl.pallas_call(
        _conv3x3_kernel,
        out_shape=(jax.ShapeDtypeStruct((B, H, W, Cout), jnp.bfloat16),
                   jax.ShapeDtypeStruct((B, 2, Cout), jnp.float32)),
        grid_spec=pltpu.PrefetchScalarGridSpec(
            num_scalar_prefetch=0, grid=(B,),
            in_specs=[pl.BlockSpec((1, H, W, Cin), lambda b: (b, 0, 0, 0)),
                      pl.BlockSpec((9 * Cin, Cout), lambda b: (0, 0))],
            out_specs=(pl.BlockSpec((1, H, W, Cout), lambda b: (b, 0, 0, 0)),
                       pl.BlockSpec((1, 2, Cout), lambda b: (b, 0, 0))),
            scratch_shapes=[pltpu.VMEM((H + 2, W + 2, Cin), jnp.bfloat16),
                            pltpu.VMEM((H * W, 9 * Cin), jnp.bfloat16)]),
        compiler_params=pltpu.CompilerParams(
            dimension_semantics=("parallel",),
            vmem_limit_bytes=_VMEM_LIMIT),
    )(x_nhwc.astype(jnp.bfloat16), w9)
    count = B * H * W
    s = jnp.sum(stats[:, 0, :], axis=0)
    ss = jnp.sum(stats[:, 1, :], axis=0)
    mean = s / count
    var = ss / count - mean * mean
    return y, mean, var


# ---------------------------------------------------------------------------
# Fused BN-affine (+ optional residual) + multi-step IF neuron, lane-dense, bf16 I/O
# ---------------------------------------------------------------------------

def _if_kernel(x_ref, scale_ref, bias_ref, o_ref, v_ref):
    # x_ref/o_ref: (1, tr, L) current time step (bf16); scale/bias: (1, L) f32;
    # v_ref: (tr, L) f32 membrane potential, persists across the (innermost) time axis.
    t = pl.program_id(1)

    @pl.when(t == 0)
    def _():
        v_ref[...] = jnp.zeros_like(v_ref)

    inp = x_ref[0].astype(jnp.float32) * scale_ref[...] + bias_ref[...]
    v = v_ref[...] + inp                      # neuronal charge
    spike = v >= 1.0                          # fire (v_threshold = 1.0)
    o_ref[0] = spike.astype(o_ref.dtype)
    v_ref[...] = jnp.where(spike, 0.0, v)     # hard reset (v_reset = 0.0)


def _if_res_kernel(x_ref, scale_ref, bias_ref, res_ref, o_ref, v_ref):
    t = pl.program_id(1)

    @pl.when(t == 0)
    def _():
        v_ref[...] = jnp.zeros_like(v_ref)

    inp = (x_ref[0].astype(jnp.float32) * scale_ref[...] + bias_ref[...]
           + res_ref[0].astype(jnp.float32))
    v = v_ref[...] + inp
    spike = v >= 1.0
    o_ref[0] = spike.astype(o_ref.dtype)
    v_ref[...] = jnp.where(spike, 0.0, v)


def bn_if_pallas(y_tmc, gamma, beta, mean, var, res_tmc=None):
    """y: [T, M, C] conv output (any float dtype); res: [T, M, C] or None.
    Returns bf16 spikes [T, M, C]."""
    T, M, C = y_tmc.shape
    scale = (gamma / jnp.sqrt(var + BN_EPS)).astype(jnp.float32)
    bias = (beta - mean * scale).astype(jnp.float32)

    y_tmc = y_tmc.astype(jnp.bfloat16)
    res_tmc = None if res_tmc is None else res_tmc.astype(jnp.bfloat16)

    # Lane-dense repack: [T, M, C] -> [T, R, 128] with scale/bias tiled per lane, so
    # stores are full-width vst instead of masked C(=4/16)-lane stores.
    if 128 % C == 0:
        L = 128
        px = L // C                              # pixels per 128-lane row
        Mp = pl.cdiv(M, px) * px

        def rep(a):
            if a is None:
                return None
            if Mp != M:
                # padded pixels receive scale*0+bias only; their (discarded) spikes
                # never feed back into real elements (IF is per-element).
                a = jnp.pad(a, ((0, 0), (0, Mp - M), (0, 0)))
            return a.reshape(T, (Mp * C) // L, L)

        y, res = rep(y_tmc), rep(res_tmc)
        R = (Mp * C) // L
        scale_l = jnp.tile(scale, px).reshape(1, L)
        bias_l = jnp.tile(bias, px).reshape(1, L)
    else:
        # Lane-sparse fallback (correct but masked stores) for C not dividing 128.
        L, R = C, M
        y, res = y_tmc, res_tmc
        scale_l = scale.reshape(1, L)
        bias_l = bias.reshape(1, L)

    tr = _pick_tile(R, target=512, align=16)
    n_r = pl.cdiv(R, tr)
    Rp = n_r * tr
    if Rp != R:
        y = jnp.pad(y, ((0, 0), (0, Rp - R), (0, 0)))
        if res is not None:
            res = jnp.pad(res, ((0, 0), (0, Rp - R), (0, 0)))

    blk = pl.BlockSpec((1, tr, L), lambda r, t: (t, r, 0))
    vec = pl.BlockSpec((1, L), lambda r, t: (0, 0))
    in_specs = [blk, vec, vec]
    args = [y, scale_l, bias_l]
    kernel = _if_kernel
    if res is not None:
        in_specs.append(blk)
        args.append(res)
        kernel = _if_res_kernel

    spikes = pl.pallas_call(
        kernel,
        out_shape=jax.ShapeDtypeStruct((T, Rp, L), jnp.bfloat16),
        grid_spec=pltpu.PrefetchScalarGridSpec(
            num_scalar_prefetch=0, grid=(n_r, T),
            in_specs=in_specs,
            out_specs=blk,
            scratch_shapes=[pltpu.VMEM((tr, L), jnp.float32)]),
        # Row-tiles parallel (megacore / dual TC), time strictly sequential
        # (membrane-potential carry lives in the VMEM scratch).
        compiler_params=pltpu.CompilerParams(
            dimension_semantics=("parallel", "arbitrary"),
            vmem_limit_bytes=_VMEM_LIMIT),
    )(*args)
    return spikes.reshape(T, -1, C)[:, :M, :]


# ---------------------------------------------------------------------------
# Full bottleneck forward
# ---------------------------------------------------------------------------

def bottleneck_forward(x_tnchw, w1, g1, b1, w2_hwio, g2, b2, w3, g3, b3):
    T, N, Cin, H, W = x_tnchw.shape
    # NCHW -> NHWC once; cast to bf16 once (shared by the conv1 operand and the residual).
    x = jnp.transpose(x_tnchw, (0, 1, 3, 4, 2)).astype(jnp.bfloat16)   # [T,N,H,W,C]
    Mpix = N * H * W
    M = T * Mpix
    width = w1.shape[1]
    cout = w3.shape[1]

    # conv1 (1x1) + BN1 + sn1            (no residual -> no zero tensor streamed)
    y1, m1, v1 = conv1x1_pallas(x.reshape(M, Cin), w1)
    s1 = bn_if_pallas(y1.reshape(T, Mpix, width), g1, b1, m1, v1)

    # conv2 (3x3, stride=1, pad=1) + BN2 + sn2
    y2, m2, v2 = conv3x3_pallas(s1.reshape(T * N, H, W, width), w2_hwio)
    s2 = bn_if_pallas(y2.reshape(T, Mpix, width), g2, b2, m2, v2)

    # conv3 (1x1) + BN3 + residual + sn3  (downsample is None -> identity = x)
    y3, m3, v3 = conv1x1_pallas(s2.reshape(M, width), w3)
    out = bn_if_pallas(y3.reshape(T, Mpix, cout), g3, b3, m3, v3,
                       res_tmc=x.reshape(T, Mpix, Cin))

    out = out.reshape(T, N, H, W, cout).transpose(0, 1, 4, 2, 3)       # [T,N,C,H,W]
    return out.astype(jnp.float32)


# ---------------------------------------------------------------------------
# Pure-JAX reference with the same mixed-precision pipeline as the kernels
# (bf16 matmul operands / stored activations / residual, f32 BN statistics and
# f32 IF dynamics) so the spike comparison isolates kernel logic, not precision.
# ---------------------------------------------------------------------------

def ref_forward(x_tnchw, w1, g1, b1, w2_hwio, g2, b2, w3, g3, b3):
    T, N, Cin, H, W = x_tnchw.shape
    x = jnp.transpose(x_tnchw, (0, 1, 3, 4, 2)).astype(jnp.float32)
    xb16 = x.astype(jnp.bfloat16)

    def bn(y_f32, g, beta):
        yf = y_f32.reshape(-1, y_f32.shape[-1])
        m, v = yf.mean(0), yf.var(0)
        scale = g / jnp.sqrt(v + BN_EPS)
        bias = beta - m * scale
        # kernels store conv outputs in bf16; stats are taken pre-downcast in f32.
        y16 = y_f32.astype(jnp.bfloat16).astype(jnp.float32)
        return y16 * scale + bias

    def ifn(seq):
        def step(v, xt):
            v = v + xt
            s = (v >= 1.0).astype(jnp.float32)
            return jnp.where(s > 0, 0.0, v), s
        _, sp = lax.scan(step, jnp.zeros_like(seq[0]), seq)
        return sp

    def mm(a, w):
        return jnp.einsum('tnhwc,co->tnhwo', a.astype(jnp.bfloat16),
                          w.astype(jnp.bfloat16),
                          preferred_element_type=jnp.float32)

    y1 = mm(xb16, w1)
    s1 = ifn(bn(y1, g1, b1))
    y2 = lax.conv_general_dilated(
        s1.reshape(T * N, H, W, -1).astype(jnp.bfloat16),
        w2_hwio.astype(jnp.bfloat16),
        window_strides=(1, 1), padding=((1, 1), (1, 1)),
        dimension_numbers=('NHWC', 'HWIO', 'NHWC'),
        preferred_element_type=jnp.float32).reshape(T, N, H, W, -1)
    s2 = ifn(bn(y2, g2, b2))
    y3 = mm(s2, w3)
    out = ifn(bn(y3, g3, b3) + xb16.astype(jnp.float32))
    return jnp.transpose(out, (0, 1, 4, 2, 3))


# ---------------------------------------------------------------------------
# Main
# ---------------------------------------------------------------------------

if __name__ == "__main__":
    T, N, H, W = 2, 2, 8, 8
    inplanes, planes, expansion = 16, 4, 4
    width = planes  # base_width=64, groups=1 -> width = planes

    key = jax.random.PRNGKey(0)
    ks = jax.random.split(key, 10)
    w1 = 0.3 * jax.random.normal(ks[0], (inplanes, width), jnp.float32)
    g1 = 1.0 + 0.1 * jax.random.normal(ks[1], (width,), jnp.float32)
    b1 = 0.1 * jax.random.normal(ks[2], (width,), jnp.float32)
    w2 = 0.3 * jax.random.normal(ks[3], (3, 3, width, width), jnp.float32)   # HWIO
    g2 = 1.0 + 0.1 * jax.random.normal(ks[4], (width,), jnp.float32)
    b2 = 0.1 * jax.random.normal(ks[5], (width,), jnp.float32)
    w3 = 0.3 * jax.random.normal(ks[6], (width, planes * expansion), jnp.float32)
    g3 = 1.0 + 0.1 * jax.random.normal(ks[7], (planes * expansion,), jnp.float32)
    b3 = 0.1 * jax.random.normal(ks[8], (planes * expansion,), jnp.float32)
    x = jax.random.normal(ks[9], (T, N, inplanes, H, W), jnp.float32)

    fwd = jax.jit(bottleneck_forward)
    out = fwd(x, w1, g1, b1, w2, g2, b2, w3, g3, b3)
    out = jax.block_until_ready(out)

    assert out.shape == (T, N, planes * expansion, H, W)
    ref = ref_forward(x, w1, g1, b1, w2, g2, b2, w3, g3, b3)
    # spikes are binary; tolerate a tiny fraction of threshold-edge flips from
    # accumulation-order / BN-stat rounding differences
    flip_frac = float(jnp.mean(jnp.abs(out - ref) > 0.5))
    assert flip_frac < 0.02, f"spike mismatch fraction {flip_frac}"

    print("KERNEL_OK")
</pallas_src>

<mosaic_0001>
module attributes {stable_mosaic.version = 11 : i64} {
  func.func @_mm_stats_kernel(%arg0: i32, %arg1: memref<128x16xbf16, #tpu.memory_space<vmem>>, %arg2: memref<16x4xbf16, #tpu.memory_space<vmem>>, %arg3: memref<128x4xbf16, #tpu.memory_space<vmem>>, %arg4: memref<1x2x4xf32, #tpu.memory_space<vmem>>) attributes {dimension_semantics = [#tpu.dimension_semantics<parallel>], iteration_bounds = array<i64: 2>, scalar_prefetch = 0 : i64, scratch_operands = 0 : i64, tpu.core_type = #tpu.core_type<tc>, window_params = [{transform_indices = @transform_0, window_bounds = array<i64: 128, 16>}, {pipeline_mode = #tpu.pipeline_mode<synchronous>, transform_indices = @transform_1, window_bounds = array<i64: 16, 4>}, {transform_indices = @transform_2, window_bounds = array<i64: 128, 4>}, {transform_indices = @transform_3, window_bounds = array<i64: 1, 2, 4>}]} {
    %c0 = arith.constant 0 : index
    %c0_0 = arith.constant 0 : index
    %0 = vector.load %arg1[%c0, %c0_0] : memref<128x16xbf16, #tpu.memory_space<vmem>>, vector<128x16xbf16>
    %c0_1 = arith.constant 0 : index
    %c0_2 = arith.constant 0 : index
    %1 = vector.load %arg2[%c0_1, %c0_2] : memref<16x4xbf16, #tpu.memory_space<vmem>>, vector<16x4xbf16>
    %cst = arith.constant dense<0.000000e+00> : vector<128x4xf32>
    %2 = tpu.matmul %0, %1, %cst {dimension_numbers = #tpu.dot_dimension_numbers<[1], [0], [0], [1], [0, 0, 1, 1], [], []>} : vector<128x16xbf16>, vector<16x4xbf16>, vector<128x4xf32> -> vector<128x4xf32>
    %3 = arith.truncf %2 : vector<128x4xf32> to vector<128x4xbf16>
    %c0_3 = arith.constant 0 : index
    %c0_4 = arith.constant 0 : index
    %4 = vector.load %arg3[%c0_3, %c0_4] : memref<128x4xbf16, #tpu.memory_space<vmem>>, vector<128x4xbf16>
    tpu.vector_store %arg3[%c0_3, %c0_4], %3 {strides = array<i32>} : memref<128x4xbf16, #tpu.memory_space<vmem>>, vector<128x4xbf16>,
    %cst_5 = arith.constant dense<0.000000e+00> : vector<4xf32>
    %5 = vector.multi_reduction <add>, %2, %cst_5 [0] : vector<128x4xf32> to vector<4xf32>
    %6 = vector.shape_cast %5 : vector<4xf32> to vector<1x4xf32>
    %c0_6 = arith.constant 0 : index
    %c0_7 = arith.constant 0 : index
    %c0_8 = arith.constant 0 : index
    %7 = vector.load %arg4[%c0_6, %c0_7, %c0_8] : memref<1x2x4xf32, #tpu.memory_space<vmem>>, vector<1x1x4xf32>
    %8 = vector.shape_cast %7 : vector<1x1x4xf32> to vector<1x4xf32>
    %9 = vector.shape_cast %6 : vector<1x4xf32> to vector<1x1x4xf32>
    tpu.vector_store %arg4[%c0_6, %c0_7, %c0_8], %9 {strides = array<i32>} : memref<1x2x4xf32, #tpu.memory_space<vmem>>, vector<1x1x4xf32>,
    %10 = arith.mulf %2, %2 : vector<128x4xf32>
    %cst_9 = arith.constant dense<0.000000e+00> : vector<4xf32>
    %11 = vector.multi_reduction <add>, %10, %cst_9 [0] : vector<128x4xf32> to vector<4xf32>
    %12 = vector.shape_cast %11 : vector<4xf32> to vector<1x4xf32>
    %c0_10 = arith.constant 0 : index
    %c1 = arith.constant 1 : index
    %c0_11 = arith.constant 0 : index
    %13 = vector.load %arg4[%c0_10, %c1, %c0_11] : memref<1x2x4xf32, #tpu.memory_space<vmem>>, vector<1x1x4xf32>
    %14 = vector.shape_cast %13 : vector<1x1x4xf32> to vector<1x4xf32>
    %15 = vector.shape_cast %12 : vector<1x4xf32> to vector<1x1x4xf32>
    tpu.vector_store %arg4[%c0_10, %c1, %c0_11], %15 {strides = array<i32>} : memref<1x2x4xf32, #tpu.memory_space<vmem>>, vector<1x1x4xf32>,
    return
  }
  func.func @transform_0(%arg0: i32) -> (i32, i32) {
    %c0_i32 = arith.constant 0 : i32
    %c0_i32_0 = arith.constant 0 : i32
    return %arg0, %c0_i32 : i32, i32
  }
  func.func @transform_1(%arg0: i32) -> (i32, i32) {
    %c0_i32 = arith.constant 0 : i32
    %c0_i32_0 = arith.constant 0 : i32
    %c0_i32_1 = arith.constant 0 : i32
    return %c0_i32, %c0_i32_0 : i32, i32
  }
  func.func @transform_2(%arg0: i32) -> (i32, i32) {
    %c0_i32 = arith.constant 0 : i32
    %c0_i32_0 = arith.constant 0 : i32
    return %arg0, %c0_i32 : i32, i32
  }
  func.func @transform_3(%arg0: i32) -> (i32, i32, i32) {
    %c0_i32 = arith.constant 0 : i32
    %c0_i32_0 = arith.constant 0 : i32
    %c0_i32_1 = arith.constant 0 : i32
    return %arg0, %c0_i32, %c0_i32_0 : i32, i32, i32
  }
}

module attributes {stable_mosaic.version = 11 : i64} {
  func.func @_if_kernel(%arg0: i32, %arg1: i32, %arg2: memref<1x4x128xbf16, #tpu.memory_space<vmem>>, %arg3: memref<1x128xf32, #tpu.memory_space<vmem>>, %arg4: memref<1x128xf32, #tpu.memory_space<vmem>>, %arg5: memref<1x4x128xbf16, #tpu.memory_space<vmem>>, %arg6: memref<4x128xf32, #tpu.memory_space<vmem>>) attributes {dimension_semantics = [#tpu.dimension_semantics<parallel>, #tpu.dimension_semantics<arbitrary>], iteration_bounds = array<i64: 1, 2>, scalar_prefetch = 0 : i64, scratch_operands = 1 : i64, tpu.core_type = #tpu.core_type<tc>, window_params = [{transform_indices = @transform_0, window_bounds = array<i64: 1, 4, 128>}, {pipeline_mode = #tpu.pipeline_mode<synchronous>, transform_indices = @transform_1, window_bounds = array<i64: 1, 128>}, {pipeline_mode = #tpu.pipeline_mode<synchronous>, transform_indices = @transform_2, window_bounds = array<i64: 1, 128>}, {transform_indices = @transform_3, window_bounds = array<i64: 1, 4, 128>}]} {
    %c0_i32 = arith.constant 0 : i32
    %0 = arith.cmpi eq, %arg1, %c0_i32 : i32
    %1 = arith.extui %0 : i1 to i32
    %c0_i32_0 = arith.constant 0 : i32
    %2 = arith.cmpi ne, %1, %c0_i32_0 : i32
    scf.if %2 {
      %cst_15 = arith.constant 0.000000e+00 : f32
      %25 = vector.broadcast %cst_15 : f32 to vector<4x128xf32>
      %c0_16 = arith.constant 0 : index
      %c0_17 = arith.constant 0 : index
      %26 = vector.load %arg6[%c0_16, %c0_17] : memref<4x128xf32, #tpu.memory_space<vmem>>, vector<4x128xf32>
      tpu.vector_store %arg6[%c0_16, %c0_17], %25 {strides = array<i32>} : memref<4x128xf32, #tpu.memory_space<vmem>>, vector<4x128xf32>,
    } else {
    }
    %c0 = arith.constant 0 : index
    %c0_1 = arith.constant 0 : index
    %c0_2 = arith.constant 0 : index
    %3 = vector.load %arg2[%c0, %c0_1, %c0_2] : memref<1x4x128xbf16, #tpu.memory_space<vmem>>, vector<1x4x128xbf16>
    %4 = vector.shape_cast %3 : vector<1x4x128xbf16> to vector<4x128xbf16>
    %5 = arith.extf %4 : vector<4x128xbf16> to vector<4x128xf32>
    %c0_3 = arith.constant 0 : index
    %c0_4 = arith.constant 0 : index
    %6 = vector.load %arg3[%c0_3, %c0_4] : memref<1x128xf32, #tpu.memory_space<vmem>>, vector<1x128xf32>
    %7 = vector.broadcast %6 : vector<1x128xf32> to vector<4x128xf32>
    %8 = arith.mulf %5, %7 : vector<4x128xf32>
    %c0_5 = arith.constant 0 : index
    %c0_6 = arith.constant 0 : index
    %9 = vector.load %arg4[%c0_5, %c0_6] : memref<1x128xf32, #tpu.memory_space<vmem>>, vector<1x128xf32>
    %10 = vector.broadcast %9 : vector<1x128xf32> to vector<4x128xf32>
    %11 = arith.addf %8, %10 : vector<4x128xf32>
    %c0_7 = arith.constant 0 : index
    %c0_8 = arith.constant 0 : index
    %12 = vector.load %arg6[%c0_7, %c0_8] : memref<4x128xf32, #tpu.memory_space<vmem>>, vector<4x128xf32>
    %13 = arith.addf %12, %11 : vector<4x128xf32>
    %cst = arith.constant 1.000000e+00 : f32
    %14 = vector.broadcast %cst : f32 to vector<4x128xf32>
    %15 = arith.cmpf oge, %13, %14 : vector<4x128xf32>
    %16 = arith.extui %15 : vector<4x128xi1> to vector<4x128xi32>
    %17 = arith.sitofp %16 : vector<4x128xi32> to vector<4x128xf32>
    %18 = arith.truncf %17 : vector<4x128xf32> to vector<4x128xbf16>
    %c0_9 = arith.constant 0 : index
    %c0_10 = arith.constant 0 : index
    %c0_11 = arith.constant 0 : index
    %19 = vector.load %arg5[%c0_9, %c0_10, %c0_11] : memref<1x4x128xbf16, #tpu.memory_space<vmem>>, vector<1x4x128xbf16>
    %20 = vector.shape_cast %19 : vector<1x4x128xbf16> to vector<4x128xbf16>
    %21 = vector.shape_cast %18 : vector<4x128xbf16> to vector<1x4x128xbf16>
    tpu.vector_store %arg5[%c0_9, %c0_10, %c0_11], %21 {strides = array<i32>} : memref<1x4x128xbf16, #tpu.memory_space<vmem>>, vector<1x4x128xbf16>,
    %cst_12 = arith.constant 0.000000e+00 : f32
    %22 = vector.broadcast %cst_12 : f32 to vector<4x128xf32>
    %23 = arith.select %15, %22, %13 : vector<4x128xi1>, vector<4x128xf32>
    %c0_13 = arith.constant 0 : index
    %c0_14 = arith.constant 0 : index
    %24 = vector.load %arg6[%c0_13, %c0_14] : memref<4x128xf32, #tpu.memory_space<vmem>>, vector<4x128xf32>
    tpu.vector_store %arg6[%c0_13, %c0_14], %23 {strides = array<i32>} : memref<4x128xf32, #tpu.memory_space<vmem>>, vector<4x128xf32>,
    return
  }
  func.func @transform_0(%arg0: i32, %arg1: i32) -> (i32, i32, i32) {
    %c0_i32 = arith.constant 0 : i32
    %c0_i32_0 = arith.constant 0 : i32
    return %arg1, %arg0, %c0_i32 : i32, i32, i32
  }
  func.func @transform_1(%arg0: i32, %arg1: i32) -> (i32, i32) {
    %c0_i32 = arith.constant 0 : i32
    %c0_i32_0 = arith.constant 0 : i32
    %c0_i32_1 = arith.constant 0 : i32
    return %c0_i32, %c0_i32_0 : i32, i32
  }
  func.func @transform_2(%arg0: i32, %arg1: i32) -> (i32, i32) {
    %c0_i32 = arith.constant 0 : i32
    %c0_i32_0 = arith.constant 0 : i32
    %c0_i32_1 = arith.constant 0 : i32
    return %c0_i32, %c0_i32_0 : i32, i32
  }
  func.func @transform_3(%arg0: i32, %arg1: i32) -> (i32, i32, i32) {
    %c0_i32 = arith.constant 0 : i32
    %c0_i32_0 = arith.constant 0 : i32
    return %arg1, %arg0, %c0_i32 : i32, i32, i32
  }
}

module attributes {stable_mosaic.version = 11 : i64} {
  func.func @_conv3x3_kernel(%arg0: i32, %arg1: memref<1x8x8x4xbf16, #tpu.memory_space<vmem>>, %arg2: memref<36x4xbf16, #tpu.memory_space<vmem>>, %arg3: memref<1x8x8x4xbf16, #tpu.memory_space<vmem>>, %arg4: memref<1x2x4xf32, #tpu.memory_space<vmem>>, %arg5: memref<10x10x4xbf16, #tpu.memory_space<vmem>>, %arg6: memref<64x36xbf16, #tpu.memory_space<vmem>>) attributes {dimension_semantics = [#tpu.dimension_semantics<parallel>], iteration_bounds = array<i64: 4>, scalar_prefetch = 0 : i64, scratch_operands = 2 : i64, tpu.core_type = #tpu.core_type<tc>, window_params = [{transform_indices = @transform_0, window_bounds = array<i64: 1, 8, 8, 4>}, {pipeline_mode = #tpu.pipeline_mode<synchronous>, transform_indices = @transform_1, window_bounds = array<i64: 36, 4>}, {transform_indices = @transform_2, window_bounds = array<i64: 1, 8, 8, 4>}, {transform_indices = @transform_3, window_bounds = array<i64: 1, 2, 4>}]} {
    %cst = arith.constant 0.000000e+00 : bf16
    %0 = vector.broadcast %cst : bf16 to vector<10x10x4xbf16>
    %c0 = arith.constant 0 : index
    %c0_0 = arith.constant 0 : index
    %c0_1 = arith.constant 0 : index
    %1 = vector.load %arg5[%c0, %c0_0, %c0_1] : memref<10x10x4xbf16, #tpu.memory_space<vmem>>, vector<10x10x4xbf16>
    tpu.vector_store %arg5[%c0, %c0_0, %c0_1], %0 {strides = array<i32>} : memref<10x10x4xbf16, #tpu.memory_space<vmem>>, vector<10x10x4xbf16>,
    %c0_2 = arith.constant 0 : index
    %c0_3 = arith.constant 0 : index
    %c0_4 = arith.constant 0 : index
    %c0_5 = arith.constant 0 : index
    %2 = vector.load %arg1[%c0_2, %c0_3, %c0_4, %c0_5] : memref<1x8x8x4xbf16, #tpu.memory_space<vmem>>, vector<1x8x8x4xbf16>
    %3 = vector.shape_cast %2 : vector<1x8x8x4xbf16> to vector<8x8x4xbf16>
    %c1 = arith.constant 1 : index
    %c1_6 = arith.constant 1 : index
    %c0_7 = arith.constant 0 : index
    %4 = vector.load %arg5[%c1, %c1_6, %c0_7] : memref<10x10x4xbf16, #tpu.memory_space<vmem>>, vector<8x8x4xbf16>
    tpu.vector_store %arg5[%c1, %c1_6, %c0_7], %3 {strides = array<i32>} : memref<10x10x4xbf16, #tpu.memory_space<vmem>>, vector<8x8x4xbf16>,
    %c0_8 = arith.constant 0 : index
    %c0_9 = arith.constant 0 : index
    %c0_10 = arith.constant 0 : index
    %5 = vector.load %arg5[%c0_8, %c0_9, %c0_10] : memref<10x10x4xbf16, #tpu.memory_space<vmem>>, vector<8x8x4xbf16>
    %6 = vector.shape_cast %5 : vector<8x8x4xbf16> to vector<64x4xbf16>
    %c0_11 = arith.constant 0 : index
    %c0_12 = arith.constant 0 : index
    %7 = vector.load %arg6[%c0_11, %c0_12] : memref<64x36xbf16, #tpu.memory_space<vmem>>, vector<64x4xbf16>
    tpu.vector_store %arg6[%c0_11, %c0_12], %6 {strides = array<i32>} : memref<64x36xbf16, #tpu.memory_space<vmem>>, vector<64x4xbf16>,
    %c0_13 = arith.constant 0 : index
    %c1_14 = arith.constant 1 : index
    %c0_15 = arith.constant 0 : index
    %8 = vector.load %arg5[%c0_13, %c1_14, %c0_15] : memref<10x10x4xbf16, #tpu.memory_space<vmem>>, vector<8x8x4xbf16>
    %9 = vector.shape_cast %8 : vector<8x8x4xbf16> to vector<64x4xbf16>
    %c0_16 = arith.constant 0 : index
    %c4 = arith.constant 4 : index
    %10 = vector.load %arg6[%c0_16, %c4] : memref<64x36xbf16, #tpu.memory_space<vmem>>, vector<64x4xbf16>
    tpu.vector_store %arg6[%c0_16, %c4], %9 {strides = array<i32>} : memref<64x36xbf16, #tpu.memory_space<vmem>>, vector<64x4xbf16>,
    %c0_17 = arith.constant 0 : index
    %c2 = arith.constant 2 : index
    %c0_18 = arith.constant 0 : index
    %11 = vector.load %arg5[%c0_17, %c2, %c0_18] : memref<10x10x4xbf16, #tpu.memory_space<vmem>>, vector<8x8x4xbf16>
    %12 = vector.shape_cast %11 : vector<8x8x4xbf16> to vector<64x4xbf16>
    %c0_19 = arith.constant 0 : index
    %c8 = arith.constant 8 : index
    %13 = vector.load %arg6[%c0_19, %c8] : memref<64x36xbf16, #tpu.memory_space<vmem>>, vector<64x4xbf16>
    tpu.vector_store %arg6[%c0_19, %c8], %12 {strides = array<i32>} : memref<64x36xbf16, #tpu.memory_space<vmem>>, vector<64x4xbf16>,
    %c1_20 = arith.constant 1 : index
    %c0_21 = arith.constant 0 : index
    %c0_22 = arith.constant 0 : index
    %14 = vector.load %arg5[%c1_20, %c0_21, %c0_22] : memref<10x10x4xbf16, #tpu.memory_space<vmem>>, vector<8x8x4xbf16>
    %15 = vector.shape_cast %14 : vector<8x8x4xbf16> to vector<64x4xbf16>
    %c0_23 = arith.constant 0 : index
    %c12 = arith.constant 12 : index
    %16 = vector.load %arg6[%c0_23, %c12] : memref<64x36xbf16, #tpu.memory_space<vmem>>, vector<64x4xbf16>
    tpu.vector_store %arg6[%c0_23, %c12], %15 {strides = array<i32>} : memref<64x36xbf16, #tpu.memory_space<vmem>>, vector<64x4xbf16>,
    %c1_24 = arith.constant 1 : index
    %c1_25 = arith.constant 1 : index
    %c0_26 = arith.constant 0 : index
    %17 = vector.load %arg5[%c1_24, %c1_25, %c0_26] : memref<10x10x4xbf16, #tpu.memory_space<vmem>>, vector<8x8x4xbf16>
    %18 = vector.shape_cast %17 : vector<8x8x4xbf16> to vector<64x4xbf16>
    %c0_27 = arith.constant 0 : index
    %c16 = arith.constant 16 : index
    %19 = vector.load %arg6[%c0_27, %c16] : memref<64x36xbf16, #tpu.memory_space<vmem>>, vector<64x4xbf16>
    tpu.vector_store %arg6[%c0_27, %c16], %18 {strides = array<i32>} : memref<64x36xbf16, #tpu.memory_space<vmem>>, vector<64x4xbf16>,
    %c1_28 = arith.constant 1 : index
    %c2_29 = arith.constant 2 : index
    %c0_30 = arith.constant 0 : index
    %20 = vector.load %arg5[%c1_28, %c2_29, %c0_30] : memref<10x10x4xbf16, #tpu.memory_space<vmem>>, vector<8x8x4xbf16>
    %21 = vector.shape_cast %20 : vector<8x8x4xbf16> to vector<64x4xbf16>
    %c0_31 = arith.constant 0 : index
    %c20 = arith.constant 20 : index
    %22 = vector.load %arg6[%c0_31, %c20] : memref<64x36xbf16, #tpu.memory_space<vmem>>, vector<64x4xbf16>
    tpu.vector_store %arg6[%c0_31, %c20], %21 {strides = array<i32>} : memref<64x36xbf16, #tpu.memory_space<vmem>>, vector<64x4xbf16>,
    %c2_32 = arith.constant 2 : index
    %c0_33 = arith.constant 0 : index
    %c0_34 = arith.constant 0 : index
    %23 = vector.load %arg5[%c2_32, %c0_33, %c0_34] : memref<10x10x4xbf16, #tpu.memory_space<vmem>>, vector<8x8x4xbf16>
    %24 = vector.shape_cast %23 : vector<8x8x4xbf16> to vector<64x4xbf16>
    %c0_35 = arith.constant 0 : index
    %c24 = arith.constant 24 : index
    %25 = vector.load %arg6[%c0_35, %c24] : memref<64x36xbf16, #tpu.memory_space<vmem>>, vector<64x4xbf16>
    tpu.vector_store %arg6[%c0_35, %c24], %24 {strides = array<i32>} : memref<64x36xbf16, #tpu.memory_space<vmem>>, vector<64x4xbf16>,
    %c2_36 = arith.constant 2 : index
    %c1_37 = arith.constant 1 : index
    %c0_38 = arith.constant 0 : index
    %26 = vector.load %arg5[%c2_36, %c1_37, %c0_38] : memref<10x10x4xbf16, #tpu.memory_space<vmem>>, vector<8x8x4xbf16>
    %27 = vector.shape_cast %26 : vector<8x8x4xbf16> to vector<64x4xbf16>
    %c0_39 = arith.constant 0 : index
    %c28 = arith.constant 28 : index
    %28 = vector.load %arg6[%c0_39, %c28] : memref<64x36xbf16, #tpu.memory_space<vmem>>, vector<64x4xbf16>
    tpu.vector_store %arg6[%c0_39, %c28], %27 {strides = array<i32>} : memref<64x36xbf16, #tpu.memory_space<vmem>>, vector<64x4xbf16>,
    %c2_40 = arith.constant 2 : index
    %c2_41 = arith.constant 2 : index
    %c0_42 = arith.constant 0 : index
    %29 = vector.load %arg5[%c2_40, %c2_41, %c0_42] : memref<10x10x4xbf16, #tpu.memory_space<vmem>>, vector<8x8x4xbf16>
    %30 = vector.shape_cast %29 : vector<8x8x4xbf16> to vector<64x4xbf16>
    %c0_43 = arith.constant 0 : index
    %c32 = arith.constant 32 : index
    %31 = vector.load %arg6[%c0_43, %c32] : memref<64x36xbf16, #tpu.memory_space<vmem>>, vector<64x4xbf16>
    tpu.vector_store %arg6[%c0_43, %c32], %30 {strides = array<i32>} : memref<64x36xbf16, #tpu.memory_space<vmem>>, vector<64x4xbf16>,
    %c0_44 = arith.constant 0 : index
    %c0_45 = arith.constant 0 : index
    %32 = vector.load %arg6[%c0_44, %c0_45] : memref<64x36xbf16, #tpu.memory_space<vmem>>, vector<64x36xbf16>
    %c0_46 = arith.constant 0 : index
    %c0_47 = arith.constant 0 : index
    %33 = vector.load %arg2[%c0_46, %c0_47] : memref<36x4xbf16, #tpu.memory_space<vmem>>, vector<36x4xbf16>
    %cst_48 = arith.constant dense<0.000000e+00> : vector<64x4xf32>
    %34 = tpu.matmul %32, %33, %cst_48 {dimension_numbers = #tpu.dot_dimension_numbers<[1], [0], [0], [1], [0, 0, 1, 1], [], []>} : vector<64x36xbf16>, vector<36x4xbf16>, vector<64x4xf32> -> vector<64x4xf32>
    %35 = vector.shape_cast %34 : vector<64x4xf32> to vector<8x8x4xf32>
    %36 = arith.truncf %35 : vector<8x8x4xf32> to vector<8x8x4xbf16>
    %c0_49 = arith.constant 0 : index
    %c0_50 = arith.constant 0 : index
    %c0_51 = arith.constant 0 : index
    %c0_52 = arith.constant 0 : index
    %37 = vector.load %arg3[%c0_49, %c0_50, %c0_51, %c0_52] : memref<1x8x8x4xbf16, #tpu.memory_space<vmem>>, vector<1x8x8x4xbf16>
    %38 = vector.shape_cast %37 : vector<1x8x8x4xbf16> to vector<8x8x4xbf16>
    %39 = vector.shape_cast %36 : vector<8x8x4xbf16> to vector<1x8x8x4xbf16>
    tpu.vector_store %arg3[%c0_49, %c0_50, %c0_51, %c0_52], %39 {strides = array<i32>} : memref<1x8x8x4xbf16, #tpu.memory_space<vmem>>, vector<1x8x8x4xbf16>,
    %cst_53 = arith.constant dense<0.000000e+00> : vector<4xf32>
    %40 = vector.multi_reduction <add>, %34, %cst_53 [0] : vector<64x4xf32> to vector<4xf32>
    %41 = vector.shape_cast %40 : vector<4xf32> to vector<1x4xf32>
    %c0_54 = arith.constant 0 : index
    %c0_55 = arith.constant 0 : index
    %c0_56 = arith.constant 0 : index
    %42 = vector.load %arg4[%c0_54, %c0_55, %c0_56] : memref<1x2x4xf32, #tpu.memory_space<vmem>>, vector<1x1x4xf32>
    %43 = vector.shape_cast %42 : vector<1x1x4xf32> to vector<1x4xf32>
    %44 = vector.shape_cast %41 : vector<1x4xf32> to vector<1x1x4xf32>
    tpu.vector_store %arg4[%c0_54, %c0_55, %c0_56], %44 {strides = array<i32>} : memref<1x2x4xf32, #tpu.memory_space<vmem>>, vector<1x1x4xf32>,
    %45 = arith.mulf %34, %34 : vector<64x4xf32>
    %cst_57 = arith.constant dense<0.000000e+00> : vector<4xf32>
    %46 = vector.multi_reduction <add>, %45, %cst_57 [0] : vector<64x4xf32> to vector<4xf32>
    %47 = vector.shape_cast %46 : vector<4xf32> to vector<1x4xf32>
    %c0_58 = arith.constant 0 : index
    %c1_59 = arith.constant 1 : index
    %c0_60 = arith.constant 0 : index
    %48 = vector.load %arg4[%c0_58, %c1_59, %c0_60] : memref<1x2x4xf32, #tpu.memory_space<vmem>>, vector<1x1x4xf32>
    %49 = vector.shape_cast %48 : vector<1x1x4xf32> to vector<1x4xf32>
    %50 = vector.shape_cast %47 : vector<1x4xf32> to vector<1x1x4xf32>
    tpu.vector_store %arg4[%c0_58, %c1_59, %c0_60], %50 {strides = array<i32>} : memref<1x2x4xf32, #tpu.memory_space<vmem>>, vector<1x1x4xf32>,
    return
  }
  func.func @transform_0(%arg0: i32) -> (i32, i32, i32, i32) {
    %c0_i32 = arith.constant 0 : i32
    %c0_i32_0 = arith.constant 0 : i32
    %c0_i32_1 = arith.constant 0 : i32
    %c0_i32_2 = arith.constant 0 : i32
    return %arg0, %c0_i32, %c0_i32_0, %c0_i32_1 : i32, i32, i32, i32
  }
  func.func @transform_1(%arg0: i32) -> (i32, i32) {
    %c0_i32 = arith.constant 0 : i32
    %c0_i32_0 = arith.constant 0 : i32
    %c0_i32_1 = arith.constant 0 : i32
    return %c0_i32, %c0_i32_0 : i32, i32
  }
  func.func @transform_2(%arg0: i32) -> (i32, i32, i32, i32) {
    %c0_i32 = arith.constant 0 : i32
    %c0_i32_0 = arith.constant 0 : i32
    %c0_i32_1 = arith.constant 0 : i32
    %c0_i32_2 = arith.constant 0 : i32
    return %arg0, %c0_i32, %c0_i32_0, %c0_i32_1 : i32, i32, i32, i32
  }
  func.func @transform_3(%arg0: i32) -> (i32, i32, i32) {
    %c0_i32 = arith.constant 0 : i32
    %c0_i32_0 = arith.constant 0 : i32
    %c0_i32_1 = arith.constant 0 : i32
    return %arg0, %c0_i32, %c0_i32_0 : i32, i32, i32
  }
}

module attributes {stable_mosaic.version = 11 : i64} {
  func.func @_mm_stats_kernel(%arg0: i32, %arg1: memref<128x4xbf16, #tpu.memory_space<vmem>>, %arg2: memref<4x16xbf16, #tpu.memory_space<vmem>>, %arg3: memref<128x16xbf16, #tpu.memory_space<vmem>>, %arg4: memref<1x2x16xf32, #tpu.memory_space<vmem>>) attributes {dimension_semantics = [#tpu.dimension_semantics<parallel>], iteration_bounds = array<i64: 2>, scalar_prefetch = 0 : i64, scratch_operands = 0 : i64, tpu.core_type = #tpu.core_type<tc>, window_params = [{transform_indices = @transform_0, window_bounds = array<i64: 128, 4>}, {pipeline_mode = #tpu.pipeline_mode<synchronous>, transform_indices = @transform_1, window_bounds = array<i64: 4, 16>}, {transform_indices = @transform_2, window_bounds = array<i64: 128, 16>}, {transform_indices = @transform_3, window_bounds = array<i64: 1, 2, 16>}]} {
    %c0 = arith.constant 0 : index
    %c0_0 = arith.constant 0 : index
    %0 = vector.load %arg1[%c0, %c0_0] : memref<128x4xbf16, #tpu.memory_space<vmem>>, vector<128x4xbf16>
    %c0_1 = arith.constant 0 : index
    %c0_2 = arith.constant 0 : index
    %1 = vector.load %arg2[%c0_1, %c0_2] : memref<4x16xbf16, #tpu.memory_space<vmem>>, vector<4x16xbf16>
    %cst = arith.constant dense<0.000000e+00> : vector<128x16xf32>
    %2 = tpu.matmul %0, %1, %cst {dimension_numbers = #tpu.dot_dimension_numbers<[1], [0], [0], [1], [0, 0, 1, 1], [], []>} : vector<128x4xbf16>, vector<4x16xbf16>, vector<128x16xf32> -> vector<128x16xf32>
    %3 = arith.truncf %2 : vector<128x16xf32> to vector<128x16xbf16>
    %c0_3 = arith.constant 0 : index
    %c0_4 = arith.constant 0 : index
    %4 = vector.load %arg3[%c0_3, %c0_4] : memref<128x16xbf16, #tpu.memory_space<vmem>>, vector<128x16xbf16>
    tpu.vector_store %arg3[%c0_3, %c0_4], %3 {strides = array<i32>} : memref<128x16xbf16, #tpu.memory_space<vmem>>, vector<128x16xbf16>,
    %cst_5 = arith.constant dense<0.000000e+00> : vector<16xf32>
    %5 = vector.multi_reduction <add>, %2, %cst_5 [0] : vector<128x16xf32> to vector<16xf32>
    %6 = vector.shape_cast %5 : vector<16xf32> to vector<1x16xf32>
    %c0_6 = arith.constant 0 : index
    %c0_7 = arith.constant 0 : index
    %c0_8 = arith.constant 0 : index
    %7 = vector.load %arg4[%c0_6, %c0_7, %c0_8] : memref<1x2x16xf32, #tpu.memory_space<vmem>>, vector<1x1x16xf32>
    %8 = vector.shape_cast %7 : vector<1x1x16xf32> to vector<1x16xf32>
    %9 = vector.shape_cast %6 : vector<1x16xf32> to vector<1x1x16xf32>
    tpu.vector_store %arg4[%c0_6, %c0_7, %c0_8], %9 {strides = array<i32>} : memref<1x2x16xf32, #tpu.memory_space<vmem>>, vector<1x1x16xf32>,
    %10 = arith.mulf %2, %2 : vector<128x16xf32>
    %cst_9 = arith.constant dense<0.000000e+00> : vector<16xf32>
    %11 = vector.multi_reduction <add>, %10, %cst_9 [0] : vector<128x16xf32> to vector<16xf32>
    %12 = vector.shape_cast %11 : vector<16xf32> to vector<1x16xf32>
    %c0_10 = arith.constant 0 : index
    %c1 = arith.constant 1 : index
    %c0_11 = arith.constant 0 : index
    %13 = vector.load %arg4[%c0_10, %c1, %c0_11] : memref<1x2x16xf32, #tpu.memory_space<vmem>>, vector<1x1x16xf32>
    %14 = vector.shape_cast %13 : vector<1x1x16xf32> to vector<1x16xf32>
    %15 = vector.shape_cast %12 : vector<1x16xf32> to vector<1x1x16xf32>
    tpu.vector_store %arg4[%c0_10, %c1, %c0_11], %15 {strides = array<i32>} : memref<1x2x16xf32, #tpu.memory_space<vmem>>, vector<1x1x16xf32>,
    return
  }
  func.func @transform_0(%arg0: i32) -> (i32, i32) {
    %c0_i32 = arith.constant 0 : i32
    %c0_i32_0 = arith.constant 0 : i32
    return %arg0, %c0_i32 : i32, i32
  }
  func.func @transform_1(%arg0: i32) -> (i32, i32) {
    %c0_i32 = arith.constant 0 : i32
    %c0_i32_0 = arith.constant 0 : i32
    %c0_i32_1 = arith.constant 0 : i32
    return %c0_i32, %c0_i32_0 : i32, i32
  }
  func.func @transform_2(%arg0: i32) -> (i32, i32) {
    %c0_i32 = arith.constant 0 : i32
    %c0_i32_0 = arith.constant 0 : i32
    return %arg0, %c0_i32 : i32, i32
  }
  func.func @transform_3(%arg0: i32) -> (i32, i32, i32) {
    %c0_i32 = arith.constant 0 : i32
    %c0_i32_0 = arith.constant 0 : i32
    %c0_i32_1 = arith.constant 0 : i32
    return %arg0, %c0_i32, %c0_i32_0 : i32, i32, i32
  }
}

module attributes {stable_mosaic.version = 11 : i64} {
  func.func @_if_res_kernel(%arg0: i32, %arg1: i32, %arg2: memref<1x8x128xbf16, #tpu.memory_space<vmem>>, %arg3: memref<1x128xf32, #tpu.memory_space<vmem>>, %arg4: memref<1x128xf32, #tpu.memory_space<vmem>>, %arg5: memref<1x8x128xbf16, #tpu.memory_space<vmem>>, %arg6: memref<1x8x128xbf16, #tpu.memory_space<vmem>>, %arg7: memref<8x128xf32, #tpu.memory_space<vmem>>) attributes {dimension_semantics = [#tpu.dimension_semantics<parallel>, #tpu.dimension_semantics<arbitrary>], iteration_bounds = array<i64: 2, 2>, scalar_prefetch = 0 : i64, scratch_operands = 1 : i64, tpu.core_type = #tpu.core_type<tc>, window_params = [{transform_indices = @transform_0, window_bounds = array<i64: 1, 8, 128>}, {pipeline_mode = #tpu.pipeline_mode<synchronous>, transform_indices = @transform_1, window_bounds = array<i64: 1, 128>}, {pipeline_mode = #tpu.pipeline_mode<synchronous>, transform_indices = @transform_2, window_bounds = array<i64: 1, 128>}, {transform_indices = @transform_3, window_bounds = array<i64: 1, 8, 128>}, {transform_indices = @transform_4, window_bounds = array<i64: 1, 8, 128>}]} {
    %c0_i32 = arith.constant 0 : i32
    %0 = arith.cmpi eq, %arg1, %c0_i32 : i32
    %1 = arith.extui %0 : i1 to i32
    %c0_i32_0 = arith.constant 0 : i32
    %2 = arith.cmpi ne, %1, %c0_i32_0 : i32
    scf.if %2 {
      %cst_18 = arith.constant 0.000000e+00 : f32
      %29 = vector.broadcast %cst_18 : f32 to vector<8x128xf32>
      %c0_19 = arith.constant 0 : index
      %c0_20 = arith.constant 0 : index
      %30 = vector.load %arg7[%c0_19, %c0_20] : memref<8x128xf32, #tpu.memory_space<vmem>>, vector<8x128xf32>
      tpu.vector_store %arg7[%c0_19, %c0_20], %29 {strides = array<i32>} : memref<8x128xf32, #tpu.memory_space<vmem>>, vector<8x128xf32>,
    } else {
    }
    %c0 = arith.constant 0 : index
    %c0_1 = arith.constant 0 : index
    %c0_2 = arith.constant 0 : index
    %3 = vector.load %arg2[%c0, %c0_1, %c0_2] : memref<1x8x128xbf16, #tpu.memory_space<vmem>>, vector<1x8x128xbf16>
    %4 = vector.shape_cast %3 : vector<1x8x128xbf16> to vector<8x128xbf16>
    %5 = arith.extf %4 : vector<8x128xbf16> to vector<8x128xf32>
    %c0_3 = arith.constant 0 : index
    %c0_4 = arith.constant 0 : index
    %6 = vector.load %arg3[%c0_3, %c0_4] : memref<1x128xf32, #tpu.memory_space<vmem>>, vector<1x128xf32>
    %7 = vector.broadcast %6 : vector<1x128xf32> to vector<8x128xf32>
    %8 = arith.mulf %5, %7 : vector<8x128xf32>
    %c0_5 = arith.constant 0 : index
    %c0_6 = arith.constant 0 : index
    %9 = vector.load %arg4[%c0_5, %c0_6] : memref<1x128xf32, #tpu.memory_space<vmem>>, vector<1x128xf32>
    %10 = vector.broadcast %9 : vector<1x128xf32> to vector<8x128xf32>
    %11 = arith.addf %8, %10 : vector<8x128xf32>
    %c0_7 = arith.constant 0 : index
    %c0_8 = arith.constant 0 : index
    %c0_9 = arith.constant 0 : index
    %12 = vector.load %arg5[%c0_7, %c0_8, %c0_9] : memref<1x8x128xbf16, #tpu.memory_space<vmem>>, vector<1x8x128xbf16>
    %13 = vector.shape_cast %12 : vector<1x8x128xbf16> to vector<8x128xbf16>
    %14 = arith.extf %13 : vector<8x128xbf16> to vector<8x128xf32>
    %15 = arith.addf %11, %14 : vector<8x128xf32>
    %c0_10 = arith.constant 0 : index
    %c0_11 = arith.constant 0 : index
    %16 = vector.load %arg7[%c0_10, %c0_11] : memref<8x128xf32, #tpu.memory_space<vmem>>, vector<8x128xf32>
    %17 = arith.addf %16, %15 : vector<8x128xf32>
    %cst = arith.constant 1.000000e+00 : f32
    %18 = vector.broadcast %cst : f32 to vector<8x128xf32>
    %19 = arith.cmpf oge, %17, %18 : vector<8x128xf32>
    %20 = arith.extui %19 : vector<8x128xi1> to vector<8x128xi32>
    %21 = arith.sitofp %20 : vector<8x128xi32> to vector<8x128xf32>
    %22 = arith.truncf %21 : vector<8x128xf32> to vector<8x128xbf16>
    %c0_12 = arith.constant 0 : index
    %c0_13 = arith.constant 0 : index
    %c0_14 = arith.constant 0 : index
    %23 = vector.load %arg6[%c0_12, %c0_13, %c0_14] : memref<1x8x128xbf16, #tpu.memory_space<vmem>>, vector<1x8x128xbf16>
    %24 = vector.shape_cast %23 : vector<1x8x128xbf16> to vector<8x128xbf16>
    %25 = vector.shape_cast %22 : vector<8x128xbf16> to vector<1x8x128xbf16>
    tpu.vector_store %arg6[%c0_12, %c0_13, %c0_14], %25 {strides = array<i32>} : memref<1x8x128xbf16, #tpu.memory_space<vmem>>, vector<1x8x128xbf16>,
    %cst_15 = arith.constant 0.000000e+00 : f32
    %26 = vector.broadcast %cst_15 : f32 to vector<8x128xf32>
    %27 = arith.select %19, %26, %17 : vector<8x128xi1>, vector<8x128xf32>
    %c0_16 = arith.constant 0 : index
    %c0_17 = arith.constant 0 : index
    %28 = vector.load %arg7[%c0_16, %c0_17] : memref<8x128xf32, #tpu.memory_space<vmem>>, vector<8x128xf32>
    tpu.vector_store %arg7[%c0_16, %c0_17], %27 {strides = array<i32>} : memref<8x128xf32, #tpu.memory_space<vmem>>, vector<8x128xf32>,
    return
  }
  func.func @transform_0(%arg0: i32, %arg1: i32) -> (i32, i32, i32) {
    %c0_i32 = arith.constant 0 : i32
    %c0_i32_0 = arith.constant 0 : i32
    return %arg1, %arg0, %c0_i32 : i32, i32, i32
  }
  func.func @transform_1(%arg0: i32, %arg1: i32) -> (i32, i32) {
    %c0_i32 = arith.constant 0 : i32
    %c0_i32_0 = arith.constant 0 : i32
    %c0_i32_1 = arith.constant 0 : i32
    return %c0_i32, %c0_i32_0 : i32, i32
  }
  func.func @transform_2(%arg0: i32, %arg1: i32) -> (i32, i32) {
    %c0_i32 = arith.constant 0 : i32
    %c0_i32_0 = arith.constant 0 : i32
    %c0_i32_1 = arith.constant 0 : i32
    return %c0_i32, %c0_i32_0 : i32, i32
  }
  func.func @transform_3(%arg0: i32, %arg1: i32) -> (i32, i32, i32) {
    %c0_i32 = arith.constant 0 : i32
    %c0_i32_0 = arith.constant 0 : i32
    return %arg1, %arg0, %c0_i32 : i32, i32, i32
  }
  func.func @transform_4(%arg0: i32, %arg1: i32) -> (i32, i32, i32) {
    %c0_i32 = arith.constant 0 : i32
    %c0_i32_0 = arith.constant 0 : i32
    return %arg1, %arg0, %c0_i32 : i32, i32, i32
  }
}

</mosaic_0001>

<llo_original>
// kernel: tile.33
$region0: #{tile.33}
  #allocation0 [shape = 's32[1]{0}', space=sflag, size = 0x4, scoped, tag = 'scoped memory for tile.33']
  %s0 = inlined_call_operand.vmem [shape: f32[4], index: 0, kind: input, shape index: {}]
  %s1 = inlined_call_operand.vmem [shape: f32[32,4], index: 1, kind: output, shape index: {}]
  // Predicated region
  $region2: #{tile.33} parent=0 // pred_check
    _
  $region3: #{tile.33} parent=0 // pred_check_branch
    %3 = sbr.rel (0) target = $region5
  $region4: #{tile.33} parent=0 // pred_region
    _
  $region5: #{tile.33} parent=0 // pred_fallthru
    _
  %v4 = vld [vmem:[%s0] ss:$0 sm:$0xff]
  %5 = vst [vmem:[%s1] sm:$0xff] %v4
  %s6 = scalar_lea.vmem %s1, 8
  %7 = vst [vmem:[%s6] sm:$0xff] %v4
  %s8 = scalar_lea.vmem %s1, 16
  %9 = vst [vmem:[%s8] sm:$0xff] %v4
  %s10 = scalar_lea.vmem %s1, 24
  %11 = vst [vmem:[%s10] sm:$0xff] %v4

// kernel: tile.34
$region0: #{tile.34}
  %s0 = inlined_call_operand.vmem [shape: f32[32,4], index: 0, kind: input, shape index: {}]
  %s1 = inlined_call_operand.vmem [shape: f32[1,128], index: 1, kind: output, shape index: {}]
  $region1: #{tile.34} parent=0
    #allocation0 [shape = 'u8[4096]{0}', space=vmem, size = 0x1000, scoped, tag = 'scoped mem for output reshape']
    %v2 = vld [vmem:[%s0] sm:$0x1]
    %vm3 = vcmask 31744
    %4 = vst.msk [vmem:[#allocation0] sm:$0x1] %vm3, %v2
    %s5 = scalar_lea.vmem %s0, 31
    %v6 = vld [vmem:[%s5] sm:$0x1]
    %7 = vrot.lane.b32.xlu0 %v6, 124
    %v8 = vpop.permute.xlu0 %7
    %vm9 = vcmask 1048544
    %10 = vst.msk [vmem:[#allocation0] sm:$0x1] %vm9, %v8
    %s11 = scalar_lea.vmem %s0, 30
    %v12 = vld [vmem:[%s11] sm:$0x1]
    %13 = vrot.lane.b32.xlu0 %v12, 120
    %v14 = vpop.permute.xlu0 %13
    %vm15 = vcmask 1015744
    %16 = vst.msk [vmem:[#allocation0] sm:$0x1] %vm15, %v14
    %s17 = scalar_lea.vmem %s0, 29
    %v18 = vld [vmem:[%s17] sm:$0x1]
    %19 = vrot.lane.b32.xlu0 %v18, 116
    %v20 = vpop.permute.xlu0 %19
    %vm21 = vcmask 982944
    %22 = vst.msk [vmem:[#allocation0] sm:$0x1] %vm21, %v20
    %s23 = scalar_lea.vmem %s0, 28
    %v24 = vld [vmem:[%s23] sm:$0x1]
    %25 = vrot.lane.b32.xlu0 %v24, 112
    %v26 = vpop.permute.xlu0 %25
    %vm27 = vcmask 950144
    %28 = vst.msk [vmem:[#allocation0] sm:$0x1] %vm27, %v26
    %s29 = scalar_lea.vmem %s0, 27
    %v30 = vld [vmem:[%s29] sm:$0x1]
    %31 = vrot.lane.b32.xlu0 %v30, 108
    %v32 = vpop.permute.xlu0 %31
    %vm33 = vcmask 917344
    %34 = vst.msk [vmem:[#allocation0] sm:$0x1] %vm33, %v32
    %s35 = scalar_lea.vmem %s0, 26
    %v36 = vld [vmem:[%s35] sm:$0x1]
    %37 = vrot.lane.b32.xlu0 %v36, 104
    %v38 = vpop.permute.xlu0 %37
    %vm39 = vcmask 884544
    %40 = vst.msk [vmem:[#allocation0] sm:$0x1] %vm39, %v38
    %s41 = scalar_lea.vmem %s0, 25
    %v42 = vld [vmem:[%s41] sm:$0x1]
    %43 = vrot.lane.b32.xlu0 %v42, 100
    %v44 = vpop.permute.xlu0 %43
    %vm45 = vcmask 851744
    %46 = vst.msk [vmem:[#allocation0] sm:$0x1] %vm45, %v44
    %s47 = scalar_lea.vmem %s0, 24
    %v48 = vld [vmem:[%s47] sm:$0x1]
    %49 = vrot.lane.b32.xlu0 %v48, 96
    %v50 = vpop.permute.xlu0 %49
    %vm51 = vcmask 818944
    %52 = vst.msk [vmem:[#allocation0] sm:$0x1] %vm51, %v50
    %s53 = scalar_lea.vmem %s0, 23
    %v54 = vld [vmem:[%s53] sm:$0x1]
    %55 = vrot.lane.b32.xlu0 %v54, 92
    %v56 = vpop.permute.xlu0 %55
    %vm57 = vcmask 786144
    %58 = vst.msk [vmem:[#allocation0] sm:$0x1] %vm57, %v56
    %s59 = scalar_lea.vmem %s0, 22
    %v60 = vld [vmem:[%s59] sm:$0x1]
    %61 = vrot.lane.b32.xlu0 %v60, 88
    %v62 = vpop.permute.xlu0 %61
    %vm63 = vcmask 753344
    %64 = vst.msk [vmem:[#allocation0] sm:$0x1] %vm63, %v62
    %s65 = scalar_lea.vmem %s0, 21
    %v66 = vld [vmem:[%s65] sm:$0x1]
    %67 = vrot.lane.b32.xlu0 %v66, 84
    %v68 = vpop.permute.xlu0 %67
    %vm69 = vcmask 720544
    %70 = vst.msk [vmem:[#allocation0] sm:$0x1] %vm69, %v68
    %s71 = scalar_lea.vmem %s0, 20
    %v72 = vld [vmem:[%s71] sm:$0x1]
    %73 = vrot.lane.b32.xlu0 %v72, 80
    %v74 = vpop.permute.xlu0 %73
    %vm75 = vcmask 687744
    %76 = vst.msk [vmem:[#allocation0] sm:$0x1] %vm75, %v74
    %s77 = scalar_lea.vmem %s0, 19
    %v78 = vld [vmem:[%s77] sm:$0x1]
    %79 = vrot.lane.b32.xlu0 %v78, 76
    %v80 = vpop.permute.xlu0 %79
    %vm81 = vcmask 654944
    %82 = vst.msk [vmem:[#allocation0] sm:$0x1] %vm81, %v80
    %s83 = scalar_lea.vmem %s0, 18
    %v84 = vld [vmem:[%s83] sm:$0x1]
    %85 = vrot.lane.b32.xlu0 %v84, 72
    %v86 = vpop.permute.xlu0 %85
    %vm87 = vcmask 622144
    %88 = vst.msk [vmem:[#allocation0] sm:$0x1] %vm87, %v86
    %s89 = scalar_lea.vmem %s0, 17
    %v90 = vld [vmem:[%s89] sm:$0x1]
    %91 = vrot.lane.b32.xlu0 %v90, 68
    %v92 = vpop.permute.xlu0 %91
    %vm93 = vcmask 589344
    %94 = vst.msk [vmem:[#allocation0] sm:$0x1] %vm93, %v92
    %s95 = scalar_lea.vmem %s0, 16
    %v96 = vld [vmem:[%s95] sm:$0x1]
    %97 = vrot.lane.b32.xlu0 %v96, 64
    %v98 = vpop.permute.xlu0 %97
    %vm99 = vcmask 556544
    %100 = vst.msk [vmem:[#allocation0] sm:$0x1] %vm99, %v98
    %s101 = scalar_lea.vmem %s0, 15
    %v102 = vld [vmem:[%s101] sm:$0x1]
    %103 = vrot.lane.b32.xlu0 %v102, 60
    %v104 = vpop.permute.xlu0 %103
    %vm105 = vcmask 523744
    %106 = vst.msk [vmem:[#allocation0] sm:$0x1] %vm105, %v104
    %s107 = scalar_lea.vmem %s0, 14
    %v108 = vld [vmem:[%s107] sm:$0x1]
    %109 = vrot.lane.b32.xlu0 %v108, 56
    %v110 = vpop.permute.xlu0 %109
    %vm111 = vcmask 490944
    %112 = vst.msk [vmem:[#allocation0] sm:$0x1] %vm111, %v110
    %s113 = scalar_lea.vmem %s0, 13
    %v114 = vld [vmem:[%s113] sm:$0x1]
    %115 = vrot.lane.b32.xlu0 %v114, 52
    %v116 = vpop.permute.xlu0 %115
    %vm117 = vcmask 458144
    %118 = vst.msk [vmem:[#allocation0] sm:$0x1] %vm117, %v116
    %s119 = scalar_lea.vmem %s0, 12
    %v120 = vld [vmem:[%s119] sm:$0x1]
    %121 = vrot.lane.b32.xlu0 %v120, 48
    %v122 = vpop.permute.xlu0 %121
    %vm123 = vcmask 425344
    %124 = vst.msk [vmem:[#allocation0] sm:$0x1] %vm123, %v122
    %s125 = scalar_lea.vmem %s0, 11
    %v126 = vld [vmem:[%s125] sm:$0x1]
    %127 = vrot.lane.b32.xlu0 %v126, 44
    %v128 = vpop.permute.xlu0 %127
    %vm129 = vcmask 392544
    %130 = vst.msk [vmem:[#allocation0] sm:$0x1] %vm129, %v128
    %s131 = scalar_lea.vmem %s0, 10
    %v132 = vld [vmem:[%s131] sm:$0x1]
    %133 = vrot.lane.b32.xlu0 %v132, 40
    %v134 = vpop.permute.xlu0 %133
    %vm135 = vcmask 359744
    %136 = vst.msk [vmem:[#allocation0] sm:$0x1] %vm135, %v134
    %s137 = scalar_lea.vmem %s0, 9
    %v138 = vld [vmem:[%s137] sm:$0x1]
    %139 = vrot.lane.b32.xlu0 %v138, 36
    %v140 = vpop.permute.xlu0 %139
    %vm141 = vcmask 326944
    %142 = vst.msk [vmem:[#allocation0] sm:$0x1] %vm141, %v140
    %s143 = scalar_lea.vmem %s0, 8
    %v144 = vld [vmem:[%s143] sm:$0x1]
    %145 = vrot.lane.b32.xlu0 %v144, 32
    %v146 = vpop.permute.xlu0 %145
    %vm147 = vcmask 294144
    %148 = vst.msk [vmem:[#allocation0] sm:$0x1] %vm147, %v146
    %s149 = scalar_lea.vmem %s0, 7
    %v150 = vld [vmem:[%s149] sm:$0x1]
    %151 = vrot.lane.b32.xlu0 %v150, 28
    %v152 = vpop.permute.xlu0 %151
    %vm153 = vcmask 261344
    %154 = vst.msk [vmem:[#allocation0] sm:$0x1] %vm153, %v152
    %s155 = scalar_lea.vmem %s0, 6
    %v156 = vld [vmem:[%s155] sm:$0x1]
    %157 = vrot.lane.b32.xlu0 %v156, 24
    %v158 = vpop.permute.xlu0 %157
    %vm159 = vcmask 228544
    %160 = vst.msk [vmem:[#allocation0] sm:$0x1] %vm159, %v158
    %s161 = scalar_lea.vmem %s0, 5
    %v162 = vld [vmem:[%s161] sm:$0x1]
    %163 = vrot.lane.b32.xlu0 %v162, 20
    %v164 = vpop.permute.xlu0 %163
    %vm165 = vcmask 195744
    %166 = vst.msk [vmem:[#allocation0] sm:$0x1] %vm165, %v164
    %s167 = scalar_lea.vmem %s0, 4
    %v168 = vld [vmem:[%s167] sm:$0x1]
    %169 = vrot.lane.b32.xlu0 %v168, 16
    %v170 = vpop.permute.xlu0 %169
    %vm171 = vcmask 162944
    %172 = vst.msk [vmem:[#allocation0] sm:$0x1] %vm171, %v170
    %s173 = scalar_lea.vmem %s0, 3
    %v174 = vld [vmem:[%s173] sm:$0x1]
    %175 = vrot.lane.b32.xlu0 %v174, 12
    %v176 = vpop.permute.xlu0 %175
    %vm177 = vcmask 130144
    %178 = vst.msk [vmem:[#allocation0] sm:$0x1] %vm177, %v176
    %s179 = scalar_lea.vmem %s0, 2
    %v180 = vld [vmem:[%s179] sm:$0x1]
    %181 = vrot.lane.b32.xlu0 %v180, 8
    %v182 = vpop.permute.xlu0 %181
    %vm183 = vcmask 97344
    %184 = vst.msk [vmem:[#allocation0] sm:$0x1] %vm183, %v182
    %s185 = scalar_lea.vmem %s0, 1
    %v186 = vld [vmem:[%s185] sm:$0x1]
    %187 = vrot.lane.b32.xlu0 %v186, 4
    %v188 = vpop.permute.xlu0 %187
    %vm189 = vcmask 64544
    %190 = vst.msk [vmem:[#allocation0] sm:$0x1] %vm189, %v188
    %s192 = sshllo.u32 0, 1
    %v194 = vld [vmem:[#allocation0] sm:%s192]
    %s195 = sshllo.u32 0, 1
    %196 = vst [vmem:[%s1] sm:%s195] %v194

// kernel: bottleneck_forward.6
$region0: #{bottleneck_forward.6}
  #allocation0 [shape = 'u32[]', space=smem, size = 0x4, offset = 0x4, fixed_abs, tag = 'smem constant byte address 0x4 - core index']
  #allocation1 [shape = 'u32[144,128]{1,0:T(1,128)}', space=vmem, size = 0x12000, scoped, tag = 'internal scratch']
  %s0 = inlined_call_operand.vmem [shape: bf16[256,16], index: 0, kind: input, shape index: {}]
  %s1 = inlined_call_operand.vmem [shape: bf16[16,4], index: 1, kind: input, shape index: {}]
  %s2 = inlined_call_operand.vmem [shape: bf16[256,4], index: 2, kind: output, shape index: {0}]
  %s3 = inlined_call_operand.vmem [shape: f32[2,2,4], index: 3, kind: output, shape index: {1}]
  %4 = xla_tuple %s2, %s3
  %s5 = sld [smem:[#allocation0]]
  $region49: #{bottleneck_forward.6} parent=0
    _
  %s7 = ssub.s32 1, %s5
  %s8 = scalar_select 0, %s7, %s5
  loop: start=0, step=1, limit=4
  $region2: #{bottleneck_forward.6} parent=0 // loop_pre_header
    _
  $region3: #{bottleneck_forward.6} parent=0 // loop_header
    %s10 = sphi 0, %s14
    %p11 = scmp.ge.s32.totalorder %s10, 4
    %s20 = sphi 0, %s22
    %s23 = sphi 0, %s20
    %s24 = sphi 0, %s23
    %s40 = sphi 0, %s24
    %s44 = sphi 0, %s44
    %s46 = sphi 0, %s44
    %s47 = sphi 0, %s46
    %s61 = sphi 0, %s47
    %s67 = sphi 0, %s69
    %s70 = sphi 0, %s67
    %s71 = sphi 0, %s70
    %s87 = sphi 0, %s71
    %s93 = sphi 0, %s95
    %s96 = sphi 0, %s93
    %s97 = sphi 0, %s96
    %s113 = sphi 0, %s97
  $region4: #{bottleneck_forward.6} parent=0 // loop_header_branch
    %13 = sbr.rel (%p11) target = $region8
  $region5: #{bottleneck_forward.6} parent=0 // loop_body
    %s15 = ssub.s32 %s10, 1
    %s16 = ssub.s32 %s10, 2
    %s17 = sadd.s32 %s10, 1
    %s18 = ssub.s32 %s10, %s17
    %p19 = scmp.eq.s32.totalorder %s18, 0
    %s21 = sadd.s32 %s20, 1
    %s22 = scalar_select %p19, %s20, %s21
    %p25 = pneg %p19
    %p26 = scmp.eq.s32.totalorder %s10, 1
    %p27 = por %p25, %p26
    %p28 = scmp.ne.s32.totalorder %s20, %s23
    %p29 = scmp.eq.s32.totalorder %s10, 0
    %p30 = por %p28, %p29
    %p31 = scmp.ne.s32.totalorder %s20, %s23
    %p32 = scmp.eq.s32.totalorder %s15, 1
    %p33 = por %p31, %p32
    %p34 = scmp.ne.s32.totalorder %s23, %s24
    %p35 = scmp.eq.s32.totalorder %s15, 0
    %p36 = por %p34, %p35
    %p37 = scmp.ne.s32.totalorder %s23, %s24
    %p38 = scmp.eq.s32.totalorder %s16, 1
    %p39 = por %p37, %p38
    %p41 = scmp.ne.s32.totalorder %s24, %s40
    %p42 = scmp.eq.s32.totalorder %s16, 0
    %p43 = por %p41, %p42
    %s45 = sadd.s32 %s44, 1
    %p48 = scmp.eq.s32.totalorder %s10, 1
    %p49 = scmp.ne.s32.totalorder %s44, %s46
    %p50 = scmp.eq.s32.totalorder %s10, 0
    %p51 = por %p49, %p50
    %p52 = scmp.ne.s32.totalorder %s44, %s46
    %p53 = scmp.eq.s32.totalorder %s15, 1
    %p54 = por %p52, %p53
    %p55 = scmp.ne.s32.totalorder %s46, %s47
    %p56 = scmp.eq.s32.totalorder %s15, 0
    %p57 = por %p55, %p56
    %p58 = scmp.ne.s32.totalorder %s46, %s47
    %p59 = scmp.eq.s32.totalorder %s16, 1
    %p60 = por %p58, %p59
    %p62 = scmp.ne.s32.totalorder %s47, %s61
    %p63 = scmp.eq.s32.totalorder %s16, 0
    %p64 = por %p62, %p63
    %s65 = ssub.s32 %s10, %s17
    %p66 = scmp.eq.s32.totalorder %s65, 0
    %s68 = sadd.s32 %s67, 1
    %s69 = scalar_select %p66, %s67, %s68
    %p72 = pneg %p66
    %p73 = scmp.eq.s32.totalorder %s10, 1
    %p74 = por %p72, %p73
    %p75 = scmp.ne.s32.totalorder %s67, %s70
    %p76 = scmp.eq.s32.totalorder %s10, 0
    %p77 = por %p75, %p76
    %p78 = scmp.ne.s32.totalorder %s67, %s70
    %p79 = scmp.eq.s32.totalorder %s15, 1
    %p80 = por %p78, %p79
    %p81 = scmp.ne.s32.totalorder %s70, %s71
    %p82 = scmp.eq.s32.totalorder %s15, 0
    %p83 = por %p81, %p82
    %p84 = scmp.ne.s32.totalorder %s70, %s71
    %p85 = scmp.eq.s32.totalorder %s16, 1
    %p86 = por %p84, %p85
    %p88 = scmp.ne.s32.totalorder %s71, %s87
    %p89 = scmp.eq.s32.totalorder %s16, 0
    %p90 = por %p88, %p89
    %s91 = ssub.s32 %s10, %s17
    %p92 = scmp.eq.s32.totalorder %s91, 0
    %s94 = sadd.s32 %s93, 1
    %s95 = scalar_select %p92, %s93, %s94
    %p98 = pneg %p92
    %p99 = scmp.eq.s32.totalorder %s10, 1
    %p100 = por %p98, %p99
    %p101 = scmp.ne.s32.totalorder %s93, %s96
    %p102 = scmp.eq.s32.totalorder %s10, 0
    %p103 = por %p101, %p102
    %p104 = scmp.ne.s32.totalorder %s93, %s96
    %p105 = scmp.eq.s32.totalorder %s15, 1
    %p106 = por %p104, %p105
    %p107 = scmp.ne.s32.totalorder %s96, %s97
    %p108 = scmp.eq.s32.totalorder %s15, 0
    %p109 = por %p107, %p108
    %p110 = scmp.ne.s32.totalorder %s96, %s97
    %p111 = scmp.eq.s32.totalorder %s16, 1
    %p112 = por %p110, %p111
    %p114 = scmp.ne.s32.totalorder %s97, %s113
    %p115 = scmp.eq.s32.totalorder %s16, 0
    %p116 = por %p114, %p115
    %p117 = scmp.le.s32.totalorder 1, %s10
    %p118 = scmp.lt.s32.totalorder %s10, 3
    %p119 = pnand %p117, %p118
    %p120 = pneg %p119
    // Predicated region
    $region9: #{bottleneck_forward.6} parent=5 // pred_check
      _
    $region10: #{bottleneck_forward.6} parent=5 // pred_check_branch
      %122 = sbr.rel (%p119) target = $region12
    $region11: #{bottleneck_forward.6} parent=5 // pred_region
      %s123 = ssub.s32 %s10, 1
      // Predicated region
      $region13: #{bottleneck_forward.6} parent=11 // pred_check
        %p124 = pneg %p57
      $region14: #{bottleneck_forward.6} parent=11 // pred_check_branch
        %126 = sbr.rel (%p124) target = $region16
      $region15: #{bottleneck_forward.6} parent=11 // pred_region
        _
      $region16: #{bottleneck_forward.6} parent=11 // pred_fallthru
        _
    $region12: #{bottleneck_forward.6} parent=5 // pred_fallthru
      _
    %p127 = scmp.lt.s32.totalorder %s10, 2
    // Predicated region
    $region17: #{bottleneck_forward.6} parent=5 // pred_check
      %p128 = pneg %p127
    $region18: #{bottleneck_forward.6} parent=5 // pred_check_branch
      %130 = sbr.rel (%p128) target = $region20
    $region19: #{bottleneck_forward.6} parent=5 // pred_region
      // Predicated region
      $region21: #{bottleneck_forward.6} parent=19 // pred_check
        %p131 = pneg %p30
      $region22: #{bottleneck_forward.6} parent=19 // pred_check_branch
        %133 = sbr.rel (%p131) target = $region24
      $region23: #{bottleneck_forward.6} parent=19 // pred_region
        %s134 = smul.u32 16, %s10
        %p135 = scmp.lt.s32.totalorder %s134, 31
        %s136 = scalar_select %p135, %s134, 31
        %s137 = smul.addr %s136, 4
        %s138 = scalar_lea.vmem %s0, %s137
        %s139 = smul.u32 16, %s10
      $region24: #{bottleneck_forward.6} parent=19 // pred_fallthru
        _
    $region20: #{bottleneck_forward.6} parent=5 // pred_fallthru
      _
    %p140 = scmp.le.s32.totalorder 1, %s10
    %p141 = scmp.lt.s32.totalorder %s10, 3
    %p142 = pnand %p140, %p141
    %p143 = pneg %p142
    // Predicated region
    $region25: #{bottleneck_forward.6} parent=5 // pred_check
      _
    $region26: #{bottleneck_forward.6} parent=5 // pred_check_branch
      %145 = sbr.rel (%p142) target = $region28
    $region27: #{bottleneck_forward.6} parent=5 // pred_region
      %s146 = ssub.s32 %s10, 1
      %s147 = smul.u32 16, %s15
      %p148 = scmp.lt.s32.totalorder %s147, 31
      %s149 = scalar_select %p148, %s147, 31
      %s150 = smul.addr %s149, 4
      %s151 = scalar_lea.vmem %s0, %s150
      %p152 = pneg %p36
      %p153 = pneg %p33
      %p154 = pneg %p57
      %p155 = pneg %p54
      %p156 = pneg %p83
      %p157 = pneg %p80
      %s158 = smul.u32 16, %s15
      %p159 = scmp.lt.s32.totalorder %s158, 31
      %s160 = scalar_select %p159, %s158, 31
      %s161 = smul.addr %s160, 4
      %s162 = scalar_lea.vmem %s2, %s161
      %p163 = pneg %p109
      %p164 = pneg %p106
      %p165 = scmp.lt.s32.totalorder %s15, 1
      %s166 = scalar_select %p165, %s15, 1
      %s167 = smul.addr %s166, 2
      %s168 = scalar_lea.vmem %s3, %s167
      %s169 = smul.u32 16, %s15
      %p170 = scmp.lt.s32.totalorder %s169, 31
      %s171 = scalar_select %p170, %s169, 31
      %s172 = smul.addr %s171, 4
      %s173 = scalar_lea.vmem %s0, %s172
      %s174 = smul.u32 16, %s15
      %s175 = smul.u32 16, %s15
      %p176 = scmp.lt.s32.totalorder %s175, 31
      %s177 = scalar_select %p176, %s175, 31
      %s178 = smul.addr %s177, 4
      %s179 = scalar_lea.vmem %s2, %s178
      %s180 = smul.u32 16, %s15
      %p181 = scmp.lt.s32.totalorder %s15, 1
      %s182 = scalar_select %p181, %s15, 1
      %s183 = smul.addr %s182, 2
      %s184 = scalar_lea.vmem %s3, %s183
      %v186 = vld [vmem:[%s173] sm:$0xf]
      %v187 = vld [vmem:[%s173 + $0x4] sm:$0xf]
      %v188 = vld [vmem:[%s173 + $0x8] sm:$0xf]
      %v189 = vld [vmem:[%s173 + $0xc] sm:$0xf]
      %v190 = vld [vmem:[%s173 + $0x10] sm:$0xf]
      %v191 = vld [vmem:[%s173 + $0x14] sm:$0xf]
      %v192 = vld [vmem:[%s173 + $0x18] sm:$0xf]
      %v193 = vld [vmem:[%s173 + $0x1c] sm:$0xf]
      %v194 = vld [vmem:[%s173 + $0x20] sm:$0xf]
      %v195 = vld [vmem:[%s173 + $0x24] sm:$0xf]
      %v196 = vld [vmem:[%s173 + $0x28] sm:$0xf]
      %v197 = vld [vmem:[%s173 + $0x2c] sm:$0xf]
      %v198 = vld [vmem:[%s173 + $0x30] sm:$0xf]
      %v199 = vld [vmem:[%s173 + $0x34] sm:$0xf]
      %v200 = vld [vmem:[%s173 + $0x38] sm:$0xf]
      %v201 = vld [vmem:[%s173 + $0x3c] sm:$0xf]
      %v202 = vld [vmem:[%s1] sm:$0xf]
      %v203 = vld [vmem:[%s1 + $0x4] sm:$0xf]
      %v220 = vunpack.c.l.b16 %v186
      %v221 = vunpack.c.l.b16 %v187
      %v222 = vunpack.c.l.b16 %v188
      %v223 = vunpack.c.l.b16 %v189
      %v224 = vunpack.c.l.b16 %v190
      %v225 = vunpack.c.l.b16 %v191
      %v226 = vunpack.c.l.b16 %v192
      %v227 = vunpack.c.l.b16 %v193
      %v228 = vunpack.c.l.b16 %v194
      %v229 = vunpack.c.l.b16 %v195
      %v230 = vunpack.c.l.b16 %v196
      %v231 = vunpack.c.l.b16 %v197
      %v232 = vunpack.c.l.b16 %v198
      %v233 = vunpack.c.l.b16 %v199
      %v234 = vunpack.c.l.b16 %v200
      %v235 = vunpack.c.l.b16 %v201
      %v236 = vpack.c.b16 %v221, %v220
      %v237 = vpack.c.b16 %v223, %v222
      %v238 = vpack.c.b16 %v225, %v224
      %v239 = vpack.c.b16 %v227, %v226
      %v240 = vpack.c.b16 %v229, %v228
      %v241 = vpack.c.b16 %v231, %v230
      %v242 = vpack.c.b16 %v233, %v232
      %v243 = vpack.c.b16 %v235, %v234
      %v246 = vunpack.c.l.b16 %v202
      %v247 = vunpack.c.l.b16 %v203
      %v248 = vpack.c.b16 %v247, %v246
      %vm250 = vcmask 130048
      %v252 = vsel %vm250, %v236, 0
      %v255 = vsel %vm250, %v237, 0
      %v258 = vsel %vm250, %v238, 0
      %v261 = vsel %vm250, %v239, 0
      %v264 = vsel %vm250, %v240, 0
      %v267 = vsel %vm250, %v241, 0
      %v270 = vsel %vm250, %v242, 0
      %v273 = vsel %vm250, %v243, 0
      %275 = vmatprep.subr.bf16.mxu0 0
      %276 = vmatpush1.bf16.msra.mxu0 %v248
      %277 = vmatprep.subr.bf16.mxu0 0
      %278 = vmatpush1.bf16.msra.mxu0 0
      %279 = vmatprep.subr.bf16.mxu0 0
      %280 = vmatpush1.bf16.msra.mxu0 0
      %281 = vmatprep.subr.bf16.mxu0 0
      %282 = vmatpush1.bf16.msra.mxu0 0
      %283 = vmatprep.subr.bf16.mxu0 0
      %284 = vmatpush1.bf16.msra.mxu0 0
      %285 = vmatprep.subr.bf16.mxu0 0
      %286 = vmatpush1.bf16.msra.mxu0 0
      %287 = vmatprep.subr.bf16.mxu0 0
      %288 = vmatpush1.bf16.msra.mxu0 0
      %289 = vmatprep.subr.bf16.mxu0 0
      %290 = vmatpush1.bf16.msra.mxu0 0
      %291 = vmatprep.subr.bf16.mxu0 0
      %292 = vmatpush1.bf16.msra.mxu0 0
      %293 = vmatprep.subr.bf16.mxu0 0
      %294 = vmatpush1.bf16.msra.mxu0 0
      %295 = vmatprep.subr.bf16.mxu0 0
      %296 = vmatpush1.bf16.msra.mxu0 0
      %297 = vmatprep.subr.bf16.mxu0 0
      %298 = vmatpush1.bf16.msra.mxu0 0
      %299 = vmatprep.subr.bf16.mxu0 0
      %300 = vmatpush1.bf16.msra.mxu0 0
      %301 = vmatprep.subr.bf16.mxu0 0
      %302 = vmatpush1.bf16.msra.mxu0 0
      %303 = vmatprep.subr.bf16.mxu0 0
      %304 = vmatpush1.bf16.msra.mxu0 0
      %305 = vmatprep.subr.bf16.mxu0 0
      %306 = vmatpush1.bf16.msra.mxu0 0
      %307 = vmatprep.mubr.bf16.mxu0 0
      %308 = vmatmul.mubr.bf16.gmra.mrb[0].mxu0 %v252
      %v309 = vpop.f32.mrb[0].mxu0
      %v310 = vadd.f32 0.0, %v309
      %v311 = vpop.f32.mrb[0].mxu0
      %v312 = vpop.f32.mrb[0].mxu0
      %v313 = vadd.f32 0.0, %v312
      %v314 = vpop.f32.mrb[0].mxu0
      %315 = vmatprep.mubr.bf16.mxu0 0
      %316 = vmatmul.mubr.bf16.gmra.mrb[0].mxu0 %v255
      %v317 = vpop.f32.mrb[0].mxu0
      %v318 = vadd.f32 0.0, %v317
      %v319 = vpop.f32.mrb[0].mxu0
      %v320 = vpop.f32.mrb[0].mxu0
      %v321 = vadd.f32 0.0, %v320
      %v322 = vpop.f32.mrb[0].mxu0
      %323 = vmatprep.mubr.bf16.mxu0 0
      %324 = vmatmul.mubr.bf16.gmra.mrb[0].mxu0 %v258
      %v325 = vpop.f32.mrb[0].mxu0
      %v326 = vadd.f32 0.0, %v325
      %v327 = vpop.f32.mrb[0].mxu0
      %v328 = vpop.f32.mrb[0].mxu0
      %v329 = vadd.f32 0.0, %v328
      %v330 = vpop.f32.mrb[0].mxu0
      %331 = vmatprep.mubr.bf16.mxu0 0
      %332 = vmatmul.mubr.bf16.gmra.mrb[0].mxu0 %v261
      %v333 = vpop.f32.mrb[0].mxu0
      %v334 = vadd.f32 0.0, %v333
      %v335 = vpop.f32.mrb[0].mxu0
      %v336 = vpop.f32.mrb[0].mxu0
      %v337 = vadd.f32 0.0, %v336
      %v338 = vpop.f32.mrb[0].mxu0
      %339 = vmatprep.mubr.bf16.mxu0 0
      %340 = vmatmul.mubr.bf16.gmra.mrb[0].mxu0 %v264
      %v341 = vpop.f32.mrb[0].mxu0
      %v342 = vadd.f32 0.0, %v341
      %v343 = vpop.f32.mrb[0].mxu0
      %v344 = vpop.f32.mrb[0].mxu0
      %v345 = vadd.f32 0.0, %v344
      %v346 = vpop.f32.mrb[0].mxu0
      %347 = vmatprep.mubr.bf16.mxu0 0
      %348 = vmatmul.mubr.bf16.gmra.mrb[0].mxu0 %v267
      %v349 = vpop.f32.mrb[0].mxu0
      %v350 = vadd.f32 0.0, %v349
      %v351 = vpop.f32.mrb[0].mxu0
      %v352 = vpop.f32.mrb[0].mxu0
      %v353 = vadd.f32 0.0, %v352
      %v354 = vpop.f32.mrb[0].mxu0
      %355 = vmatprep.mubr.bf16.mxu0 0
      %356 = vmatmul.mubr.bf16.gmra.mrb[0].mxu0 %v270
      %v357 = vpop.f32.mrb[0].mxu0
      %v358 = vadd.f32 0.0, %v357
      %v359 = vpop.f32.mrb[0].mxu0
      %v360 = vpop.f32.mrb[0].mxu0
      %v361 = vadd.f32 0.0, %v360
      %v362 = vpop.f32.mrb[0].mxu0
      %363 = vmatprep.mubr.bf16.mxu0 0
      %364 = vmatmul.mubr.bf16.gmra.mrb[0].mxu0 %v273
      %v365 = vpop.f32.mrb[0].mxu0
      %v366 = vadd.f32 0.0, %v365
      %v367 = vpop.f32.mrb[0].mxu0
      %v368 = vpop.f32.mrb[0].mxu0
      %v369 = vadd.f32 0.0, %v368
      %v370 = vpop.f32.mrb[0].mxu0
      %371 = vdwg.mxu0
      %v372 = vpack.c.bf16 %v313, %v310
      %v373 = vpack.c.bf16 %v321, %v318
      %v374 = vpack.c.bf16 %v329, %v326
      %v375 = vpack.c.bf16 %v337, %v334
      %v376 = vpack.c.bf16 %v345, %v342
      %v377 = vpack.c.bf16 %v353, %v350
      %v378 = vpack.c.bf16 %v361, %v358
      %v379 = vpack.c.bf16 %v369, %v366
      %v388 = vunpack.c.l.b16 %v372
      %v389 = vunpack.c.h.b16 %v372
      %v390 = vunpack.c.l.b16 %v373
      %v391 = vunpack.c.h.b16 %v373
      %v392 = vunpack.c.l.b16 %v374
      %v393 = vunpack.c.h.b16 %v374
      %v394 = vunpack.c.l.b16 %v375
      %v395 = vunpack.c.h.b16 %v375
      %v396 = vunpack.c.l.b16 %v376
      %v397 = vunpack.c.h.b16 %v376
      %v398 = vunpack.c.l.b16 %v377
      %v399 = vunpack.c.h.b16 %v377
      %v400 = vunpack.c.l.b16 %v378
      %v401 = vunpack.c.h.b16 %v378
      %v402 = vunpack.c.l.b16 %v379
      %v403 = vunpack.c.h.b16 %v379
      %v404 = vpack.c.b16 %v388, %v388
      %v405 = vpack.c.b16 %v389, %v389
      %v406 = vpack.c.b16 %v390, %v390
      %v407 = vpack.c.b16 %v391, %v391
      %v408 = vpack.c.b16 %v392, %v392
      %v409 = vpack.c.b16 %v393, %v393
      %v410 = vpack.c.b16 %v394, %v394
      %v411 = vpack.c.b16 %v395, %v395
      %v412 = vpack.c.b16 %v396, %v396
      %v413 = vpack.c.b16 %v397, %v397
      %v414 = vpack.c.b16 %v398, %v398
      %v415 = vpack.c.b16 %v399, %v399
      %v416 = vpack.c.b16 %v400, %v400
      %v417 = vpack.c.b16 %v401, %v401
      %v418 = vpack.c.b16 %v402, %v402
      %v419 = vpack.c.b16 %v403, %v403
      %vm436 = vcmask 27648
      %437 = vst.msk [vmem:[%s179] sm:$0xf] %vm436, %v404
      %438 = vst.msk [vmem:[%s179 + $0x4] sm:$0xf] %vm436, %v405
      %439 = vst.msk [vmem:[%s179 + $0x8] sm:$0xf] %vm436, %v406
      %440 = vst.msk [vmem:[%s179 + $0xc] sm:$0xf] %vm436, %v407
      %441 = vst.msk [vmem:[%s179 + $0x10] sm:$0xf] %vm436, %v408
      %442 = vst.msk [vmem:[%s179 + $0x14] sm:$0xf] %vm436, %v409
      %443 = vst.msk [vmem:[%s179 + $0x18] sm:$0xf] %vm436, %v410
      %444 = vst.msk [vmem:[%s179 + $0x1c] sm:$0xf] %vm436, %v411
      %445 = vst.msk [vmem:[%s179 + $0x20] sm:$0xf] %vm436, %v412
      %446 = vst.msk [vmem:[%s179 + $0x24] sm:$0xf] %vm436, %v413
      %447 = vst.msk [vmem:[%s179 + $0x28] sm:$0xf] %vm436, %v414
      %448 = vst.msk [vmem:[%s179 + $0x2c] sm:$0xf] %vm436, %v415
      %449 = vst.msk [vmem:[%s179 + $0x30] sm:$0xf] %vm436, %v416
      %450 = vst.msk [vmem:[%s179 + $0x34] sm:$0xf] %vm436, %v417
      %451 = vst.msk [vmem:[%s179 + $0x38] sm:$0xf] %vm436, %v418
      %452 = vst.msk [vmem:[%s179 + $0x3c] sm:$0xf] %vm436, %v419
      %vm453 = vcmask 31744
      %v454 = vsel %vm453, %v310, 0.0
      %v455 = vsel %vm453, %v313, 0.0
      %v456 = vadd.f32 %v454, %v455
      %v457 = vsel %vm453, %v318, 0.0
      %v458 = vadd.f32 %v456, %v457
      %v459 = vsel %vm453, %v321, 0.0
      %v460 = vadd.f32 %v458, %v459
      %v461 = vsel %vm453, %v326, 0.0
      %v462 = vadd.f32 %v460, %v461
      %v463 = vsel %vm453, %v329, 0.0
      %v464 = vadd.f32 %v462, %v463
      %v465 = vsel %vm453, %v334, 0.0
      %v466 = vadd.f32 %v464, %v465
      %v467 = vsel %vm453, %v337, 0.0
      %v468 = vadd.f32 %v466, %v467
      %v469 = vsel %vm453, %v342, 0.0
      %v470 = vadd.f32 %v468, %v469
      %v471 = vsel %vm453, %v345, 0.0
      %v472 = vadd.f32 %v470, %v471
      %v473 = vsel %vm453, %v350, 0.0
      %v474 = vadd.f32 %v472, %v473
      %v475 = vsel %vm453, %v353, 0.0
      %v476 = vadd.f32 %v474, %v475
      %v477 = vsel %vm453, %v358, 0.0
      %v478 = vadd.f32 %v476, %v477
      %v479 = vsel %vm453, %v361, 0.0
      %v480 = vadd.f32 %v478, %v479
      %v481 = vsel %vm453, %v366, 0.0
      %v482 = vadd.f32 %v480, %v481
      %v483 = vsel %vm453, %v369, 0.0
      %v484 = vadd.f32 %v482, %v483
      %v485 = vrot.slane %v484, 4
      %v486 = vadd.f32 %v484, %v485
      %v487 = vrot.slane %v486, 2
      %v488 = vadd.f32 %v486, %v487
      %v489 = vrot.slane %v488, 1
      %v490 = vadd.f32 %v488, %v489
      %vm491 = vcmask 24576
      %492 = vst.msk [vmem:[%s184] sm:$0x1] %vm491, %v490
      %v493 = vmul.f32 %v310, %v310
      %v494 = vmul.f32 %v313, %v313
      %v495 = vmul.f32 %v318, %v318
      %v496 = vmul.f32 %v321, %v321
      %v497 = vmul.f32 %v326, %v326
      %v498 = vmul.f32 %v329, %v329
      %v499 = vmul.f32 %v334, %v334
      %v500 = vmul.f32 %v337, %v337
      %v501 = vmul.f32 %v342, %v342
      %v502 = vmul.f32 %v345, %v345
      %v503 = vmul.f32 %v350, %v350
      %v504 = vmul.f32 %v353, %v353
      %v505 = vmul.f32 %v358, %v358
      %v506 = vmul.f32 %v361, %v361
      %v507 = vmul.f32 %v366, %v366
      %v508 = vmul.f32 %v369, %v369
      %v509 = vsel %vm453, %v493, 0.0
      %v510 = vsel %vm453, %v494, 0.0
      %v511 = vadd.f32 %v509, %v510
      %v512 = vsel %vm453, %v495, 0.0
      %v513 = vadd.f32 %v511, %v512
      %v514 = vsel %vm453, %v496, 0.0
      %v515 = vadd.f32 %v513, %v514
      %v516 = vsel %vm453, %v497, 0.0
      %v517 = vadd.f32 %v515, %v516
      %v518 = vsel %vm453, %v498, 0.0
      %v519 = vadd.f32 %v517, %v518
      %v520 = vsel %vm453, %v499, 0.0
      %v521 = vadd.f32 %v519, %v520
      %v522 = vsel %vm453, %v500, 0.0
      %v523 = vadd.f32 %v521, %v522
      %v524 = vsel %vm453, %v501, 0.0
      %v525 = vadd.f32 %v523, %v524
      %v526 = vsel %vm453, %v502, 0.0
      %v527 = vadd.f32 %v525, %v526
      %v528 = vsel %vm453, %v503, 0.0
      %v529 = vadd.f32 %v527, %v528
      %v530 = vsel %vm453, %v504, 0.0
      %v531 = vadd.f32 %v529, %v530
      %v532 = vsel %vm453, %v505, 0.0
      %v533 = vadd.f32 %v531, %v532
      %v534 = vsel %vm453, %v506, 0.0
      %v535 = vadd.f32 %v533, %v534
      %v536 = vsel %vm453, %v507, 0.0
      %v537 = vadd.f32 %v535, %v536
      %v538 = vsel %vm453, %v508, 0.0
      %v539 = vadd.f32 %v537, %v538
      %v540 = vrot.slane %v539, 4
      %v541 = vadd.f32 %v539, %v540
      %v542 = vrot.slane %v541, 2
      %v543 = vadd.f32 %v541, %v542
      %v544 = vrot.slane %v543, 1
      %v545 = vadd.f32 %v543, %v544
      %546 = vst.msk [vmem:[%s184 + $0x1] sm:$0x1] %vm491, %v545
      %s547 = smul.u32 16, %s15
      %p548 = scmp.lt.s32.totalorder %s547, 31
      %s549 = scalar_select %p548, %s547, 31
      %s550 = smul.addr %s549, 4
      %s551 = scalar_lea.vmem %s2, %s550
      %p552 = scmp.lt.s32.totalorder %s15, 1
      %s553 = scalar_select %p552, %s15, 1
      %s554 = smul.addr %s553, 2
      %s555 = scalar_lea.vmem %s3, %s554
      // Predicated region
      $region29: #{bottleneck_forward.6} parent=27 // pred_check
        %p556 = pneg %p80
      $region30: #{bottleneck_forward.6} parent=27 // pred_check_branch
        %558 = sbr.rel (%p556) target = $region32
      $region31: #{bottleneck_forward.6} parent=27 // pred_region
        %s559 = smul.u32 16, %s15
      $region32: #{bottleneck_forward.6} parent=27 // pred_fallthru
        _
      // Predicated region
      $region33: #{bottleneck_forward.6} parent=27 // pred_check
        %p560 = pneg %p106
      $region34: #{bottleneck_forward.6} parent=27 // pred_check_branch
        %562 = sbr.rel (%p560) target = $region36
      $region35: #{bottleneck_forward.6} parent=27 // pred_region
        _
      $region36: #{bottleneck_forward.6} parent=27 // pred_fallthru
        _
    $region28: #{bottleneck_forward.6} parent=5 // pred_fallthru
      _
    %p563 = scmp.le.s32.totalorder 2, %s10
    // Predicated region
    $region37: #{bottleneck_forward.6} parent=5 // pred_check
      %p564 = pneg %p563
    $region38: #{bottleneck_forward.6} parent=5 // pred_check_branch
      %566 = sbr.rel (%p564) target = $region40
    $region39: #{bottleneck_forward.6} parent=5 // pred_region
      %s567 = ssub.s32 %s10, 2
      // Predicated region
      $region41: #{bottleneck_forward.6} parent=39 // pred_check
        %p568 = pneg %p86
      $region42: #{bottleneck_forward.6} parent=39 // pred_check_branch
        %570 = sbr.rel (%p568) target = $region44
      $region43: #{bottleneck_forward.6} parent=39 // pred_region
        %s571 = smul.u32 16, %s16
        %p572 = scmp.lt.s32.totalorder %s571, 31
        %s573 = scalar_select %p572, %s571, 31
        %s574 = smul.addr %s573, 4
        %s575 = scalar_lea.vmem %s2, %s574
      $region44: #{bottleneck_forward.6} parent=39 // pred_fallthru
        _
      // Predicated region
      $region45: #{bottleneck_forward.6} parent=39 // pred_check
        %p576 = pneg %p112
      $region46: #{bottleneck_forward.6} parent=39 // pred_check_branch
        %578 = sbr.rel (%p576) target = $region48
      $region47: #{bottleneck_forward.6} parent=39 // pred_region
        %p579 = scmp.lt.s32.totalorder %s16, 1
        %s580 = scalar_select %p579, %s16, 1
        %s581 = smul.addr %s580, 2
        %s582 = scalar_lea.vmem %s3, %s581
      $region48: #{bottleneck_forward.6} parent=39 // pred_fallthru
        _
    $region40: #{bottleneck_forward.6} parent=5 // pred_fallthru
      _
  $region6: #{bottleneck_forward.6} parent=0 // loop_footer
    %s14 = sadd.s32 1, %s10
  $region7: #{bottleneck_forward.6} parent=0 // loop_footer_branch
    %9 = sbr.rel target = $region3
  $region8: #{bottleneck_forward.6} parent=0 // loop_exit
    _

// kernel: bottleneck_forward.7
$region0: #{bottleneck_forward.7}
  #allocation0 [shape = 'u32[]', space=smem, size = 0x4, offset = 0x4, fixed_abs, tag = 'smem constant byte address 0x4 - core index']
  #allocation1 [shape = 'u32[144,128]{1,0:T(1,128)}', space=vmem, size = 0x12000, scoped, tag = 'internal scratch']
  #allocation2 [shape = 'f32[4,128]{1,0:T(4,128)}', space=vmem, size = 0x800, scoped, tag = 'scratch operand']
  %s0 = inlined_call_operand.vmem [shape: bf16[2,4,128], index: 0, kind: input, shape index: {}]
  %s1 = inlined_call_operand.vmem [shape: f32[1,128], index: 1, kind: input, shape index: {}]
  %s2 = inlined_call_operand.vmem [shape: f32[1,128], index: 2, kind: input, shape index: {}]
  %s3 = inlined_call_operand.vmem [shape: bf16[2,4,128], index: 3, kind: output, shape index: {}]
  %s4 = sld [smem:[#allocation0]]
  $region49: #{bottleneck_forward.7} parent=0
    _
  %s6 = ssub.s32 1, %s4
  %s7 = scalar_select 0, %s6, %s4
  loop: start=0, step=1, limit=4
  $region2: #{bottleneck_forward.7} parent=0 // loop_pre_header
    _
  $region3: #{bottleneck_forward.7} parent=0 // loop_header
    %s9 = sphi 0, %s13
    %p10 = scmp.ge.s32.totalorder %s9, 4
    %s16 = sphi 0, %s28
    %s17 = sphi 0, %s24
    %s18 = sphi 0, %s16
    %s19 = sphi 0, %s17
    %s20 = sphi 0, %s18
    %s21 = sphi 0, %s19
    %s33 = sphi 0, %s35
    %s36 = sphi 0, %s33
    %s37 = sphi 0, %s36
    %s53 = sphi 0, %s37
    %s57 = sphi 0, %s57
    %s59 = sphi 0, %s57
    %s60 = sphi 0, %s59
    %s74 = sphi 0, %s60
    %s78 = sphi 0, %s78
    %s80 = sphi 0, %s78
    %s81 = sphi 0, %s80
    %s95 = sphi 0, %s81
    %s103 = sphi 0, %s105
    %s106 = sphi 0, %s103
    %s107 = sphi 0, %s106
    %s123 = sphi 0, %s107
  $region4: #{bottleneck_forward.7} parent=0 // loop_header_branch
    %12 = sbr.rel (%p10) target = $region8
  $region5: #{bottleneck_forward.7} parent=0 // loop_body
    %s14 = ssub.s32 %s9, 1
    %s15 = ssub.s32 %s9, 2
    %s22 = sadd.s32 1, %s17
    %p23 = scmp.ge.s32.totalorder %s22, 2
    %s24 = scalar_select %p23, 0, %s22
    %s25 = sadd.s32 1, %s16
    %s26 = scalar_select %p23, %s25, %s16
    %p27 = scmp.ge.s32.totalorder %s26, 1
    %s28 = scalar_select %p27, 0, %s26
    %s29 = ssub.s32 %s17, %s24
    %s30 = ssub.s32 %s16, %s28
    %s31 = sor.u32 %s29, %s30
    %p32 = scmp.eq.s32.totalorder %s31, 0
    %s34 = sadd.s32 %s33, 1
    %s35 = scalar_select %p32, %s33, %s34
    %p38 = pneg %p32
    %p39 = scmp.eq.s32.totalorder %s9, 1
    %p40 = por %p38, %p39
    %p41 = scmp.ne.s32.totalorder %s33, %s36
    %p42 = scmp.eq.s32.totalorder %s9, 0
    %p43 = por %p41, %p42
    %p44 = scmp.ne.s32.totalorder %s33, %s36
    %p45 = scmp.eq.s32.totalorder %s14, 1
    %p46 = por %p44, %p45
    %p47 = scmp.ne.s32.totalorder %s36, %s37
    %p48 = scmp.eq.s32.totalorder %s14, 0
    %p49 = por %p47, %p48
    %p50 = scmp.ne.s32.totalorder %s36, %s37
    %p51 = scmp.eq.s32.totalorder %s15, 1
    %p52 = por %p50, %p51
    %p54 = scmp.ne.s32.totalorder %s37, %s53
    %p55 = scmp.eq.s32.totalorder %s15, 0
    %p56 = por %p54, %p55
    %s58 = sadd.s32 %s57, 1
    %p61 = scmp.eq.s32.totalorder %s9, 1
    %p62 = scmp.ne.s32.totalorder %s57, %s59
    %p63 = scmp.eq.s32.totalorder %s9, 0
    %p64 = por %p62, %p63
    %p65 = scmp.ne.s32.totalorder %s57, %s59
    %p66 = scmp.eq.s32.totalorder %s14, 1
    %p67 = por %p65, %p66
    %p68 = scmp.ne.s32.totalorder %s59, %s60
    %p69 = scmp.eq.s32.totalorder %s14, 0
    %p70 = por %p68, %p69
    %p71 = scmp.ne.s32.totalorder %s59, %s60
    %p72 = scmp.eq.s32.totalorder %s15, 1
    %p73 = por %p71, %p72
    %p75 = scmp.ne.s32.totalorder %s60, %s74
    %p76 = scmp.eq.s32.totalorder %s15, 0
    %p77 = por %p75, %p76
    %s79 = sadd.s32 %s78, 1
    %p82 = scmp.eq.s32.totalorder %s9, 1
    %p83 = scmp.ne.s32.totalorder %s78, %s80
    %p84 = scmp.eq.s32.totalorder %s9, 0
    %p85 = por %p83, %p84
    %p86 = scmp.ne.s32.totalorder %s78, %s80
    %p87 = scmp.eq.s32.totalorder %s14, 1
    %p88 = por %p86, %p87
    %p89 = scmp.ne.s32.totalorder %s80, %s81
    %p90 = scmp.eq.s32.totalorder %s14, 0
    %p91 = por %p89, %p90
    %p92 = scmp.ne.s32.totalorder %s80, %s81
    %p93 = scmp.eq.s32.totalorder %s15, 1
    %p94 = por %p92, %p93
    %p96 = scmp.ne.s32.totalorder %s81, %s95
    %p97 = scmp.eq.s32.totalorder %s15, 0
    %p98 = por %p96, %p97
    %s99 = ssub.s32 %s17, %s24
    %s100 = ssub.s32 %s16, %s28
    %s101 = sor.u32 %s99, %s100
    %p102 = scmp.eq.s32.totalorder %s101, 0
    %s104 = sadd.s32 %s103, 1
    %s105 = scalar_select %p102, %s103, %s104
    %p108 = pneg %p102
    %p109 = scmp.eq.s32.totalorder %s9, 1
    %p110 = por %p108, %p109
    %p111 = scmp.ne.s32.totalorder %s103, %s106
    %p112 = scmp.eq.s32.totalorder %s9, 0
    %p113 = por %p111, %p112
    %p114 = scmp.ne.s32.totalorder %s103, %s106
    %p115 = scmp.eq.s32.totalorder %s14, 1
    %p116 = por %p114, %p115
    %p117 = scmp.ne.s32.totalorder %s106, %s107
    %p118 = scmp.eq.s32.totalorder %s14, 0
    %p119 = por %p117, %p118
    %p120 = scmp.ne.s32.totalorder %s106, %s107
    %p121 = scmp.eq.s32.totalorder %s15, 1
    %p122 = por %p120, %p121
    %p124 = scmp.ne.s32.totalorder %s107, %s123
    %p125 = scmp.eq.s32.totalorder %s15, 0
    %p126 = por %p124, %p125
    %p127 = scmp.le.s32.totalorder 1, %s9
    %p128 = scmp.lt.s32.totalorder %s9, 3
    %p129 = pnand %p127, %p128
    %p130 = pneg %p129
    // Predicated region
    $region9: #{bottleneck_forward.7} parent=5 // pred_check
      _
    $region10: #{bottleneck_forward.7} parent=5 // pred_check_branch
      %132 = sbr.rel (%p129) target = $region12
    $region11: #{bottleneck_forward.7} parent=5 // pred_region
      %s133 = ssub.s32 %s9, 1
      // Predicated region
      $region13: #{bottleneck_forward.7} parent=11 // pred_check
        %p134 = pneg %p70
      $region14: #{bottleneck_forward.7} parent=11 // pred_check_branch
        %136 = sbr.rel (%p134) target = $region16
      $region15: #{bottleneck_forward.7} parent=11 // pred_region
        _
      $region16: #{bottleneck_forward.7} parent=11 // pred_fallthru
        _
      // Predicated region
      $region17: #{bottleneck_forward.7} parent=11 // pred_check
        %p137 = pneg %p91
      $region18: #{bottleneck_forward.7} parent=11 // pred_check_branch
        %139 = sbr.rel (%p137) target = $region20
      $region19: #{bottleneck_forward.7} parent=11 // pred_region
        _
      $region20: #{bottleneck_forward.7} parent=11 // pred_fallthru
        _
    $region12: #{bottleneck_forward.7} parent=5 // pred_fallthru
      _
    %p140 = scmp.lt.s32.totalorder %s9, 2
    // Predicated region
    $region21: #{bottleneck_forward.7} parent=5 // pred_check
      %p141 = pneg %p140
    $region22: #{bottleneck_forward.7} parent=5 // pred_check_branch
      %143 = sbr.rel (%p141) target = $region24
    $region23: #{bottleneck_forward.7} parent=5 // pred_region
      // Predicated region
      $region25: #{bottleneck_forward.7} parent=23 // pred_check
        %p144 = pneg %p43
      $region26: #{bottleneck_forward.7} parent=23 // pred_check_branch
        %146 = sbr.rel (%p144) target = $region28
      $region27: #{bottleneck_forward.7} parent=23 // pred_region
        %p147 = scmp.lt.s32.totalorder %s17, 1
        %s148 = scalar_select %p147, %s17, 1
        %p149 = scmp.lt.s32.totalorder %s16, 0
        %s150 = scalar_select %p149, %s16, 0
        %s151 = sadd.s32 %s150, %s148
        %s152 = smul.addr %s151, 2
        %s153 = scalar_lea.vmem %s0, %s152
      $region28: #{bottleneck_forward.7} parent=23 // pred_fallthru
        _
    $region24: #{bottleneck_forward.7} parent=5 // pred_fallthru
      _
    %p154 = scmp.le.s32.totalorder 1, %s9
    %p155 = scmp.lt.s32.totalorder %s9, 3
    %p156 = pnand %p154, %p155
    %p157 = pneg %p156
    // Predicated region
    $region29: #{bottleneck_forward.7} parent=5 // pred_check
      _
    $region30: #{bottleneck_forward.7} parent=5 // pred_check_branch
      %159 = sbr.rel (%p156) target = $region32
    $region31: #{bottleneck_forward.7} parent=5 // pred_region
      %s160 = ssub.s32 %s9, 1
      %p161 = scmp.lt.s32.totalorder %s19, 1
      %s162 = scalar_select %p161, %s19, 1
      %p163 = scmp.lt.s32.totalorder %s18, 0
      %s164 = scalar_select %p163, %s18, 0
      %s165 = sadd.s32 %s164, %s162
      %s166 = smul.addr %s165, 2
      %s167 = scalar_lea.vmem %s0, %s166
      %p168 = pneg %p49
      %p169 = pneg %p46
      %p170 = pneg %p70
      %p171 = pneg %p67
      %p172 = pneg %p91
      %p173 = pneg %p88
      %p174 = pneg %p119
      %p175 = pneg %p116
      %p176 = scmp.lt.s32.totalorder %s19, 1
      %s177 = scalar_select %p176, %s19, 1
      %p178 = scmp.lt.s32.totalorder %s18, 0
      %s179 = scalar_select %p178, %s18, 0
      %s180 = sadd.s32 %s179, %s177
      %s181 = smul.addr %s180, 2
      %s182 = scalar_lea.vmem %s3, %s181
      %p183 = scmp.lt.s32.totalorder %s19, 1
      %s184 = scalar_select %p183, %s19, 1
      %p185 = scmp.lt.s32.totalorder %s18, 0
      %s186 = scalar_select %p185, %s18, 0
      %s187 = sadd.s32 %s186, %s184
      %s188 = smul.addr %s187, 2
      %s189 = scalar_lea.vmem %s0, %s188
      %p190 = scmp.lt.s32.totalorder %s19, 1
      %s191 = scalar_select %p190, %s19, 1
      %p192 = scmp.lt.s32.totalorder %s18, 0
      %s193 = scalar_select %p192, %s18, 0
      %s194 = sadd.s32 %s193, %s191
      %s195 = smul.addr %s194, 2
      %s196 = scalar_lea.vmem %s3, %s195
      %p197 = scmp.eq.s32.totalorder %s19, 0
      // Predicated region
      $region33: #{bottleneck_forward.7} parent=31 // pred_check
        %p198 = pneg %p197
      $region34: #{bottleneck_forward.7} parent=31 // pred_check_branch
        %200 = sbr.rel (%p198) target = $region36
      $region35: #{bottleneck_forward.7} parent=31 // pred_region
        %201 = vst [vmem:[#allocation2] sm:$0xf] 0.0
      $region36: #{bottleneck_forward.7} parent=31 // pred_fallthru
        _
      %v202 = vld [vmem:[%s189] sm:$0x3]
      %v203 = vunpack.c.l.bf16 %v202
      %v204 = vld [vmem:[%s1] sm:$0x1]
      %v206 = vlaneseq
      %v207 = vshrl.u32 %v206, 7
      %v208 = vsub.s32 0, %v207
      %v209 = vrot.slane %v204, %v208
      %v211 = vmul.f32 %v203, %v209
      %v212 = vld [vmem:[%s2] sm:$0x1]
      %v214 = vlaneseq
      %v215 = vshrl.u32 %v214, 7
      %v216 = vsub.s32 0, %v215
      %v217 = vrot.slane %v212, %v216
      %v219 = vadd.f32 %v211, %v217
      %v220 = vld [vmem:[#allocation2] sm:$0xf]
      %v221 = vadd.f32 %v220, %v219
      %vm222 = vcmp.ge.f32.partialorder %v221, 1.0
      %v223 = vsel %vm222, 1, 0
      %v224 = vcvt.s32.f32 %v223
      %v225 = vpack.c.bf16 %v224, %v224
      %226 = vst [vmem:[%s196] sm:$0x3] %v225
      %v227 = vsel %vm222, 0.0, %v221
      %228 = vst [vmem:[#allocation2] sm:$0xf] %v227
      %p229 = scmp.lt.s32.totalorder %s19, 1
      %s230 = scalar_select %p229, %s19, 1
      %p231 = scmp.lt.s32.totalorder %s18, 0
      %s232 = scalar_select %p231, %s18, 0
      %s233 = sadd.s32 %s232, %s230
      %s234 = smul.addr %s233, 2
      %s235 = scalar_lea.vmem %s3, %s234
      // Predicated region
      $region37: #{bottleneck_forward.7} parent=31 // pred_check
        %p236 = pneg %p116
      $region38: #{bottleneck_forward.7} parent=31 // pred_check_branch
        %238 = sbr.rel (%p236) target = $region40
      $region39: #{bottleneck_forward.7} parent=31 // pred_region
        _
      $region40: #{bottleneck_forward.7} parent=31 // pred_fallthru
        _
    $region32: #{bottleneck_forward.7} parent=5 // pred_fallthru
      _
    %p239 = scmp.le.s32.totalorder 2, %s9
    // Predicated region
    $region41: #{bottleneck_forward.7} parent=5 // pred_check
      %p240 = pneg %p239
    $region42: #{bottleneck_forward.7} parent=5 // pred_check_branch
      %242 = sbr.rel (%p240) target = $region44
    $region43: #{bottleneck_forward.7} parent=5 // pred_region
      %s243 = ssub.s32 %s9, 2
      // Predicated region
      $region45: #{bottleneck_forward.7} parent=43 // pred_check
        %p244 = pneg %p122
      $region46: #{bottleneck_forward.7} parent=43 // pred_check_branch
        %246 = sbr.rel (%p244) target = $region48
      $region47: #{bottleneck_forward.7} parent=43 // pred_region
        %p247 = scmp.lt.s32.totalorder %s21, 1
        %s248 = scalar_select %p247, %s21, 1
        %p249 = scmp.lt.s32.totalorder %s20, 0
        %s250 = scalar_select %p249, %s20, 0
        %s251 = sadd.s32 %s250, %s248
        %s252 = smul.addr %s251, 2
        %s253 = scalar_lea.vmem %s3, %s252
      $region48: #{bottleneck_forward.7} parent=43 // pred_fallthru
        _
    $region44: #{bottleneck_forward.7} parent=5 // pred_fallthru
      _
  $region6: #{bottleneck_forward.7} parent=0 // loop_footer
    %s13 = sadd.s32 1, %s9
  $region7: #{bottleneck_forward.7} parent=0 // loop_footer_branch
    %8 = sbr.rel target = $region3
  $region8: #{bottleneck_forward.7} parent=0 // loop_exit
    _

// kernel: tile.53
$region0: #{tile.53}
  #allocation0 [shape = 's32[1]{0}', space=sflag, size = 0x4, scoped, tag = 'scoped memory for tile.53']
  %s0 = inlined_call_operand.vmem [shape: f32[16], index: 0, kind: input, shape index: {}]
  %s1 = inlined_call_operand.vmem [shape: f32[8,16], index: 1, kind: output, shape index: {}]
  // Predicated region
  $region2: #{tile.53} parent=0 // pred_check
    _
  $region3: #{tile.53} parent=0 // pred_check_branch
    %3 = sbr.rel (0) target = $region5
  $region4: #{tile.53} parent=0 // pred_region
    _
  $region5: #{tile.53} parent=0 // pred_fallthru
    _
  %v4 = vld [vmem:[%s0] ss:$0 sm:$0xff]
  %5 = vst [vmem:[%s1] sm:$0xff] %v4

// kernel: tile.54
$region0: #{tile.54}
  %s0 = inlined_call_operand.vmem [shape: f32[8,16], index: 0, kind: input, shape index: {}]
  %s1 = inlined_call_operand.vmem [shape: f32[1,128], index: 1, kind: output, shape index: {}]
  $region1: #{tile.54} parent=0
    #allocation0 [shape = 'u8[4096]{0}', space=vmem, size = 0x1000, scoped, tag = 'scoped mem for output reshape']
    %v2 = vld [vmem:[%s0] sm:$0x1]
    %vm3 = vcmask 130048
    %4 = vst.msk [vmem:[#allocation0] sm:$0x1] %vm3, %v2
    %s5 = scalar_lea.vmem %s0, 7
    %v6 = vld [vmem:[%s5] sm:$0x1]
    %7 = vrot.lane.b32.xlu0 %v6, 112
    %v8 = vpop.permute.xlu0 %7
    %vm9 = vcmask 1048448
    %10 = vst.msk [vmem:[#allocation0] sm:$0x1] %vm9, %v8
    %s11 = scalar_lea.vmem %s0, 6
    %v12 = vld [vmem:[%s11] sm:$0x1]
    %13 = vrot.lane.b32.xlu0 %v12, 96
    %v14 = vpop.permute.xlu0 %13
    %vm15 = vcmask 917248
    %16 = vst.msk [vmem:[#allocation0] sm:$0x1] %vm15, %v14
    %s17 = scalar_lea.vmem %s0, 5
    %v18 = vld [vmem:[%s17] sm:$0x1]
    %19 = vrot.lane.b32.xlu0 %v18, 80
    %v20 = vpop.permute.xlu0 %19
    %vm21 = vcmask 786048
    %22 = vst.msk [vmem:[#allocation0] sm:$0x1] %vm21, %v20
    %s23 = scalar_lea.vmem %s0, 4
    %v24 = vld [vmem:[%s23] sm:$0x1]
    %25 = vrot.lane.b32.xlu0 %v24, 64
    %v26 = vpop.permute.xlu0 %25
    %vm27 = vcmask 654848
    %28 = vst.msk [vmem:[#allocation0] sm:$0x1] %vm27, %v26
    %s29 = scalar_lea.vmem %s0, 3
    %v30 = vld [vmem:[%s29] sm:$0x1]
    %31 = vrot.lane.b32.xlu0 %v30, 48
    %v32 = vpop.permute.xlu0 %31
    %vm33 = vcmask 523648
    %34 = vst.msk [vmem:[#allocation0] sm:$0x1] %vm33, %v32
    %s35 = scalar_lea.vmem %s0, 2
    %v36 = vld [vmem:[%s35] sm:$0x1]
    %37 = vrot.lane.b32.xlu0 %v36, 32
    %v38 = vpop.permute.xlu0 %37
    %vm39 = vcmask 392448
    %40 = vst.msk [vmem:[#allocation0] sm:$0x1] %vm39, %v38
    %s41 = scalar_lea.vmem %s0, 1
    %v42 = vld [vmem:[%s41] sm:$0x1]
    %43 = vrot.lane.b32.xlu0 %v42, 16
    %v44 = vpop.permute.xlu0 %43
    %vm45 = vcmask 261248
    %46 = vst.msk [vmem:[#allocation0] sm:$0x1] %vm45, %v44
    %s48 = sshllo.u32 0, 1
    %v50 = vld [vmem:[#allocation0] sm:%s48]
    %s51 = sshllo.u32 0, 1
    %52 = vst [vmem:[%s1] sm:%s51] %v50

// kernel: bottleneck_forward.10
$region0: #{bottleneck_forward.10}
  #allocation0 [shape = 'u32[]', space=smem, size = 0x4, offset = 0x4, fixed_abs, tag = 'smem constant byte address 0x4 - core index']
  #allocation1 [shape = 'u32[144,128]{1,0:T(1,128)}', space=vmem, size = 0x12000, scoped, tag = 'internal scratch']
  %s0 = inlined_call_operand.vmem [shape: bf16[256,4], index: 0, kind: input, shape index: {}]
  %s1 = inlined_call_operand.vmem [shape: bf16[4,16], index: 1, kind: input, shape index: {}]
  %s2 = inlined_call_operand.vmem [shape: bf16[256,16], index: 2, kind: output, shape index: {0}]
  %s3 = inlined_call_operand.vmem [shape: f32[2,2,16], index: 3, kind: output, shape index: {1}]
  %4 = xla_tuple %s2, %s3
  %s5 = sld [smem:[#allocation0]]
  $region49: #{bottleneck_forward.10} parent=0
    _
  %s7 = ssub.s32 1, %s5
  %s8 = scalar_select 0, %s7, %s5
  loop: start=0, step=1, limit=4
  $region2: #{bottleneck_forward.10} parent=0 // loop_pre_header
    _
  $region3: #{bottleneck_forward.10} parent=0 // loop_header
    %s10 = sphi 0, %s14
    %p11 = scmp.ge.s32.totalorder %s10, 4
    %s20 = sphi 0, %s22
    %s23 = sphi 0, %s20
    %s24 = sphi 0, %s23
    %s40 = sphi 0, %s24
    %s44 = sphi 0, %s44
    %s46 = sphi 0, %s44
    %s47 = sphi 0, %s46
    %s61 = sphi 0, %s47
    %s67 = sphi 0, %s69
    %s70 = sphi 0, %s67
    %s71 = sphi 0, %s70
    %s87 = sphi 0, %s71
    %s93 = sphi 0, %s95
    %s96 = sphi 0, %s93
    %s97 = sphi 0, %s96
    %s113 = sphi 0, %s97
  $region4: #{bottleneck_forward.10} parent=0 // loop_header_branch
    %13 = sbr.rel (%p11) target = $region8
  $region5: #{bottleneck_forward.10} parent=0 // loop_body
    %s15 = ssub.s32 %s10, 1
    %s16 = ssub.s32 %s10, 2
    %s17 = sadd.s32 %s10, 1
    %s18 = ssub.s32 %s10, %s17
    %p19 = scmp.eq.s32.totalorder %s18, 0
    %s21 = sadd.s32 %s20, 1
    %s22 = scalar_select %p19, %s20, %s21
    %p25 = pneg %p19
    %p26 = scmp.eq.s32.totalorder %s10, 1
    %p27 = por %p25, %p26
    %p28 = scmp.ne.s32.totalorder %s20, %s23
    %p29 = scmp.eq.s32.totalorder %s10, 0
    %p30 = por %p28, %p29
    %p31 = scmp.ne.s32.totalorder %s20, %s23
    %p32 = scmp.eq.s32.totalorder %s15, 1
    %p33 = por %p31, %p32
    %p34 = scmp.ne.s32.totalorder %s23, %s24
    %p35 = scmp.eq.s32.totalorder %s15, 0
    %p36 = por %p34, %p35
    %p37 = scmp.ne.s32.totalorder %s23, %s24
    %p38 = scmp.eq.s32.totalorder %s16, 1
    %p39 = por %p37, %p38
    %p41 = scmp.ne.s32.totalorder %s24, %s40
    %p42 = scmp.eq.s32.totalorder %s16, 0
    %p43 = por %p41, %p42
    %s45 = sadd.s32 %s44, 1
    %p48 = scmp.eq.s32.totalorder %s10, 1
    %p49 = scmp.ne.s32.totalorder %s44, %s46
    %p50 = scmp.eq.s32.totalorder %s10, 0
    %p51 = por %p49, %p50
    %p52 = scmp.ne.s32.totalorder %s44, %s46
    %p53 = scmp.eq.s32.totalorder %s15, 1
    %p54 = por %p52, %p53
    %p55 = scmp.ne.s32.totalorder %s46, %s47
    %p56 = scmp.eq.s32.totalorder %s15, 0
    %p57 = por %p55, %p56
    %p58 = scmp.ne.s32.totalorder %s46, %s47
    %p59 = scmp.eq.s32.totalorder %s16, 1
    %p60 = por %p58, %p59
    %p62 = scmp.ne.s32.totalorder %s47, %s61
    %p63 = scmp.eq.s32.totalorder %s16, 0
    %p64 = por %p62, %p63
    %s65 = ssub.s32 %s10, %s17
    %p66 = scmp.eq.s32.totalorder %s65, 0
    %s68 = sadd.s32 %s67, 1
    %s69 = scalar_select %p66, %s67, %s68
    %p72 = pneg %p66
    %p73 = scmp.eq.s32.totalorder %s10, 1
    %p74 = por %p72, %p73
    %p75 = scmp.ne.s32.totalorder %s67, %s70
    %p76 = scmp.eq.s32.totalorder %s10, 0
    %p77 = por %p75, %p76
    %p78 = scmp.ne.s32.totalorder %s67, %s70
    %p79 = scmp.eq.s32.totalorder %s15, 1
    %p80 = por %p78, %p79
    %p81 = scmp.ne.s32.totalorder %s70, %s71
    %p82 = scmp.eq.s32.totalorder %s15, 0
    %p83 = por %p81, %p82
    %p84 = scmp.ne.s32.totalorder %s70, %s71
    %p85 = scmp.eq.s32.totalorder %s16, 1
    %p86 = por %p84, %p85
    %p88 = scmp.ne.s32.totalorder %s71, %s87
    %p89 = scmp.eq.s32.totalorder %s16, 0
    %p90 = por %p88, %p89
    %s91 = ssub.s32 %s10, %s17
    %p92 = scmp.eq.s32.totalorder %s91, 0
    %s94 = sadd.s32 %s93, 1
    %s95 = scalar_select %p92, %s93, %s94
    %p98 = pneg %p92
    %p99 = scmp.eq.s32.totalorder %s10, 1
    %p100 = por %p98, %p99
    %p101 = scmp.ne.s32.totalorder %s93, %s96
    %p102 = scmp.eq.s32.totalorder %s10, 0
    %p103 = por %p101, %p102
    %p104 = scmp.ne.s32.totalorder %s93, %s96
    %p105 = scmp.eq.s32.totalorder %s15, 1
    %p106 = por %p104, %p105
    %p107 = scmp.ne.s32.totalorder %s96, %s97
    %p108 = scmp.eq.s32.totalorder %s15, 0
    %p109 = por %p107, %p108
    %p110 = scmp.ne.s32.totalorder %s96, %s97
    %p111 = scmp.eq.s32.totalorder %s16, 1
    %p112 = por %p110, %p111
    %p114 = scmp.ne.s32.totalorder %s97, %s113
    %p115 = scmp.eq.s32.totalorder %s16, 0
    %p116 = por %p114, %p115
    %p117 = scmp.le.s32.totalorder 1, %s10
    %p118 = scmp.lt.s32.totalorder %s10, 3
    %p119 = pnand %p117, %p118
    %p120 = pneg %p119
    // Predicated region
    $region9: #{bottleneck_forward.10} parent=5 // pred_check
      _
    $region10: #{bottleneck_forward.10} parent=5 // pred_check_branch
      %122 = sbr.rel (%p119) target = $region12
    $region11: #{bottleneck_forward.10} parent=5 // pred_region
      %s123 = ssub.s32 %s10, 1
      // Predicated region
      $region13: #{bottleneck_forward.10} parent=11 // pred_check
        %p124 = pneg %p57
      $region14: #{bottleneck_forward.10} parent=11 // pred_check_branch
        %126 = sbr.rel (%p124) target = $region16
      $region15: #{bottleneck_forward.10} parent=11 // pred_region
        _
      $region16: #{bottleneck_forward.10} parent=11 // pred_fallthru
        _
    $region12: #{bottleneck_forward.10} parent=5 // pred_fallthru
      _
    %p127 = scmp.lt.s32.totalorder %s10, 2
    // Predicated region
    $region17: #{bottleneck_forward.10} parent=5 // pred_check
      %p128 = pneg %p127
    $region18: #{bottleneck_forward.10} parent=5 // pred_check_branch
      %130 = sbr.rel (%p128) target = $region20
    $region19: #{bottleneck_forward.10} parent=5 // pred_region
      // Predicated region
      $region21: #{bottleneck_forward.10} parent=19 // pred_check
        %p131 = pneg %p30
      $region22: #{bottleneck_forward.10} parent=19 // pred_check_branch
        %133 = sbr.rel (%p131) target = $region24
      $region23: #{bottleneck_forward.10} parent=19 // pred_region
        %s134 = smul.u32 16, %s10
        %p135 = scmp.lt.s32.totalorder %s134, 31
        %s136 = scalar_select %p135, %s134, 31
        %s137 = smul.addr %s136, 4
        %s138 = scalar_lea.vmem %s0, %s137
        %s139 = smul.u32 16, %s10
      $region24: #{bottleneck_forward.10} parent=19 // pred_fallthru
        _
    $region20: #{bottleneck_forward.10} parent=5 // pred_fallthru
      _
    %p140 = scmp.le.s32.totalorder 1, %s10
    %p141 = scmp.lt.s32.totalorder %s10, 3
    %p142 = pnand %p140, %p141
    %p143 = pneg %p142
    // Predicated region
    $region25: #{bottleneck_forward.10} parent=5 // pred_check
      _
    $region26: #{bottleneck_forward.10} parent=5 // pred_check_branch
      %145 = sbr.rel (%p142) target = $region28
    $region27: #{bottleneck_forward.10} parent=5 // pred_region
      %s146 = ssub.s32 %s10, 1
      %s147 = smul.u32 16, %s15
      %p148 = scmp.lt.s32.totalorder %s147, 31
      %s149 = scalar_select %p148, %s147, 31
      %s150 = smul.addr %s149, 4
      %s151 = scalar_lea.vmem %s0, %s150
      %p152 = pneg %p36
      %p153 = pneg %p33
      %p154 = pneg %p57
      %p155 = pneg %p54
      %p156 = pneg %p83
      %p157 = pneg %p80
      %s158 = smul.u32 16, %s15
      %p159 = scmp.lt.s32.totalorder %s158, 31
      %s160 = scalar_select %p159, %s158, 31
      %s161 = smul.addr %s160, 4
      %s162 = scalar_lea.vmem %s2, %s161
      %p163 = pneg %p109
      %p164 = pneg %p106
      %p165 = scmp.lt.s32.totalorder %s15, 1
      %s166 = scalar_select %p165, %s15, 1
      %s167 = smul.addr %s166, 2
      %s168 = scalar_lea.vmem %s3, %s167
      %s169 = smul.u32 16, %s15
      %p170 = scmp.lt.s32.totalorder %s169, 31
      %s171 = scalar_select %p170, %s169, 31
      %s172 = smul.addr %s171, 4
      %s173 = scalar_lea.vmem %s0, %s172
      %s174 = smul.u32 16, %s15
      %s175 = smul.u32 16, %s15
      %p176 = scmp.lt.s32.totalorder %s175, 31
      %s177 = scalar_select %p176, %s175, 31
      %s178 = smul.addr %s177, 4
      %s179 = scalar_lea.vmem %s2, %s178
      %s180 = smul.u32 16, %s15
      %p181 = scmp.lt.s32.totalorder %s15, 1
      %s182 = scalar_select %p181, %s15, 1
      %s183 = smul.addr %s182, 2
      %s184 = scalar_lea.vmem %s3, %s183
      %v186 = vld [vmem:[%s173] sm:$0xf]
      %v187 = vld [vmem:[%s173 + $0x4] sm:$0xf]
      %v188 = vld [vmem:[%s173 + $0x8] sm:$0xf]
      %v189 = vld [vmem:[%s173 + $0xc] sm:$0xf]
      %v190 = vld [vmem:[%s173 + $0x10] sm:$0xf]
      %v191 = vld [vmem:[%s173 + $0x14] sm:$0xf]
      %v192 = vld [vmem:[%s173 + $0x18] sm:$0xf]
      %v193 = vld [vmem:[%s173 + $0x1c] sm:$0xf]
      %v194 = vld [vmem:[%s173 + $0x20] sm:$0xf]
      %v195 = vld [vmem:[%s173 + $0x24] sm:$0xf]
      %v196 = vld [vmem:[%s173 + $0x28] sm:$0xf]
      %v197 = vld [vmem:[%s173 + $0x2c] sm:$0xf]
      %v198 = vld [vmem:[%s173 + $0x30] sm:$0xf]
      %v199 = vld [vmem:[%s173 + $0x34] sm:$0xf]
      %v200 = vld [vmem:[%s173 + $0x38] sm:$0xf]
      %v201 = vld [vmem:[%s173 + $0x3c] sm:$0xf]
      %v202 = vld [vmem:[%s1] sm:$0x3]
      %v219 = vunpack.c.l.b16 %v186
      %v220 = vunpack.c.l.b16 %v187
      %v221 = vunpack.c.l.b16 %v188
      %v222 = vunpack.c.l.b16 %v189
      %v223 = vunpack.c.l.b16 %v190
      %v224 = vunpack.c.l.b16 %v191
      %v225 = vunpack.c.l.b16 %v192
      %v226 = vunpack.c.l.b16 %v193
      %v227 = vunpack.c.l.b16 %v194
      %v228 = vunpack.c.l.b16 %v195
      %v229 = vunpack.c.l.b16 %v196
      %v230 = vunpack.c.l.b16 %v197
      %v231 = vunpack.c.l.b16 %v198
      %v232 = vunpack.c.l.b16 %v199
      %v233 = vunpack.c.l.b16 %v200
      %v234 = vunpack.c.l.b16 %v201
      %v235 = vpack.c.b16 %v220, %v219
      %v236 = vpack.c.b16 %v222, %v221
      %v237 = vpack.c.b16 %v224, %v223
      %v238 = vpack.c.b16 %v226, %v225
      %v239 = vpack.c.b16 %v228, %v227
      %v240 = vpack.c.b16 %v230, %v229
      %v241 = vpack.c.b16 %v232, %v231
      %v242 = vpack.c.b16 %v234, %v233
      %vm243 = vcmask 31744
      %v245 = vsel %vm243, %v235, 0
      %v248 = vsel %vm243, %v236, 0
      %v251 = vsel %vm243, %v237, 0
      %v254 = vsel %vm243, %v238, 0
      %v257 = vsel %vm243, %v239, 0
      %v260 = vsel %vm243, %v240, 0
      %v263 = vsel %vm243, %v241, 0
      %v266 = vsel %vm243, %v242, 0
      %vm268 = vcmask 1041408
      %v270 = vsel %vm268, %v202, 0
      %272 = vmatprep.subr.bf16.mxu0 0
      %273 = vmatpush1.bf16.msra.mxu0 %v270
      %274 = vmatprep.subr.bf16.mxu0 0
      %275 = vmatpush1.bf16.msra.mxu0 0
      %276 = vmatprep.subr.bf16.mxu0 0
      %277 = vmatpush1.bf16.msra.mxu0 0
      %278 = vmatprep.subr.bf16.mxu0 0
      %279 = vmatpush1.bf16.msra.mxu0 0
      %280 = vmatprep.subr.bf16.mxu0 0
      %281 = vmatpush1.bf16.msra.mxu0 0
      %282 = vmatprep.subr.bf16.mxu0 0
      %283 = vmatpush1.bf16.msra.mxu0 0
      %284 = vmatprep.subr.bf16.mxu0 0
      %285 = vmatpush1.bf16.msra.mxu0 0
      %286 = vmatprep.subr.bf16.mxu0 0
      %287 = vmatpush1.bf16.msra.mxu0 0
      %288 = vmatprep.subr.bf16.mxu0 0
      %289 = vmatpush1.bf16.msra.mxu0 0
      %290 = vmatprep.subr.bf16.mxu0 0
      %291 = vmatpush1.bf16.msra.mxu0 0
      %292 = vmatprep.subr.bf16.mxu0 0
      %293 = vmatpush1.bf16.msra.mxu0 0
      %294 = vmatprep.subr.bf16.mxu0 0
      %295 = vmatpush1.bf16.msra.mxu0 0
      %296 = vmatprep.subr.bf16.mxu0 0
      %297 = vmatpush1.bf16.msra.mxu0 0
      %298 = vmatprep.subr.bf16.mxu0 0
      %299 = vmatpush1.bf16.msra.mxu0 0
      %300 = vmatprep.subr.bf16.mxu0 0
      %301 = vmatpush1.bf16.msra.mxu0 0
      %302 = vmatprep.subr.bf16.mxu0 0
      %303 = vmatpush1.bf16.msra.mxu0 0
      %304 = vmatprep.mubr.bf16.mxu0 0
      %305 = vmatmul.mubr.bf16.gmra.mrb[0].mxu0 %v245
      %v306 = vpop.f32.mrb[0].mxu0
      %v307 = vadd.f32 0.0, %v306
      %v308 = vpop.f32.mrb[0].mxu0
      %v309 = vpop.f32.mrb[0].mxu0
      %v310 = vadd.f32 0.0, %v309
      %v311 = vpop.f32.mrb[0].mxu0
      %312 = vmatprep.mubr.bf16.mxu0 0
      %313 = vmatmul.mubr.bf16.gmra.mrb[0].mxu0 %v248
      %v314 = vpop.f32.mrb[0].mxu0
      %v315 = vadd.f32 0.0, %v314
      %v316 = vpop.f32.mrb[0].mxu0
      %v317 = vpop.f32.mrb[0].mxu0
      %v318 = vadd.f32 0.0, %v317
      %v319 = vpop.f32.mrb[0].mxu0
      %320 = vmatprep.mubr.bf16.mxu0 0
      %321 = vmatmul.mubr.bf16.gmra.mrb[0].mxu0 %v251
      %v322 = vpop.f32.mrb[0].mxu0
      %v323 = vadd.f32 0.0, %v322
      %v324 = vpop.f32.mrb[0].mxu0
      %v325 = vpop.f32.mrb[0].mxu0
      %v326 = vadd.f32 0.0, %v325
      %v327 = vpop.f32.mrb[0].mxu0
      %328 = vmatprep.mubr.bf16.mxu0 0
      %329 = vmatmul.mubr.bf16.gmra.mrb[0].mxu0 %v254
      %v330 = vpop.f32.mrb[0].mxu0
      %v331 = vadd.f32 0.0, %v330
      %v332 = vpop.f32.mrb[0].mxu0
      %v333 = vpop.f32.mrb[0].mxu0
      %v334 = vadd.f32 0.0, %v333
      %v335 = vpop.f32.mrb[0].mxu0
      %336 = vmatprep.mubr.bf16.mxu0 0
      %337 = vmatmul.mubr.bf16.gmra.mrb[0].mxu0 %v257
      %v338 = vpop.f32.mrb[0].mxu0
      %v339 = vadd.f32 0.0, %v338
      %v340 = vpop.f32.mrb[0].mxu0
      %v341 = vpop.f32.mrb[0].mxu0
      %v342 = vadd.f32 0.0, %v341
      %v343 = vpop.f32.mrb[0].mxu0
      %344 = vmatprep.mubr.bf16.mxu0 0
      %345 = vmatmul.mubr.bf16.gmra.mrb[0].mxu0 %v260
      %v346 = vpop.f32.mrb[0].mxu0
      %v347 = vadd.f32 0.0, %v346
      %v348 = vpop.f32.mrb[0].mxu0
      %v349 = vpop.f32.mrb[0].mxu0
      %v350 = vadd.f32 0.0, %v349
      %v351 = vpop.f32.mrb[0].mxu0
      %352 = vmatprep.mubr.bf16.mxu0 0
      %353 = vmatmul.mubr.bf16.gmra.mrb[0].mxu0 %v263
      %v354 = vpop.f32.mrb[0].mxu0
      %v355 = vadd.f32 0.0, %v354
      %v356 = vpop.f32.mrb[0].mxu0
      %v357 = vpop.f32.mrb[0].mxu0
      %v358 = vadd.f32 0.0, %v357
      %v359 = vpop.f32.mrb[0].mxu0
      %360 = vmatprep.mubr.bf16.mxu0 0
      %361 = vmatmul.mubr.bf16.gmra.mrb[0].mxu0 %v266
      %v362 = vpop.f32.mrb[0].mxu0
      %v363 = vadd.f32 0.0, %v362
      %v364 = vpop.f32.mrb[0].mxu0
      %v365 = vpop.f32.mrb[0].mxu0
      %v366 = vadd.f32 0.0, %v365
      %v367 = vpop.f32.mrb[0].mxu0
      %368 = vdwg.mxu0
      %v369 = vpack.c.bf16 %v310, %v307
      %v370 = vpack.c.bf16 %v318, %v315
      %v371 = vpack.c.bf16 %v326, %v323
      %v372 = vpack.c.bf16 %v334, %v331
      %v373 = vpack.c.bf16 %v342, %v339
      %v374 = vpack.c.bf16 %v350, %v347
      %v375 = vpack.c.bf16 %v358, %v355
      %v376 = vpack.c.bf16 %v366, %v363
      %v385 = vunpack.c.l.b16 %v369
      %v386 = vunpack.c.h.b16 %v369
      %v387 = vunpack.c.l.b16 %v370
      %v388 = vunpack.c.h.b16 %v370
      %v389 = vunpack.c.l.b16 %v371
      %v390 = vunpack.c.h.b16 %v371
      %v391 = vunpack.c.l.b16 %v372
      %v392 = vunpack.c.h.b16 %v372
      %v393 = vunpack.c.l.b16 %v373
      %v394 = vunpack.c.h.b16 %v373
      %v395 = vunpack.c.l.b16 %v374
      %v396 = vunpack.c.h.b16 %v374
      %v397 = vunpack.c.l.b16 %v375
      %v398 = vunpack.c.h.b16 %v375
      %v399 = vunpack.c.l.b16 %v376
      %v400 = vunpack.c.h.b16 %v376
      %v401 = vpack.c.b16 %v385, %v385
      %v402 = vpack.c.b16 %v386, %v386
      %v403 = vpack.c.b16 %v387, %v387
      %v404 = vpack.c.b16 %v388, %v388
      %v405 = vpack.c.b16 %v389, %v389
      %v406 = vpack.c.b16 %v390, %v390
      %v407 = vpack.c.b16 %v391, %v391
      %v408 = vpack.c.b16 %v392, %v392
      %v409 = vpack.c.b16 %v393, %v393
      %v410 = vpack.c.b16 %v394, %v394
      %v411 = vpack.c.b16 %v395, %v395
      %v412 = vpack.c.b16 %v396, %v396
      %v413 = vpack.c.b16 %v397, %v397
      %v414 = vpack.c.b16 %v398, %v398
      %v415 = vpack.c.b16 %v399, %v399
      %v416 = vpack.c.b16 %v400, %v400
      %vm433 = vcmask 125952
      %434 = vst.msk [vmem:[%s179] sm:$0xf] %vm433, %v401
      %435 = vst.msk [vmem:[%s179 + $0x4] sm:$0xf] %vm433, %v402
      %436 = vst.msk [vmem:[%s179 + $0x8] sm:$0xf] %vm433, %v403
      %437 = vst.msk [vmem:[%s179 + $0xc] sm:$0xf] %vm433, %v404
      %438 = vst.msk [vmem:[%s179 + $0x10] sm:$0xf] %vm433, %v405
      %439 = vst.msk [vmem:[%s179 + $0x14] sm:$0xf] %vm433, %v406
      %440 = vst.msk [vmem:[%s179 + $0x18] sm:$0xf] %vm433, %v407
      %441 = vst.msk [vmem:[%s179 + $0x1c] sm:$0xf] %vm433, %v408
      %442 = vst.msk [vmem:[%s179 + $0x20] sm:$0xf] %vm433, %v409
      %443 = vst.msk [vmem:[%s179 + $0x24] sm:$0xf] %vm433, %v410
      %444 = vst.msk [vmem:[%s179 + $0x28] sm:$0xf] %vm433, %v411
      %445 = vst.msk [vmem:[%s179 + $0x2c] sm:$0xf] %vm433, %v412
      %446 = vst.msk [vmem:[%s179 + $0x30] sm:$0xf] %vm433, %v413
      %447 = vst.msk [vmem:[%s179 + $0x34] sm:$0xf] %vm433, %v414
      %448 = vst.msk [vmem:[%s179 + $0x38] sm:$0xf] %vm433, %v415
      %449 = vst.msk [vmem:[%s179 + $0x3c] sm:$0xf] %vm433, %v416
      %vm450 = vcmask 130048
      %v451 = vsel %vm450, %v307, 0.0
      %v452 = vsel %vm450, %v310, 0.0
      %v453 = vadd.f32 %v451, %v452
      %v454 = vsel %vm450, %v315, 0.0
      %v455 = vadd.f32 %v453, %v454
      %v456 = vsel %vm450, %v318, 0.0
      %v457 = vadd.f32 %v455, %v456
      %v458 = vsel %vm450, %v323, 0.0
      %v459 = vadd.f32 %v457, %v458
      %v460 = vsel %vm450, %v326, 0.0
      %v461 = vadd.f32 %v459, %v460
      %v462 = vsel %vm450, %v331, 0.0
      %v463 = vadd.f32 %v461, %v462
      %v464 = vsel %vm450, %v334, 0.0
      %v465 = vadd.f32 %v463, %v464
      %v466 = vsel %vm450, %v339, 0.0
      %v467 = vadd.f32 %v465, %v466
      %v468 = vsel %vm450, %v342, 0.0
      %v469 = vadd.f32 %v467, %v468
      %v470 = vsel %vm450, %v347, 0.0
      %v471 = vadd.f32 %v469, %v470
      %v472 = vsel %vm450, %v350, 0.0
      %v473 = vadd.f32 %v471, %v472
      %v474 = vsel %vm450, %v355, 0.0
      %v475 = vadd.f32 %v473, %v474
      %v476 = vsel %vm450, %v358, 0.0
      %v477 = vadd.f32 %v475, %v476
      %v478 = vsel %vm450, %v363, 0.0
      %v479 = vadd.f32 %v477, %v478
      %v480 = vsel %vm450, %v366, 0.0
      %v481 = vadd.f32 %v479, %v480
      %v482 = vrot.slane %v481, 4
      %v483 = vadd.f32 %v481, %v482
      %v484 = vrot.slane %v483, 2
      %v485 = vadd.f32 %v483, %v484
      %v486 = vrot.slane %v485, 1
      %v487 = vadd.f32 %v485, %v486
      %vm488 = vcmask 122880
      %489 = vst.msk [vmem:[%s184] sm:$0x1] %vm488, %v487
      %v490 = vmul.f32 %v307, %v307
      %v491 = vmul.f32 %v310, %v310
      %v492 = vmul.f32 %v315, %v315
      %v493 = vmul.f32 %v318, %v318
      %v494 = vmul.f32 %v323, %v323
      %v495 = vmul.f32 %v326, %v326
      %v496 = vmul.f32 %v331, %v331
      %v497 = vmul.f32 %v334, %v334
      %v498 = vmul.f32 %v339, %v339
      %v499 = vmul.f32 %v342, %v342
      %v500 = vmul.f32 %v347, %v347
      %v501 = vmul.f32 %v350, %v350
      %v502 = vmul.f32 %v355, %v355
      %v503 = vmul.f32 %v358, %v358
      %v504 = vmul.f32 %v363, %v363
      %v505 = vmul.f32 %v366, %v366
      %v506 = vsel %vm450, %v490, 0.0
      %v507 = vsel %vm450, %v491, 0.0
      %v508 = vadd.f32 %v506, %v507
      %v509 = vsel %vm450, %v492, 0.0
      %v510 = vadd.f32 %v508, %v509
      %v511 = vsel %vm450, %v493, 0.0
      %v512 = vadd.f32 %v510, %v511
      %v513 = vsel %vm450, %v494, 0.0
      %v514 = vadd.f32 %v512, %v513
      %v515 = vsel %vm450, %v495, 0.0
      %v516 = vadd.f32 %v514, %v515
      %v517 = vsel %vm450, %v496, 0.0
      %v518 = vadd.f32 %v516, %v517
      %v519 = vsel %vm450, %v497, 0.0
      %v520 = vadd.f32 %v518, %v519
      %v521 = vsel %vm450, %v498, 0.0
      %v522 = vadd.f32 %v520, %v521
      %v523 = vsel %vm450, %v499, 0.0
      %v524 = vadd.f32 %v522, %v523
      %v525 = vsel %vm450, %v500, 0.0
      %v526 = vadd.f32 %v524, %v525
      %v527 = vsel %vm450, %v501, 0.0
      %v528 = vadd.f32 %v526, %v527
      %v529 = vsel %vm450, %v502, 0.0
      %v530 = vadd.f32 %v528, %v529
      %v531 = vsel %vm450, %v503, 0.0
      %v532 = vadd.f32 %v530, %v531
      %v533 = vsel %vm450, %v504, 0.0
      %v534 = vadd.f32 %v532, %v533
      %v535 = vsel %vm450, %v505, 0.0
      %v536 = vadd.f32 %v534, %v535
      %v537 = vrot.slane %v536, 4
      %v538 = vadd.f32 %v536, %v537
      %v539 = vrot.slane %v538, 2
      %v540 = vadd.f32 %v538, %v539
      %v541 = vrot.slane %v540, 1
      %v542 = vadd.f32 %v540, %v541
      %543 = vst.msk [vmem:[%s184 + $0x1] sm:$0x1] %vm488, %v542
      %s544 = smul.u32 16, %s15
      %p545 = scmp.lt.s32.totalorder %s544, 31
      %s546 = scalar_select %p545, %s544, 31
      %s547 = smul.addr %s546, 4
      %s548 = scalar_lea.vmem %s2, %s547
      %p549 = scmp.lt.s32.totalorder %s15, 1
      %s550 = scalar_select %p549, %s15, 1
      %s551 = smul.addr %s550, 2
      %s552 = scalar_lea.vmem %s3, %s551
      // Predicated region
      $region29: #{bottleneck_forward.10} parent=27 // pred_check
        %p553 = pneg %p80
      $region30: #{bottleneck_forward.10} parent=27 // pred_check_branch
        %555 = sbr.rel (%p553) target = $region32
      $region31: #{bottleneck_forward.10} parent=27 // pred_region
        %s556 = smul.u32 16, %s15
      $region32: #{bottleneck_forward.10} parent=27 // pred_fallthru
        _
      // Predicated region
      $region33: #{bottleneck_forward.10} parent=27 // pred_check
        %p557 = pneg %p106
      $region34: #{bottleneck_forward.10} parent=27 // pred_check_branch
        %559 = sbr.rel (%p557) target = $region36
      $region35: #{bottleneck_forward.10} parent=27 // pred_region
        _
      $region36: #{bottleneck_forward.10} parent=27 // pred_fallthru
        _
    $region28: #{bottleneck_forward.10} parent=5 // pred_fallthru
      _
    %p560 = scmp.le.s32.totalorder 2, %s10
    // Predicated region
    $region37: #{bottleneck_forward.10} parent=5 // pred_check
      %p561 = pneg %p560
    $region38: #{bottleneck_forward.10} parent=5 // pred_check_branch
      %563 = sbr.rel (%p561) target = $region40
    $region39: #{bottleneck_forward.10} parent=5 // pred_region
      %s564 = ssub.s32 %s10, 2
      // Predicated region
      $region41: #{bottleneck_forward.10} parent=39 // pred_check
        %p565 = pneg %p86
      $region42: #{bottleneck_forward.10} parent=39 // pred_check_branch
        %567 = sbr.rel (%p565) target = $region44
      $region43: #{bottleneck_forward.10} parent=39 // pred_region
        %s568 = smul.u32 16, %s16
        %p569 = scmp.lt.s32.totalorder %s568, 31
        %s570 = scalar_select %p569, %s568, 31
        %s571 = smul.addr %s570, 4
        %s572 = scalar_lea.vmem %s2, %s571
      $region44: #{bottleneck_forward.10} parent=39 // pred_fallthru
        _
      // Predicated region
      $region45: #{bottleneck_forward.10} parent=39 // pred_check
        %p573 = pneg %p112
      $region46: #{bottleneck_forward.10} parent=39 // pred_check_branch
        %575 = sbr.rel (%p573) target = $region48
      $region47: #{bottleneck_forward.10} parent=39 // pred_region
        %p576 = scmp.lt.s32.totalorder %s16, 1
        %s577 = scalar_select %p576, %s16, 1
        %s578 = smul.addr %s577, 2
        %s579 = scalar_lea.vmem %s3, %s578
      $region48: #{bottleneck_forward.10} parent=39 // pred_fallthru
        _
    $region40: #{bottleneck_forward.10} parent=5 // pred_fallthru
      _
  $region6: #{bottleneck_forward.10} parent=0 // loop_footer
    %s14 = sadd.s32 1, %s10
  $region7: #{bottleneck_forward.10} parent=0 // loop_footer_branch
    %9 = sbr.rel target = $region3
  $region8: #{bottleneck_forward.10} parent=0 // loop_exit
    _

// kernel: bottleneck_forward.8
$region0: #{bottleneck_forward.8}
  #allocation0 [shape = 'u32[]', space=smem, size = 0x4, offset = 0x4, fixed_abs, tag = 'smem constant byte address 0x4 - core index']
  #allocation1 [shape = 'u32[144,128]{1,0:T(1,128)}', space=vmem, size = 0x12000, scoped, tag = 'internal scratch']
  #allocation2 [shape = 'bf16[10,10,4]{2,1,0:T(8,128)(2,1)}', space=vmem, size = 0xa000, scoped, tag = 'scratch operand']
  #allocation3 [shape = 'bf16[64,36]{1,0:T(16,128)(2,1)}', space=vmem, size = 0x4000, scoped, tag = 'scratch operand']
  %s0 = inlined_call_operand.vmem [shape: bf16[4,8,8,4], index: 0, kind: input, shape index: {}]
  %s1 = inlined_call_operand.vmem [shape: bf16[36,4], index: 1, kind: input, shape index: {}]
  %s2 = inlined_call_operand.vmem [shape: bf16[4,8,8,4], index: 2, kind: output, shape index: {0}]
  %s3 = inlined_call_operand.vmem [shape: f32[4,2,4], index: 3, kind: output, shape index: {1}]
  %4 = xla_tuple %s2, %s3
  %s5 = sld [smem:[#allocation0]]
  $region49: #{bottleneck_forward.8} parent=0
    _
  %s7 = ssub.s32 1, %s5
  %s8 = scalar_select 0, %s7, %s5
  loop: start=0, step=1, limit=6
  $region2: #{bottleneck_forward.8} parent=0 // loop_pre_header
    _
  $region3: #{bottleneck_forward.8} parent=0 // loop_header
    %s10 = sphi 0, %s14
    %p11 = scmp.ge.s32.totalorder %s10, 6
    %s20 = sphi 0, %s22
    %s23 = sphi 0, %s20
    %s24 = sphi 0, %s23
    %s40 = sphi 0, %s24
    %s44 = sphi 0, %s44
    %s46 = sphi 0, %s44
    %s47 = sphi 0, %s46
    %s61 = sphi 0, %s47
    %s67 = sphi 0, %s69
    %s70 = sphi 0, %s67
    %s71 = sphi 0, %s70
    %s87 = sphi 0, %s71
    %s93 = sphi 0, %s95
    %s96 = sphi 0, %s93
    %s97 = sphi 0, %s96
    %s113 = sphi 0, %s97
  $region4: #{bottleneck_forward.8} parent=0 // loop_header_branch
    %13 = sbr.rel (%p11) target = $region8
  $region5: #{bottleneck_forward.8} parent=0 // loop_body
    %s15 = ssub.s32 %s10, 1
    %s16 = ssub.s32 %s10, 2
    %s17 = sadd.s32 %s10, 1
    %s18 = ssub.s32 %s10, %s17
    %p19 = scmp.eq.s32.totalorder %s18, 0
    %s21 = sadd.s32 %s20, 1
    %s22 = scalar_select %p19, %s20, %s21
    %p25 = pneg %p19
    %p26 = scmp.eq.s32.totalorder %s10, 3
    %p27 = por %p25, %p26
    %p28 = scmp.ne.s32.totalorder %s20, %s23
    %p29 = scmp.eq.s32.totalorder %s10, 0
    %p30 = por %p28, %p29
    %p31 = scmp.ne.s32.totalorder %s20, %s23
    %p32 = scmp.eq.s32.totalorder %s15, 3
    %p33 = por %p31, %p32
    %p34 = scmp.ne.s32.totalorder %s23, %s24
    %p35 = scmp.eq.s32.totalorder %s15, 0
    %p36 = por %p34, %p35
    %p37 = scmp.ne.s32.totalorder %s23, %s24
    %p38 = scmp.eq.s32.totalorder %s16, 3
    %p39 = por %p37, %p38
    %p41 = scmp.ne.s32.totalorder %s24, %s40
    %p42 = scmp.eq.s32.totalorder %s16, 0
    %p43 = por %p41, %p42
    %s45 = sadd.s32 %s44, 1
    %p48 = scmp.eq.s32.totalorder %s10, 3
    %p49 = scmp.ne.s32.totalorder %s44, %s46
    %p50 = scmp.eq.s32.totalorder %s10, 0
    %p51 = por %p49, %p50
    %p52 = scmp.ne.s32.totalorder %s44, %s46
    %p53 = scmp.eq.s32.totalorder %s15, 3
    %p54 = por %p52, %p53
    %p55 = scmp.ne.s32.totalorder %s46, %s47
    %p56 = scmp.eq.s32.totalorder %s15, 0
    %p57 = por %p55, %p56
    %p58 = scmp.ne.s32.totalorder %s46, %s47
    %p59 = scmp.eq.s32.totalorder %s16, 3
    %p60 = por %p58, %p59
    %p62 = scmp.ne.s32.totalorder %s47, %s61
    %p63 = scmp.eq.s32.totalorder %s16, 0
    %p64 = por %p62, %p63
    %s65 = ssub.s32 %s10, %s17
    %p66 = scmp.eq.s32.totalorder %s65, 0
    %s68 = sadd.s32 %s67, 1
    %s69 = scalar_select %p66, %s67, %s68
    %p72 = pneg %p66
    %p73 = scmp.eq.s32.totalorder %s10, 3
    %p74 = por %p72, %p73
    %p75 = scmp.ne.s32.totalorder %s67, %s70
    %p76 = scmp.eq.s32.totalorder %s10, 0
    %p77 = por %p75, %p76
    %p78 = scmp.ne.s32.totalorder %s67, %s70
    %p79 = scmp.eq.s32.totalorder %s15, 3
    %p80 = por %p78, %p79
    %p81 = scmp.ne.s32.totalorder %s70, %s71
    %p82 = scmp.eq.s32.totalorder %s15, 0
    %p83 = por %p81, %p82
    %p84 = scmp.ne.s32.totalorder %s70, %s71
    %p85 = scmp.eq.s32.totalorder %s16, 3
    %p86 = por %p84, %p85
    %p88 = scmp.ne.s32.totalorder %s71, %s87
    %p89 = scmp.eq.s32.totalorder %s16, 0
    %p90 = por %p88, %p89
    %s91 = ssub.s32 %s10, %s17
    %p92 = scmp.eq.s32.totalorder %s91, 0
    %s94 = sadd.s32 %s93, 1
    %s95 = scalar_select %p92, %s93, %s94
    %p98 = pneg %p92
    %p99 = scmp.eq.s32.totalorder %s10, 3
    %p100 = por %p98, %p99
    %p101 = scmp.ne.s32.totalorder %s93, %s96
    %p102 = scmp.eq.s32.totalorder %s10, 0
    %p103 = por %p101, %p102
    %p104 = scmp.ne.s32.totalorder %s93, %s96
    %p105 = scmp.eq.s32.totalorder %s15, 3
    %p106 = por %p104, %p105
    %p107 = scmp.ne.s32.totalorder %s96, %s97
    %p108 = scmp.eq.s32.totalorder %s15, 0
    %p109 = por %p107, %p108
    %p110 = scmp.ne.s32.totalorder %s96, %s97
    %p111 = scmp.eq.s32.totalorder %s16, 3
    %p112 = por %p110, %p111
    %p114 = scmp.ne.s32.totalorder %s97, %s113
    %p115 = scmp.eq.s32.totalorder %s16, 0
    %p116 = por %p114, %p115
    %p117 = scmp.le.s32.totalorder 1, %s10
    %p118 = scmp.lt.s32.totalorder %s10, 5
    %p119 = pnand %p117, %p118
    %p120 = pneg %p119
    // Predicated region
    $region9: #{bottleneck_forward.8} parent=5 // pred_check
      _
    $region10: #{bottleneck_forward.8} parent=5 // pred_check_branch
      %122 = sbr.rel (%p119) target = $region12
    $region11: #{bottleneck_forward.8} parent=5 // pred_region
      %s123 = ssub.s32 %s10, 1
      // Predicated region
      $region13: #{bottleneck_forward.8} parent=11 // pred_check
        %p124 = pneg %p57
      $region14: #{bottleneck_forward.8} parent=11 // pred_check_branch
        %126 = sbr.rel (%p124) target = $region16
      $region15: #{bottleneck_forward.8} parent=11 // pred_region
        _
      $region16: #{bottleneck_forward.8} parent=11 // pred_fallthru
        _
    $region12: #{bottleneck_forward.8} parent=5 // pred_fallthru
      _
    %p127 = scmp.lt.s32.totalorder %s10, 4
    // Predicated region
    $region17: #{bottleneck_forward.8} parent=5 // pred_check
      %p128 = pneg %p127
    $region18: #{bottleneck_forward.8} parent=5 // pred_check_branch
      %130 = sbr.rel (%p128) target = $region20
    $region19: #{bottleneck_forward.8} parent=5 // pred_region
      // Predicated region
      $region21: #{bottleneck_forward.8} parent=19 // pred_check
        %p131 = pneg %p30
      $region22: #{bottleneck_forward.8} parent=19 // pred_check_branch
        %133 = sbr.rel (%p131) target = $region24
      $region23: #{bottleneck_forward.8} parent=19 // pred_region
        %p134 = scmp.lt.s32.totalorder %s10, 3
        %s135 = scalar_select %p134, %s10, 3
        %s136 = smul.addr %s135, 8
        %s137 = smul.addr %s136, 4
        %s138 = scalar_lea.vmem %s0, %s137
      $region24: #{bottleneck_forward.8} parent=19 // pred_fallthru
        _
    $region20: #{bottleneck_forward.8} parent=5 // pred_fallthru
      _
    %p139 = scmp.le.s32.totalorder 1, %s10
    %p140 = scmp.lt.s32.totalorder %s10, 5
    %p141 = pnand %p139, %p140
    %p142 = pneg %p141
    // Predicated region
    $region25: #{bottleneck_forward.8} parent=5 // pred_check
      _
    $region26: #{bottleneck_forward.8} parent=5 // pred_check_branch
      %144 = sbr.rel (%p141) target = $region28
    $region27: #{bottleneck_forward.8} parent=5 // pred_region
      %s145 = ssub.s32 %s10, 1
      %p146 = scmp.lt.s32.totalorder %s15, 3
      %s147 = scalar_select %p146, %s15, 3
      %s148 = smul.addr %s147, 8
      %s149 = smul.addr %s148, 4
      %s150 = scalar_lea.vmem %s0, %s149
      %p151 = pneg %p36
      %p152 = pneg %p33
      %p153 = pneg %p57
      %p154 = pneg %p54
      %p155 = pneg %p83
      %p156 = pneg %p80
      %p157 = scmp.lt.s32.totalorder %s15, 3
      %s158 = scalar_select %p157, %s15, 3
      %s159 = smul.addr %s158, 8
      %s160 = smul.addr %s159, 4
      %s161 = scalar_lea.vmem %s2, %s160
      %p162 = pneg %p109
      %p163 = pneg %p106
      %p164 = scmp.lt.s32.totalorder %s15, 3
      %s165 = scalar_select %p164, %s15, 3
      %s166 = smul.addr %s165, 2
      %s167 = scalar_lea.vmem %s3, %s166
      %p168 = scmp.lt.s32.totalorder %s15, 3
      %s169 = scalar_select %p168, %s15, 3
      %s170 = smul.addr %s169, 8
      %s171 = smul.addr %s170, 4
      %s172 = scalar_lea.vmem %s0, %s171
      %p173 = scmp.lt.s32.totalorder %s15, 3
      %s174 = scalar_select %p173, %s15, 3
      %s175 = smul.addr %s174, 8
      %s176 = smul.addr %s175, 4
      %s177 = scalar_lea.vmem %s2, %s176
      %p178 = scmp.lt.s32.totalorder %s15, 3
      %s179 = scalar_select %p178, %s15, 3
      %s180 = smul.addr %s179, 2
      %s181 = scalar_lea.vmem %s3, %s180
      %vm183 = vcmask 27648
      %184 = vst.msk [vmem:[#allocation2] sm:$0xf] %vm183, 0
      %vm185 = vcmask 24576
      %186 = vst.msk [vmem:[#allocation2 + $0x4] sm:$0x1] %vm185, 0
      %187 = vst.msk [vmem:[#allocation2 + $0x8] sm:$0xf] %vm183, 0
      %188 = vst.msk [vmem:[#allocation2 + $0xc] sm:$0x1] %vm185, 0
      %189 = vst.msk [vmem:[#allocation2 + $0x10] sm:$0xf] %vm183, 0
      %190 = vst.msk [vmem:[#allocation2 + $0x14] sm:$0x1] %vm185, 0
      %191 = vst.msk [vmem:[#allocation2 + $0x18] sm:$0xf] %vm183, 0
      %192 = vst.msk [vmem:[#allocation2 + $0x1c] sm:$0x1] %vm185, 0
      %193 = vst.msk [vmem:[#allocation2 + $0x20] sm:$0xf] %vm183, 0
      %194 = vst.msk [vmem:[#allocation2 + $0x24] sm:$0x1] %vm185, 0
      %195 = vst.msk [vmem:[#allocation2 + $0x28] sm:$0xf] %vm183, 0
      %196 = vst.msk [vmem:[#allocation2 + $0x2c] sm:$0x1] %vm185, 0
      %197 = vst.msk [vmem:[#allocation2 + $0x30] sm:$0xf] %vm183, 0
      %198 = vst.msk [vmem:[#allocation2 + $0x34] sm:$0x1] %vm185, 0
      %199 = vst.msk [vmem:[#allocation2 + $0x38] sm:$0xf] %vm183, 0
      %200 = vst.msk [vmem:[#allocation2 + $0x3c] sm:$0x1] %vm185, 0
      %201 = vst.msk [vmem:[#allocation2 + $0x40] sm:$0xf] %vm183, 0
      %202 = vst.msk [vmem:[#allocation2 + $0x44] sm:$0x1] %vm185, 0
      %203 = vst.msk [vmem:[#allocation2 + $0x48] sm:$0xf] %vm183, 0
      %204 = vst.msk [vmem:[#allocation2 + $0x4c] sm:$0x1] %vm185, 0
      %v205 = vld [vmem:[%s172] sm:$0xf]
      %v206 = vld [vmem:[%s172 + $0x4] sm:$0xf]
      %v207 = vld [vmem:[%s172 + $0x8] sm:$0xf]
      %v208 = vld [vmem:[%s172 + $0xc] sm:$0xf]
      %v209 = vld [vmem:[%s172 + $0x10] sm:$0xf]
      %v210 = vld [vmem:[%s172 + $0x14] sm:$0xf]
      %v211 = vld [vmem:[%s172 + $0x18] sm:$0xf]
      %v212 = vld [vmem:[%s172 + $0x1c] sm:$0xf]
      %v214 = vshrl.u32 %v205, 16
      %v216 = vrot.slane %v214, 7
      %v217 = vshll.u32 %v205, 16
      %v219 = vor.u32 %v216, %v217
      %v220 = vrot.slane %v216, 4
      %v222 = vshrl.u32 %v206, 16
      %v224 = vrot.slane %v222, 7
      %v225 = vshll.u32 %v206, 16
      %v227 = vor.u32 %v224, %v225
      %v228 = vrot.slane %v224, 4
      %v230 = vshrl.u32 %v207, 16
      %v232 = vrot.slane %v230, 7
      %v233 = vshll.u32 %v207, 16
      %v235 = vor.u32 %v232, %v233
      %v236 = vrot.slane %v232, 4
      %v238 = vshrl.u32 %v208, 16
      %v240 = vrot.slane %v238, 7
      %v241 = vshll.u32 %v208, 16
      %v243 = vor.u32 %v240, %v241
      %v244 = vrot.slane %v240, 4
      %v246 = vshrl.u32 %v209, 16
      %v248 = vrot.slane %v246, 7
      %v249 = vshll.u32 %v209, 16
      %v251 = vor.u32 %v248, %v249
      %v252 = vrot.slane %v248, 4
      %v254 = vshrl.u32 %v210, 16
      %v256 = vrot.slane %v254, 7
      %v257 = vshll.u32 %v210, 16
      %v259 = vor.u32 %v256, %v257
      %v260 = vrot.slane %v256, 4
      %v262 = vshrl.u32 %v211, 16
      %v264 = vrot.slane %v262, 7
      %v265 = vshll.u32 %v211, 16
      %v267 = vor.u32 %v264, %v265
      %v268 = vrot.slane %v264, 4
      %v270 = vshrl.u32 %v212, 16
      %v272 = vrot.slane %v270, 7
      %v273 = vshll.u32 %v212, 16
      %v275 = vor.u32 %v272, %v273
      %v276 = vrot.slane %v272, 4
      %s293 = scalar_lea.vmem [#allocation2], 8
      %vm294 = vcmask 27648
      %vm295 = vsmask.f32 7938
      %vm296 = vmand %vm294, %vm295
      %v297 = vld [vmem:[%s293] sm:$0xf]
      %v298 = vsel %vm296, %v219, %v297
      %299 = vst [vmem:[%s293] sm:$0xf] %v298
      %vm300 = vcmask 24576
      %vm301 = vsmask.f32 256
      %vm302 = vmand %vm300, %vm301
      %v303 = vld [vmem:[%s293 + $0x4] sm:$0x1]
      %v304 = vsel %vm302, %v220, %v303
      %305 = vst [vmem:[%s293 + $0x4] sm:$0x1] %v304
      %v306 = vld [vmem:[%s293 + $0x8] sm:$0xf]
      %v307 = vsel %vm296, %v227, %v306
      %308 = vst [vmem:[%s293 + $0x8] sm:$0xf] %v307
      %v309 = vld [vmem:[%s293 + $0xc] sm:$0x1]
      %v310 = vsel %vm302, %v228, %v309
      %311 = vst [vmem:[%s293 + $0xc] sm:$0x1] %v310
      %v312 = vld [vmem:[%s293 + $0x10] sm:$0xf]
      %v313 = vsel %vm296, %v235, %v312
      %314 = vst [vmem:[%s293 + $0x10] sm:$0xf] %v313
      %v315 = vld [vmem:[%s293 + $0x14] sm:$0x1]
      %v316 = vsel %vm302, %v236, %v315
      %317 = vst [vmem:[%s293 + $0x14] sm:$0x1] %v316
      %v318 = vld [vmem:[%s293 + $0x18] sm:$0xf]
      %v319 = vsel %vm296, %v243, %v318
      %320 = vst [vmem:[%s293 + $0x18] sm:$0xf] %v319
      %v321 = vld [vmem:[%s293 + $0x1c] sm:$0x1]
      %v322 = vsel %vm302, %v244, %v321
      %323 = vst [vmem:[%s293 + $0x1c] sm:$0x1] %v322
      %v324 = vld [vmem:[%s293 + $0x20] sm:$0xf]
      %v325 = vsel %vm296, %v251, %v324
      %326 = vst [vmem:[%s293 + $0x20] sm:$0xf] %v325
      %v327 = vld [vmem:[%s293 + $0x24] sm:$0x1]
      %v328 = vsel %vm302, %v252, %v327
      %329 = vst [vmem:[%s293 + $0x24] sm:$0x1] %v328
      %v330 = vld [vmem:[%s293 + $0x28] sm:$0xf]
      %v331 = vsel %vm296, %v259, %v330
      %332 = vst [vmem:[%s293 + $0x28] sm:$0xf] %v331
      %v333 = vld [vmem:[%s293 + $0x2c] sm:$0x1]
      %v334 = vsel %vm302, %v260, %v333
      %335 = vst [vmem:[%s293 + $0x2c] sm:$0x1] %v334
      %v336 = vld [vmem:[%s293 + $0x30] sm:$0xf]
      %v337 = vsel %vm296, %v267, %v336
      %338 = vst [vmem:[%s293 + $0x30] sm:$0xf] %v337
      %v339 = vld [vmem:[%s293 + $0x34] sm:$0x1]
      %v340 = vsel %vm302, %v268, %v339
      %341 = vst [vmem:[%s293 + $0x34] sm:$0x1] %v340
      %v342 = vld [vmem:[%s293 + $0x38] sm:$0xf]
      %v343 = vsel %vm296, %v275, %v342
      %344 = vst [vmem:[%s293 + $0x38] sm:$0xf] %v343
      %v345 = vld [vmem:[%s293 + $0x3c] sm:$0x1]
      %v346 = vsel %vm302, %v276, %v345
      %347 = vst [vmem:[%s293 + $0x3c] sm:$0x1] %v346
      %v348 = vld [vmem:[#allocation2] sm:$0xf]
      %v349 = vld [vmem:[#allocation2 + $0x8] sm:$0xf]
      %v350 = vld [vmem:[#allocation2 + $0x10] sm:$0xf]
      %v351 = vld [vmem:[#allocation2 + $0x18] sm:$0xf]
      %v352 = vld [vmem:[#allocation2 + $0x20] sm:$0xf]
      %v353 = vld [vmem:[#allocation2 + $0x28] sm:$0xf]
      %v354 = vld [vmem:[#allocation2 + $0x30] sm:$0xf]
      %v355 = vld [vmem:[#allocation2 + $0x38] sm:$0xf]
      %v364 = vunpack.c.l.b16 %v348
      %v365 = vunpack.c.l.b16 %v349
      %v366 = vunpack.c.l.b16 %v350
      %v367 = vunpack.c.l.b16 %v351
      %v368 = vunpack.c.l.b16 %v352
      %v369 = vunpack.c.l.b16 %v353
      %v370 = vunpack.c.l.b16 %v354
      %v371 = vunpack.c.l.b16 %v355
      %v372 = vpack.c.b16 %v365, %v364
      %v373 = vpack.c.b16 %v367, %v366
      %v374 = vpack.c.b16 %v369, %v368
      %v375 = vpack.c.b16 %v371, %v370
      %vm380 = vcmask 31744
      %381 = vst.msk [vmem:[#allocation3] sm:$0xff] %vm380, %v372
      %382 = vst.msk [vmem:[#allocation3 + $0x8] sm:$0xff] %vm380, %v373
      %383 = vst.msk [vmem:[#allocation3 + $0x10] sm:$0xff] %vm380, %v374
      %384 = vst.msk [vmem:[#allocation3 + $0x18] sm:$0xff] %vm380, %v375
      %v385 = vld [vmem:[#allocation2] sm:$0xf]
      %v386 = vld [vmem:[#allocation2 + $0x4] sm:$0x1]
      %v387 = vld [vmem:[#allocation2 + $0x8] sm:$0xf]
      %v388 = vld [vmem:[#allocation2 + $0xc] sm:$0x1]
      %v389 = vld [vmem:[#allocation2 + $0x10] sm:$0xf]
      %v390 = vld [vmem:[#allocation2 + $0x14] sm:$0x1]
      %v391 = vld [vmem:[#allocation2 + $0x18] sm:$0xf]
      %v392 = vld [vmem:[#allocation2 + $0x1c] sm:$0x1]
      %v393 = vld [vmem:[#allocation2 + $0x20] sm:$0xf]
      %v394 = vld [vmem:[#allocation2 + $0x24] sm:$0x1]
      %v395 = vld [vmem:[#allocation2 + $0x28] sm:$0xf]
      %v396 = vld [vmem:[#allocation2 + $0x2c] sm:$0x1]
      %v397 = vld [vmem:[#allocation2 + $0x30] sm:$0xf]
      %v398 = vld [vmem:[#allocation2 + $0x34] sm:$0x1]
      %v399 = vld [vmem:[#allocation2 + $0x38] sm:$0xf]
      %v400 = vld [vmem:[#allocation2 + $0x3c] sm:$0x1]
      %vm401 = vsmask.f32 3328
      %vm402 = vsmask.f32 7440
      %vm403 = vmor %vm401, %vm402
      %v405 = vshrl.u32 %v385, 16
      %v407 = vrot.slane %v405, 4
      %v408 = vshll.u32 %v385, 16
      %v410 = vrot.slane %v408, 5
      %v411 = vor.u32 %v407, %v410
      %v412 = vrot.slane %v411, 4
      %v414 = vshll.u32 %v386, 16
      %v416 = vrot.slane %v414, 5
      %v417 = vsel %vm403, %v412, %v416
      %v419 = vshrl.u32 %v387, 16
      %v421 = vrot.slane %v419, 4
      %v422 = vshll.u32 %v387, 16
      %v424 = vrot.slane %v422, 5
      %v425 = vor.u32 %v421, %v424
      %v426 = vrot.slane %v425, 4
      %v428 = vshll.u32 %v388, 16
      %v430 = vrot.slane %v428, 5
      %v431 = vsel %vm403, %v426, %v430
      %v433 = vshrl.u32 %v389, 16
      %v435 = vrot.slane %v433, 4
      %v436 = vshll.u32 %v389, 16
      %v438 = vrot.slane %v436, 5
      %v439 = vor.u32 %v435, %v438
      %v440 = vrot.slane %v439, 4
      %v442 = vshll.u32 %v390, 16
      %v444 = vrot.slane %v442, 5
      %v445 = vsel %vm403, %v440, %v444
      %v447 = vshrl.u32 %v391, 16
      %v449 = vrot.slane %v447, 4
      %v450 = vshll.u32 %v391, 16
      %v452 = vrot.slane %v450, 5
      %v453 = vor.u32 %v449, %v452
      %v454 = vrot.slane %v453, 4
      %v456 = vshll.u32 %v392, 16
      %v458 = vrot.slane %v456, 5
      %v459 = vsel %vm403, %v454, %v458
      %v461 = vshrl.u32 %v393, 16
      %v463 = vrot.slane %v461, 4
      %v464 = vshll.u32 %v393, 16
      %v466 = vrot.slane %v464, 5
      %v467 = vor.u32 %v463, %v466
      %v468 = vrot.slane %v467, 4
      %v470 = vshll.u32 %v394, 16
      %v472 = vrot.slane %v470, 5
      %v473 = vsel %vm403, %v468, %v472
      %v475 = vshrl.u32 %v395, 16
      %v477 = vrot.slane %v475, 4
      %v478 = vshll.u32 %v395, 16
      %v480 = vrot.slane %v478, 5
      %v481 = vor.u32 %v477, %v480
      %v482 = vrot.slane %v481, 4
      %v484 = vshll.u32 %v396, 16
      %v486 = vrot.slane %v484, 5
      %v487 = vsel %vm403, %v482, %v486
      %v489 = vshrl.u32 %v397, 16
      %v491 = vrot.slane %v489, 4
      %v492 = vshll.u32 %v397, 16
      %v494 = vrot.slane %v492, 5
      %v495 = vor.u32 %v491, %v494
      %v496 = vrot.slane %v495, 4
      %v498 = vshll.u32 %v398, 16
      %v500 = vrot.slane %v498, 5
      %v501 = vsel %vm403, %v496, %v500
      %v503 = vshrl.u32 %v399, 16
      %v505 = vrot.slane %v503, 4
      %v506 = vshll.u32 %v399, 16
      %v508 = vrot.slane %v506, 5
      %v509 = vor.u32 %v505, %v508
      %v510 = vrot.slane %v509, 4
      %v512 = vshll.u32 %v400, 16
      %v514 = vrot.slane %v512, 5
      %v515 = vsel %vm403, %v510, %v514
      %v516 = vunpack.c.l.b16 %v417
      %v517 = vunpack.c.l.b16 %v431
      %v518 = vunpack.c.l.b16 %v445
      %v519 = vunpack.c.l.b16 %v459
      %v520 = vunpack.c.l.b16 %v473
      %v521 = vunpack.c.l.b16 %v487
      %v522 = vunpack.c.l.b16 %v501
      %v523 = vunpack.c.l.b16 %v515
      %v524 = vpack.c.b16 %v517, %v516
      %v525 = vpack.c.b16 %v519, %v518
      %v526 = vpack.c.b16 %v521, %v520
      %v527 = vpack.c.b16 %v523, %v522
      %528 = vrot.lane.b32.xlu0 %v524, 4
      %v529 = vpop.permute.xlu0 %528
      %530 = vrot.lane.b32.xlu0 %v525, 4
      %v531 = vpop.permute.xlu0 %530
      %532 = vrot.lane.b32.xlu0 %v526, 4
      %v533 = vpop.permute.xlu0 %532
      %534 = vrot.lane.b32.xlu0 %v527, 4
      %v535 = vpop.permute.xlu0 %534
      %vm540 = vcmask 64544
      %541 = vst.msk [vmem:[#allocation3] sm:$0xff] %vm540, %v529
      %542 = vst.msk [vmem:[#allocation3 + $0x8] sm:$0xff] %vm540, %v531
      %543 = vst.msk [vmem:[#allocation3 + $0x10] sm:$0xff] %vm540, %v533
      %544 = vst.msk [vmem:[#allocation3 + $0x18] sm:$0xff] %vm540, %v535
      %v545 = vld [vmem:[#allocation2] sm:$0xe]
      %v546 = vld [vmem:[#allocation2 + $0x4] sm:$0x1]
      %v547 = vld [vmem:[#allocation2 + $0x8] sm:$0xe]
      %v548 = vld [vmem:[#allocation2 + $0xc] sm:$0x1]
      %v549 = vld [vmem:[#allocation2 + $0x10] sm:$0xe]
      %v550 = vld [vmem:[#allocation2 + $0x14] sm:$0x1]
      %v551 = vld [vmem:[#allocation2 + $0x18] sm:$0xe]
      %v552 = vld [vmem:[#allocation2 + $0x1c] sm:$0x1]
      %v553 = vld [vmem:[#allocation2 + $0x20] sm:$0xe]
      %v554 = vld [vmem:[#allocation2 + $0x24] sm:$0x1]
      %v555 = vld [vmem:[#allocation2 + $0x28] sm:$0xe]
      %v556 = vld [vmem:[#allocation2 + $0x2c] sm:$0x1]
      %v557 = vld [vmem:[#allocation2 + $0x30] sm:$0xe]
      %v558 = vld [vmem:[#allocation2 + $0x34] sm:$0x1]
      %v559 = vld [vmem:[#allocation2 + $0x38] sm:$0xe]
      %v560 = vld [vmem:[#allocation2 + $0x3c] sm:$0x1]
      %vm577 = vcmask 1042432
      %vm578 = vcmask 1046532
      %vm579 = vmor %vm577, %vm578
      %v580 = vrot.slane %v545, 5
      %v581 = vrot.slane %v580, 4
      %v582 = vrot.slane %v546, 5
      %v583 = vsel %vm579, %v581, %v582
      %v584 = vrot.slane %v547, 5
      %v585 = vrot.slane %v584, 4
      %v586 = vrot.slane %v548, 5
      %v587 = vsel %vm579, %v585, %v586
      %v588 = vrot.slane %v549, 5
      %v589 = vrot.slane %v588, 4
      %v590 = vrot.slane %v550, 5
      %v591 = vsel %vm579, %v589, %v590
      %v592 = vrot.slane %v551, 5
      %v593 = vrot.slane %v592, 4
      %v594 = vrot.slane %v552, 5
      %v595 = vsel %vm579, %v593, %v594
      %v596 = vrot.slane %v553, 5
      %v597 = vrot.slane %v596, 4
      %v598 = vrot.slane %v554, 5
      %v599 = vsel %vm579, %v597, %v598
      %v600 = vrot.slane %v555, 5
      %v601 = vrot.slane %v600, 4
      %v602 = vrot.slane %v556, 5
      %v603 = vsel %vm579, %v601, %v602
      %v604 = vrot.slane %v557, 5
      %v605 = vrot.slane %v604, 4
      %v606 = vrot.slane %v558, 5
      %v607 = vsel %vm579, %v605, %v606
      %v608 = vrot.slane %v559, 5
      %v609 = vrot.slane %v608, 4
      %v610 = vrot.slane %v560, 5
      %v611 = vsel %vm579, %v609, %v610
      %v612 = vunpack.c.l.b16 %v583
      %v613 = vunpack.c.l.b16 %v587
      %v614 = vunpack.c.l.b16 %v591
      %v615 = vunpack.c.l.b16 %v595
      %v616 = vunpack.c.l.b16 %v599
      %v617 = vunpack.c.l.b16 %v603
      %v618 = vunpack.c.l.b16 %v607
      %v619 = vunpack.c.l.b16 %v611
      %v620 = vpack.c.b16 %v613, %v612
      %v621 = vpack.c.b16 %v615, %v614
      %v622 = vpack.c.b16 %v617, %v616
      %v623 = vpack.c.b16 %v619, %v618
      %624 = vrot.lane.b32.xlu0 %v620, 8
      %v625 = vpop.permute.xlu0 %624
      %626 = vrot.lane.b32.xlu0 %v621, 8
      %v627 = vpop.permute.xlu0 %626
      %628 = vrot.lane.b32.xlu0 %v622, 8
      %v629 = vpop.permute.xlu0 %628
      %630 = vrot.lane.b32.xlu0 %v623, 8
      %v631 = vpop.permute.xlu0 %630
      %vm636 = vcmask 97344
      %637 = vst.msk [vmem:[#allocation3] sm:$0xff] %vm636, %v625
      %638 = vst.msk [vmem:[#allocation3 + $0x8] sm:$0xff] %vm636, %v627
      %639 = vst.msk [vmem:[#allocation3 + $0x10] sm:$0xff] %vm636, %v629
      %640 = vst.msk [vmem:[#allocation3 + $0x18] sm:$0xff] %vm636, %v631
      %v641 = vld [vmem:[%s293] sm:$0xf]
      %v642 = vld [vmem:[%s293 + $0x8] sm:$0xf]
      %v643 = vld [vmem:[%s293 + $0x10] sm:$0xf]
      %v644 = vld [vmem:[%s293 + $0x18] sm:$0xf]
      %v645 = vld [vmem:[%s293 + $0x20] sm:$0xf]
      %v646 = vld [vmem:[%s293 + $0x28] sm:$0xf]
      %v647 = vld [vmem:[%s293 + $0x30] sm:$0xf]
      %v648 = vld [vmem:[%s293 + $0x38] sm:$0xf]
      %v657 = vunpack.c.l.b16 %v641
      %v658 = vunpack.c.l.b16 %v642
      %v659 = vunpack.c.l.b16 %v643
      %v660 = vunpack.c.l.b16 %v644
      %v661 = vunpack.c.l.b16 %v645
      %v662 = vunpack.c.l.b16 %v646
      %v663 = vunpack.c.l.b16 %v647
      %v664 = vunpack.c.l.b16 %v648
      %v665 = vpack.c.b16 %v658, %v657
      %v666 = vpack.c.b16 %v660, %v659
      %v667 = vpack.c.b16 %v662, %v661
      %v668 = vpack.c.b16 %v664, %v663
      %669 = vrot.lane.b32.xlu0 %v665, 12
      %v670 = vpop.permute.xlu0 %669
      %671 = vrot.lane.b32.xlu0 %v666, 12
      %v672 = vpop.permute.xlu0 %671
      %673 = vrot.lane.b32.xlu0 %v667, 12
      %v674 = vpop.permute.xlu0 %673
      %675 = vrot.lane.b32.xlu0 %v668, 12
      %v676 = vpop.permute.xlu0 %675
      %vm681 = vcmask 130144
      %682 = vst.msk [vmem:[#allocation3] sm:$0xff] %vm681, %v670
      %683 = vst.msk [vmem:[#allocation3 + $0x8] sm:$0xff] %vm681, %v672
      %684 = vst.msk [vmem:[#allocation3 + $0x10] sm:$0xff] %vm681, %v674
      %685 = vst.msk [vmem:[#allocation3 + $0x18] sm:$0xff] %vm681, %v676
      %v686 = vld [vmem:[%s293] sm:$0xf]
      %v687 = vld [vmem:[%s293 + $0x4] sm:$0x1]
      %v688 = vld [vmem:[%s293 + $0x8] sm:$0xf]
      %v689 = vld [vmem:[%s293 + $0xc] sm:$0x1]
      %v690 = vld [vmem:[%s293 + $0x10] sm:$0xf]
      %v691 = vld [vmem:[%s293 + $0x14] sm:$0x1]
      %v692 = vld [vmem:[%s293 + $0x18] sm:$0xf]
      %v693 = vld [vmem:[%s293 + $0x1c] sm:$0x1]
      %v694 = vld [vmem:[%s293 + $0x20] sm:$0xf]
      %v695 = vld [vmem:[%s293 + $0x24] sm:$0x1]
      %v696 = vld [vmem:[%s293 + $0x28] sm:$0xf]
      %v697 = vld [vmem:[%s293 + $0x2c] sm:$0x1]
      %v698 = vld [vmem:[%s293 + $0x30] sm:$0xf]
      %v699 = vld [vmem:[%s293 + $0x34] sm:$0x1]
      %v700 = vld [vmem:[%s293 + $0x38] sm:$0xf]
      %v701 = vld [vmem:[%s293 + $0x3c] sm:$0x1]
      %v703 = vshrl.u32 %v686, 16
      %v705 = vrot.slane %v703, 4
      %v706 = vshll.u32 %v686, 16
      %v708 = vrot.slane %v706, 5
      %v709 = vor.u32 %v705, %v708
      %v710 = vrot.slane %v709, 4
      %v712 = vshll.u32 %v687, 16
      %v714 = vrot.slane %v712, 5
      %v715 = vsel %vm403, %v710, %v714
      %v717 = vshrl.u32 %v688, 16
      %v719 = vrot.slane %v717, 4
      %v720 = vshll.u32 %v688, 16
      %v722 = vrot.slane %v720, 5
      %v723 = vor.u32 %v719, %v722
      %v724 = vrot.slane %v723, 4
      %v726 = vshll.u32 %v689, 16
      %v728 = vrot.slane %v726, 5
      %v729 = vsel %vm403, %v724, %v728
      %v731 = vshrl.u32 %v690, 16
      %v733 = vrot.slane %v731, 4
      %v734 = vshll.u32 %v690, 16
      %v736 = vrot.slane %v734, 5
      %v737 = vor.u32 %v733, %v736
      %v738 = vrot.slane %v737, 4
      %v740 = vshll.u32 %v691, 16
      %v742 = vrot.slane %v740, 5
      %v743 = vsel %vm403, %v738, %v742
      %v745 = vshrl.u32 %v692, 16
      %v747 = vrot.slane %v745, 4
      %v748 = vshll.u32 %v692, 16
      %v750 = vrot.slane %v748, 5
      %v751 = vor.u32 %v747, %v750
      %v752 = vrot.slane %v751, 4
      %v754 = vshll.u32 %v693, 16
      %v756 = vrot.slane %v754, 5
      %v757 = vsel %vm403, %v752, %v756
      %v759 = vshrl.u32 %v694, 16
      %v761 = vrot.slane %v759, 4
      %v762 = vshll.u32 %v694, 16
      %v764 = vrot.slane %v762, 5
      %v765 = vor.u32 %v761, %v764
      %v766 = vrot.slane %v765, 4
      %v768 = vshll.u32 %v695, 16
      %v770 = vrot.slane %v768, 5
      %v771 = vsel %vm403, %v766, %v770
      %v773 = vshrl.u32 %v696, 16
      %v775 = vrot.slane %v773, 4
      %v776 = vshll.u32 %v696, 16
      %v778 = vrot.slane %v776, 5
      %v779 = vor.u32 %v775, %v778
      %v780 = vrot.slane %v779, 4
      %v782 = vshll.u32 %v697, 16
      %v784 = vrot.slane %v782, 5
      %v785 = vsel %vm403, %v780, %v784
      %v787 = vshrl.u32 %v698, 16
      %v789 = vrot.slane %v787, 4
      %v790 = vshll.u32 %v698, 16
      %v792 = vrot.slane %v790, 5
      %v793 = vor.u32 %v789, %v792
      %v794 = vrot.slane %v793, 4
      %v796 = vshll.u32 %v699, 16
      %v798 = vrot.slane %v796, 5
      %v799 = vsel %vm403, %v794, %v798
      %v801 = vshrl.u32 %v700, 16
      %v803 = vrot.slane %v801, 4
      %v804 = vshll.u32 %v700, 16
      %v806 = vrot.slane %v804, 5
      %v807 = vor.u32 %v803, %v806
      %v808 = vrot.slane %v807, 4
      %v810 = vshll.u32 %v701, 16
      %v812 = vrot.slane %v810, 5
      %v813 = vsel %vm403, %v808, %v812
      %v814 = vunpack.c.l.b16 %v715
      %v815 = vunpack.c.l.b16 %v729
      %v816 = vunpack.c.l.b16 %v743
      %v817 = vunpack.c.l.b16 %v757
      %v818 = vunpack.c.l.b16 %v771
      %v819 = vunpack.c.l.b16 %v785
      %v820 = vunpack.c.l.b16 %v799
      %v821 = vunpack.c.l.b16 %v813
      %v822 = vpack.c.b16 %v815, %v814
      %v823 = vpack.c.b16 %v817, %v816
      %v824 = vpack.c.b16 %v819, %v818
      %v825 = vpack.c.b16 %v821, %v820
      %826 = vrot.lane.b32.xlu0 %v822, 16
      %v827 = vpop.permute.xlu0 %826
      %828 = vrot.lane.b32.xlu0 %v823, 16
      %v829 = vpop.permute.xlu0 %828
      %830 = vrot.lane.b32.xlu0 %v824, 16
      %v831 = vpop.permute.xlu0 %830
      %832 = vrot.lane.b32.xlu0 %v825, 16
      %v833 = vpop.permute.xlu0 %832
      %vm838 = vcmask 162944
      %839 = vst.msk [vmem:[#allocation3] sm:$0xff] %vm838, %v827
      %840 = vst.msk [vmem:[#allocation3 + $0x8] sm:$0xff] %vm838, %v829
      %841 = vst.msk [vmem:[#allocation3 + $0x10] sm:$0xff] %vm838, %v831
      %842 = vst.msk [vmem:[#allocation3 + $0x18] sm:$0xff] %vm838, %v833
      %v843 = vld [vmem:[%s293] sm:$0xe]
      %v844 = vld [vmem:[%s293 + $0x4] sm:$0x1]
      %v845 = vld [vmem:[%s293 + $0x8] sm:$0xe]
      %v846 = vld [vmem:[%s293 + $0xc] sm:$0x1]
      %v847 = vld [vmem:[%s293 + $0x10] sm:$0xe]
      %v848 = vld [vmem:[%s293 + $0x14] sm:$0x1]
      %v849 = vld [vmem:[%s293 + $0x18] sm:$0xe]
      %v850 = vld [vmem:[%s293 + $0x1c] sm:$0x1]
      %v851 = vld [vmem:[%s293 + $0x20] sm:$0xe]
      %v852 = vld [vmem:[%s293 + $0x24] sm:$0x1]
      %v853 = vld [vmem:[%s293 + $0x28] sm:$0xe]
      %v854 = vld [vmem:[%s293 + $0x2c] sm:$0x1]
      %v855 = vld [vmem:[%s293 + $0x30] sm:$0xe]
      %v856 = vld [vmem:[%s293 + $0x34] sm:$0x1]
      %v857 = vld [vmem:[%s293 + $0x38] sm:$0xe]
      %v858 = vld [vmem:[%s293 + $0x3c] sm:$0x1]
      %v875 = vrot.slane %v843, 5
      %v876 = vrot.slane %v875, 4
      %v877 = vrot.slane %v844, 5
      %v878 = vsel %vm579, %v876, %v877
      %v879 = vrot.slane %v845, 5
      %v880 = vrot.slane %v879, 4
      %v881 = vrot.slane %v846, 5
      %v882 = vsel %vm579, %v880, %v881
      %v883 = vrot.slane %v847, 5
      %v884 = vrot.slane %v883, 4
      %v885 = vrot.slane %v848, 5
      %v886 = vsel %vm579, %v884, %v885
      %v887 = vrot.slane %v849, 5
      %v888 = vrot.slane %v887, 4
      %v889 = vrot.slane %v850, 5
      %v890 = vsel %vm579, %v888, %v889
      %v891 = vrot.slane %v851, 5
      %v892 = vrot.slane %v891, 4
      %v893 = vrot.slane %v852, 5
      %v894 = vsel %vm579, %v892, %v893
      %v895 = vrot.slane %v853, 5
      %v896 = vrot.slane %v895, 4
      %v897 = vrot.slane %v854, 5
      %v898 = vsel %vm579, %v896, %v897
      %v899 = vrot.slane %v855, 5
      %v900 = vrot.slane %v899, 4
      %v901 = vrot.slane %v856, 5
      %v902 = vsel %vm579, %v900, %v901
      %v903 = vrot.slane %v857, 5
      %v904 = vrot.slane %v903, 4
      %v905 = vrot.slane %v858, 5
      %v906 = vsel %vm579, %v904, %v905
      %v907 = vunpack.c.l.b16 %v878
      %v908 = vunpack.c.l.b16 %v882
      %v909 = vunpack.c.l.b16 %v886
      %v910 = vunpack.c.l.b16 %v890
      %v911 = vunpack.c.l.b16 %v894
      %v912 = vunpack.c.l.b16 %v898
      %v913 = vunpack.c.l.b16 %v902
      %v914 = vunpack.c.l.b16 %v906
      %v915 = vpack.c.b16 %v908, %v907
      %v916 = vpack.c.b16 %v910, %v909
      %v917 = vpack.c.b16 %v912, %v911
      %v918 = vpack.c.b16 %v914, %v913
      %919 = vrot.lane.b32.xlu0 %v915, 20
      %v920 = vpop.permute.xlu0 %919
      %921 = vrot.lane.b32.xlu0 %v916, 20
      %v922 = vpop.permute.xlu0 %921
      %923 = vrot.lane.b32.xlu0 %v917, 20
      %v924 = vpop.permute.xlu0 %923
      %925 = vrot.lane.b32.xlu0 %v918, 20
      %v926 = vpop.permute.xlu0 %925
      %vm931 = vcmask 195744
      %932 = vst.msk [vmem:[#allocation3] sm:$0xff] %vm931, %v920
      %933 = vst.msk [vmem:[#allocation3 + $0x8] sm:$0xff] %vm931, %v922
      %934 = vst.msk [vmem:[#allocation3 + $0x10] sm:$0xff] %vm931, %v924
      %935 = vst.msk [vmem:[#allocation3 + $0x18] sm:$0xff] %vm931, %v926
      %s936 = scalar_lea.vmem [#allocation2], 16
      %v937 = vld [vmem:[%s936] sm:$0xf]
      %v938 = vld [vmem:[%s936 + $0x8] sm:$0xf]
      %v939 = vld [vmem:[%s936 + $0x10] sm:$0xf]
      %v940 = vld [vmem:[%s936 + $0x18] sm:$0xf]
      %v941 = vld [vmem:[%s936 + $0x20] sm:$0xf]
      %v942 = vld [vmem:[%s936 + $0x28] sm:$0xf]
      %v943 = vld [vmem:[%s936 + $0x30] sm:$0xf]
      %v944 = vld [vmem:[%s936 + $0x38] sm:$0xf]
      %v953 = vunpack.c.l.b16 %v937
      %v954 = vunpack.c.l.b16 %v938
      %v955 = vunpack.c.l.b16 %v939
      %v956 = vunpack.c.l.b16 %v940
      %v957 = vunpack.c.l.b16 %v941
      %v958 = vunpack.c.l.b16 %v942
      %v959 = vunpack.c.l.b16 %v943
      %v960 = vunpack.c.l.b16 %v944
      %v961 = vpack.c.b16 %v954, %v953
      %v962 = vpack.c.b16 %v956, %v955
      %v963 = vpack.c.b16 %v958, %v957
      %v964 = vpack.c.b16 %v960, %v959
      %965 = vrot.lane.b32.xlu0 %v961, 24
      %v966 = vpop.permute.xlu0 %965
      %967 = vrot.lane.b32.xlu0 %v962, 24
      %v968 = vpop.permute.xlu0 %967
      %969 = vrot.lane.b32.xlu0 %v963, 24
      %v970 = vpop.permute.xlu0 %969
      %971 = vrot.lane.b32.xlu0 %v964, 24
      %v972 = vpop.permute.xlu0 %971
      %vm977 = vcmask 228544
      %978 = vst.msk [vmem:[#allocation3] sm:$0xff] %vm977, %v966
      %979 = vst.msk [vmem:[#allocation3 + $0x8] sm:$0xff] %vm977, %v968
      %980 = vst.msk [vmem:[#allocation3 + $0x10] sm:$0xff] %vm977, %v970
      %981 = vst.msk [vmem:[#allocation3 + $0x18] sm:$0xff] %vm977, %v972
      %v982 = vld [vmem:[%s936] sm:$0xf]
      %v983 = vld [vmem:[%s936 + $0x4] sm:$0x1]
      %v984 = vld [vmem:[%s936 + $0x8] sm:$0xf]
      %v985 = vld [vmem:[%s936 + $0xc] sm:$0x1]
      %v986 = vld [vmem:[%s936 + $0x10] sm:$0xf]
      %v987 = vld [vmem:[%s936 + $0x14] sm:$0x1]
      %v988 = vld [vmem:[%s936 + $0x18] sm:$0xf]
      %v989 = vld [vmem:[%s936 + $0x1c] sm:$0x1]
      %v990 = vld [vmem:[%s936 + $0x20] sm:$0xf]
      %v991 = vld [vmem:[%s936 + $0x24] sm:$0x1]
      %v992 = vld [vmem:[%s936 + $0x28] sm:$0xf]
      %v993 = vld [vmem:[%s936 + $0x2c] sm:$0x1]
      %v994 = vld [vmem:[%s936 + $0x30] sm:$0xf]
      %v995 = vld [vmem:[%s936 + $0x34] sm:$0x1]
      %v996 = vld [vmem:[%s936 + $0x38] sm:$0xf]
      %v997 = vld [vmem:[%s936 + $0x3c] sm:$0x1]
      %v999 = vshrl.u32 %v982, 16
      %v1001 = vrot.slane %v999, 4
      %v1002 = vshll.u32 %v982, 16
      %v1004 = vrot.slane %v1002, 5
      %v1005 = vor.u32 %v1001, %v1004
      %v1006 = vrot.slane %v1005, 4
      %v1008 = vshll.u32 %v983, 16
      %v1010 = vrot.slane %v1008, 5
      %v1011 = vsel %vm403, %v1006, %v1010
      %v1013 = vshrl.u32 %v984, 16
      %v1015 = vrot.slane %v1013, 4
      %v1016 = vshll.u32 %v984, 16
      %v1018 = vrot.slane %v1016, 5
      %v1019 = vor.u32 %v1015, %v1018
      %v1020 = vrot.slane %v1019, 4
      %v1022 = vshll.u32 %v985, 16
      %v1024 = vrot.slane %v1022, 5
      %v1025 = vsel %vm403, %v1020, %v1024
      %v1027 = vshrl.u32 %v986, 16
      %v1029 = vrot.slane %v1027, 4
      %v1030 = vshll.u32 %v986, 16
      %v1032 = vrot.slane %v1030, 5
      %v1033 = vor.u32 %v1029, %v1032
      %v1034 = vrot.slane %v1033, 4
      %v1036 = vshll.u32 %v987, 16
      %v1038 = vrot.slane %v1036, 5
      %v1039 = vsel %vm403, %v1034, %v1038
      %v1041 = vshrl.u32 %v988, 16
      %v1043 = vrot.slane %v1041, 4
      %v1044 = vshll.u32 %v988, 16
      %v1046 = vrot.slane %v1044, 5
      %v1047 = vor.u32 %v1043, %v1046
      %v1048 = vrot.slane %v1047, 4
      %v1050 = vshll.u32 %v989, 16
      %v1052 = vrot.slane %v1050, 5
      %v1053 = vsel %vm403, %v1048, %v1052
      %v1055 = vshrl.u32 %v990, 16
      %v1057 = vrot.slane %v1055, 4
      %v1058 = vshll.u32 %v990, 16
      %v1060 = vrot.slane %v1058, 5
      %v1061 = vor.u32 %v1057, %v1060
      %v1062 = vrot.slane %v1061, 4
      %v1064 = vshll.u32 %v991, 16
      %v1066 = vrot.slane %v1064, 5
      %v1067 = vsel %vm403, %v1062, %v1066
      %v1069 = vshrl.u32 %v992, 16
      %v1071 = vrot.slane %v1069, 4
      %v1072 = vshll.u32 %v992, 16
      %v1074 = vrot.slane %v1072, 5
      %v1075 = vor.u32 %v1071, %v1074
      %v1076 = vrot.slane %v1075, 4
      %v1078 = vshll.u32 %v993, 16
      %v1080 = vrot.slane %v1078, 5
      %v1081 = vsel %vm403, %v1076, %v1080
      %v1083 = vshrl.u32 %v994, 16
      %v1085 = vrot.slane %v1083, 4
      %v1086 = vshll.u32 %v994, 16
      %v1088 = vrot.slane %v1086, 5
      %v1089 = vor.u32 %v1085, %v1088
      %v1090 = vrot.slane %v1089, 4
      %v1092 = vshll.u32 %v995, 16
      %v1094 = vrot.slane %v1092, 5
      %v1095 = vsel %vm403, %v1090, %v1094
      %v1097 = vshrl.u32 %v996, 16
      %v1099 = vrot.slane %v1097, 4
      %v1100 = vshll.u32 %v996, 16
      %v1102 = vrot.slane %v1100, 5
      %v1103 = vor.u32 %v1099, %v1102
      %v1104 = vrot.slane %v1103, 4
      %v1106 = vshll.u32 %v997, 16
      %v1108 = vrot.slane %v1106, 5
      %v1109 = vsel %vm403, %v1104, %v1108
      %v1110 = vunpack.c.l.b16 %v1011
      %v1111 = vunpack.c.l.b16 %v1025
      %v1112 = vunpack.c.l.b16 %v1039
      %v1113 = vunpack.c.l.b16 %v1053
      %v1114 = vunpack.c.l.b16 %v1067
      %v1115 = vunpack.c.l.b16 %v1081
      %v1116 = vunpack.c.l.b16 %v1095
      %v1117 = vunpack.c.l.b16 %v1109
      %v1118 = vpack.c.b16 %v1111, %v1110
      %v1119 = vpack.c.b16 %v1113, %v1112
      %v1120 = vpack.c.b16 %v1115, %v1114
      %v1121 = vpack.c.b16 %v1117, %v1116
      %1122 = vrot.lane.b32.xlu0 %v1118, 28
      %v1123 = vpop.permute.xlu0 %1122
      %1124 = vrot.lane.b32.xlu0 %v1119, 28
      %v1125 = vpop.permute.xlu0 %1124
      %1126 = vrot.lane.b32.xlu0 %v1120, 28
      %v1127 = vpop.permute.xlu0 %1126
      %1128 = vrot.lane.b32.xlu0 %v1121, 28
      %v1129 = vpop.permute.xlu0 %1128
      %vm1134 = vcmask 261344
      %1135 = vst.msk [vmem:[#allocation3] sm:$0xff] %vm1134, %v1123
      %1136 = vst.msk [vmem:[#allocation3 + $0x8] sm:$0xff] %vm1134, %v1125
      %1137 = vst.msk [vmem:[#allocation3 + $0x10] sm:$0xff] %vm1134, %v1127
      %1138 = vst.msk [vmem:[#allocation3 + $0x18] sm:$0xff] %vm1134, %v1129
      %v1139 = vld [vmem:[%s936] sm:$0xe]
      %v1140 = vld [vmem:[%s936 + $0x4] sm:$0x1]
      %v1141 = vld [vmem:[%s936 + $0x8] sm:$0xe]
      %v1142 = vld [vmem:[%s936 + $0xc] sm:$0x1]
      %v1143 = vld [vmem:[%s936 + $0x10] sm:$0xe]
      %v1144 = vld [vmem:[%s936 + $0x14] sm:$0x1]
      %v1145 = vld [vmem:[%s936 + $0x18] sm:$0xe]
      %v1146 = vld [vmem:[%s936 + $0x1c] sm:$0x1]
      %v1147 = vld [vmem:[%s936 + $0x20] sm:$0xe]
      %v1148 = vld [vmem:[%s936 + $0x24] sm:$0x1]
      %v1149 = vld [vmem:[%s936 + $0x28] sm:$0xe]
      %v1150 = vld [vmem:[%s936 + $0x2c] sm:$0x1]
      %v1151 = vld [vmem:[%s936 + $0x30] sm:$0xe]
      %v1152 = vld [vmem:[%s936 + $0x34] sm:$0x1]
      %v1153 = vld [vmem:[%s936 + $0x38] sm:$0xe]
      %v1154 = vld [vmem:[%s936 + $0x3c] sm:$0x1]
      %v1171 = vrot.slane %v1139, 5
      %v1172 = vrot.slane %v1171, 4
      %v1173 = vrot.slane %v1140, 5
      %v1174 = vsel %vm579, %v1172, %v1173
      %v1175 = vrot.slane %v1141, 5
      %v1176 = vrot.slane %v1175, 4
      %v1177 = vrot.slane %v1142, 5
      %v1178 = vsel %vm579, %v1176, %v1177
      %v1179 = vrot.slane %v1143, 5
      %v1180 = vrot.slane %v1179, 4
      %v1181 = vrot.slane %v1144, 5
      %v1182 = vsel %vm579, %v1180, %v1181
      %v1183 = vrot.slane %v1145, 5
      %v1184 = vrot.slane %v1183, 4
      %v1185 = vrot.slane %v1146, 5
      %v1186 = vsel %vm579, %v1184, %v1185
      %v1187 = vrot.slane %v1147, 5
      %v1188 = vrot.slane %v1187, 4
      %v1189 = vrot.slane %v1148, 5
      %v1190 = vsel %vm579, %v1188, %v1189
      %v1191 = vrot.slane %v1149, 5
      %v1192 = vrot.slane %v1191, 4
      %v1193 = vrot.slane %v1150, 5
      %v1194 = vsel %vm579, %v1192, %v1193
      %v1195 = vrot.slane %v1151, 5
      %v1196 = vrot.slane %v1195, 4
      %v1197 = vrot.slane %v1152, 5
      %v1198 = vsel %vm579, %v1196, %v1197
      %v1199 = vrot.slane %v1153, 5
      %v1200 = vrot.slane %v1199, 4
      %v1201 = vrot.slane %v1154, 5
      %v1202 = vsel %vm579, %v1200, %v1201
      %v1203 = vunpack.c.l.b16 %v1174
      %v1204 = vunpack.c.l.b16 %v1178
      %v1205 = vunpack.c.l.b16 %v1182
      %v1206 = vunpack.c.l.b16 %v1186
      %v1207 = vunpack.c.l.b16 %v1190
      %v1208 = vunpack.c.l.b16 %v1194
      %v1209 = vunpack.c.l.b16 %v1198
      %v1210 = vunpack.c.l.b16 %v1202
      %v1211 = vpack.c.b16 %v1204, %v1203
      %v1212 = vpack.c.b16 %v1206, %v1205
      %v1213 = vpack.c.b16 %v1208, %v1207
      %v1214 = vpack.c.b16 %v1210, %v1209
      %1215 = vrot.lane.b32.xlu0 %v1211, 32
      %v1216 = vpop.permute.xlu0 %1215
      %1217 = vrot.lane.b32.xlu0 %v1212, 32
      %v1218 = vpop.permute.xlu0 %1217
      %1219 = vrot.lane.b32.xlu0 %v1213, 32
      %v1220 = vpop.permute.xlu0 %1219
      %1221 = vrot.lane.b32.xlu0 %v1214, 32
      %v1222 = vpop.permute.xlu0 %1221
      %vm1227 = vcmask 294144
      %1228 = vst.msk [vmem:[#allocation3] sm:$0xff] %vm1227, %v1216
      %1229 = vst.msk [vmem:[#allocation3 + $0x8] sm:$0xff] %vm1227, %v1218
      %1230 = vst.msk [vmem:[#allocation3 + $0x10] sm:$0xff] %vm1227, %v1220
      %1231 = vst.msk [vmem:[#allocation3 + $0x18] sm:$0xff] %vm1227, %v1222
      %v1232 = vld [vmem:[#allocation3] sm:$0xff]
      %v1233 = vld [vmem:[#allocation3 + $0x8] sm:$0xff]
      %v1234 = vld [vmem:[#allocation3 + $0x10] sm:$0xff]
      %v1235 = vld [vmem:[#allocation3 + $0x18] sm:$0xff]
      %v1236 = vld [vmem:[%s1] sm:$0xf]
      %v1237 = vld [vmem:[%s1 + $0x4] sm:$0xf]
      %v1238 = vld [vmem:[%s1 + $0x8] sm:$0xf]
      %v1239 = vld [vmem:[%s1 + $0xc] sm:$0xf]
      %v1240 = vld [vmem:[%s1 + $0x10] sm:$0x3]
      %v1246 = vunpack.c.l.b16 %v1236
      %v1247 = vunpack.c.l.b16 %v1237
      %v1248 = vunpack.c.l.b16 %v1238
      %v1249 = vunpack.c.l.b16 %v1239
      %v1250 = vunpack.c.l.b16 %v1240
      %v1251 = vpack.c.b16 %v1247, %v1246
      %v1252 = vpack.c.b16 %v1249, %v1248
      %v1253 = vpack.c.b16 %v1250, %v1250
      %vm1256 = vcmask 293888
      %v1258 = vsel %vm1256, %v1232, 0
      %v1261 = vsel %vm1256, %v1233, 0
      %v1264 = vsel %vm1256, %v1234, 0
      %v1267 = vsel %vm1256, %v1235, 0
      %vm1269 = vcmask 1041408
      %v1271 = vsel %vm1269, %v1253, 0
      %1273 = vmatprep.subr.bf16.mxu0 0
      %1274 = vmatpush1.bf16.msra.mxu0 %v1251
      %1275 = vmatprep.subr.bf16.mxu0 0
      %1276 = vmatpush1.bf16.msra.mxu0 %v1252
      %1277 = vmatprep.subr.bf16.mxu0 0
      %1278 = vmatpush1.bf16.msra.mxu0 %v1271
      %1279 = vmatprep.subr.bf16.mxu0 0
      %1280 = vmatpush1.bf16.msra.mxu0 0
      %1281 = vmatprep.subr.bf16.mxu0 0
      %1282 = vmatpush1.bf16.msra.mxu0 0
      %1283 = vmatprep.subr.bf16.mxu0 0
      %1284 = vmatpush1.bf16.msra.mxu0 0
      %1285 = vmatprep.subr.bf16.mxu0 0
      %1286 = vmatpush1.bf16.msra.mxu0 0
      %1287 = vmatprep.subr.bf16.mxu0 0
      %1288 = vmatpush1.bf16.msra.mxu0 0
      %1289 = vmatprep.subr.bf16.mxu0 0
      %1290 = vmatpush1.bf16.msra.mxu0 0
      %1291 = vmatprep.subr.bf16.mxu0 0
      %1292 = vmatpush1.bf16.msra.mxu0 0
      %1293 = vmatprep.subr.bf16.mxu0 0
      %1294 = vmatpush1.bf16.msra.mxu0 0
      %1295 = vmatprep.subr.bf16.mxu0 0
      %1296 = vmatpush1.bf16.msra.mxu0 0
      %1297 = vmatprep.subr.bf16.mxu0 0
      %1298 = vmatpush1.bf16.msra.mxu0 0
      %1299 = vmatprep.subr.bf16.mxu0 0
      %1300 = vmatpush1.bf16.msra.mxu0 0
      %1301 = vmatprep.subr.bf16.mxu0 0
      %1302 = vmatpush1.bf16.msra.mxu0 0
      %1303 = vmatprep.subr.bf16.mxu0 0
      %1304 = vmatpush1.bf16.msra.mxu0 0
      %1305 = vmatprep.mubr.bf16.mxu0 0
      %1306 = vmatmul.mubr.bf16.gmra.mrb[0].mxu0 %v1258
      %v1307 = vpop.f32.mrb[0].mxu0
      %v1308 = vadd.f32 0.0, %v1307
      %v1309 = vpop.f32.mrb[0].mxu0
      %v1310 = vpop.f32.mrb[0].mxu0
      %v1311 = vadd.f32 0.0, %v1310
      %v1312 = vpop.f32.mrb[0].mxu0
      %1313 = vmatprep.mubr.bf16.mxu0 0
      %1314 = vmatmul.mubr.bf16.gmra.mrb[0].mxu0 %v1261
      %v1315 = vpop.f32.mrb[0].mxu0
      %v1316 = vadd.f32 0.0, %v1315
      %v1317 = vpop.f32.mrb[0].mxu0
      %v1318 = vpop.f32.mrb[0].mxu0
      %v1319 = vadd.f32 0.0, %v1318
      %v1320 = vpop.f32.mrb[0].mxu0
      %1321 = vmatprep.mubr.bf16.mxu0 0
      %1322 = vmatmul.mubr.bf16.gmra.mrb[0].mxu0 %v1264
      %v1323 = vpop.f32.mrb[0].mxu0
      %v1324 = vadd.f32 0.0, %v1323
      %v1325 = vpop.f32.mrb[0].mxu0
      %v1326 = vpop.f32.mrb[0].mxu0
      %v1327 = vadd.f32 0.0, %v1326
      %v1328 = vpop.f32.mrb[0].mxu0
      %1329 = vmatprep.mubr.bf16.mxu0 0
      %1330 = vmatmul.mubr.bf16.gmra.mrb[0].mxu0 %v1267
      %v1331 = vpop.f32.mrb[0].mxu0
      %v1332 = vadd.f32 0.0, %v1331
      %v1333 = vpop.f32.mrb[0].mxu0
      %v1334 = vpop.f32.mrb[0].mxu0
      %v1335 = vadd.f32 0.0, %v1334
      %v1336 = vpop.f32.mrb[0].mxu0
      %1337 = vdwg.mxu0
      %v1338 = vpack.c.bf16 %v1308, %v1308
      %v1339 = vpack.c.bf16 %v1311, %v1311
      %v1340 = vpack.c.bf16 %v1316, %v1316
      %v1341 = vpack.c.bf16 %v1319, %v1319
      %v1342 = vpack.c.bf16 %v1324, %v1324
      %v1343 = vpack.c.bf16 %v1327, %v1327
      %v1344 = vpack.c.bf16 %v1332, %v1332
      %v1345 = vpack.c.bf16 %v1335, %v1335
      %1346 = vst.msk [vmem:[%s177] sm:$0xf] %vm183, %v1338
      %1347 = vst.msk [vmem:[%s177 + $0x4] sm:$0xf] %vm183, %v1339
      %1348 = vst.msk [vmem:[%s177 + $0x8] sm:$0xf] %vm183, %v1340
      %1349 = vst.msk [vmem:[%s177 + $0xc] sm:$0xf] %vm183, %v1341
      %1350 = vst.msk [vmem:[%s177 + $0x10] sm:$0xf] %vm183, %v1342
      %1351 = vst.msk [vmem:[%s177 + $0x14] sm:$0xf] %vm183, %v1343
      %1352 = vst.msk [vmem:[%s177 + $0x18] sm:$0xf] %vm183, %v1344
      %1353 = vst.msk [vmem:[%s177 + $0x1c] sm:$0xf] %vm183, %v1345
      %v1354 = vsel %vm380, %v1308, 0.0
      %v1355 = vsel %vm380, %v1311, 0.0
      %v1356 = vadd.f32 %v1354, %v1355
      %v1357 = vsel %vm380, %v1316, 0.0
      %v1358 = vadd.f32 %v1356, %v1357
      %v1359 = vsel %vm380, %v1319, 0.0
      %v1360 = vadd.f32 %v1358, %v1359
      %v1361 = vsel %vm380, %v1324, 0.0
      %v1362 = vadd.f32 %v1360, %v1361
      %v1363 = vsel %vm380, %v1327, 0.0
      %v1364 = vadd.f32 %v1362, %v1363
      %v1365 = vsel %vm380, %v1332, 0.0
      %v1366 = vadd.f32 %v1364, %v1365
      %v1367 = vsel %vm380, %v1335, 0.0
      %v1368 = vadd.f32 %v1366, %v1367
      %v1369 = vrot.slane %v1368, 4
      %v1370 = vadd.f32 %v1368, %v1369
      %v1371 = vrot.slane %v1370, 2
      %v1372 = vadd.f32 %v1370, %v1371
      %v1373 = vrot.slane %v1372, 1
      %v1374 = vadd.f32 %v1372, %v1373
      %1375 = vst.msk [vmem:[%s181] sm:$0x1] %vm185, %v1374
      %v1376 = vmul.f32 %v1308, %v1308
      %v1377 = vmul.f32 %v1311, %v1311
      %v1378 = vmul.f32 %v1316, %v1316
      %v1379 = vmul.f32 %v1319, %v1319
      %v1380 = vmul.f32 %v1324, %v1324
      %v1381 = vmul.f32 %v1327, %v1327
      %v1382 = vmul.f32 %v1332, %v1332
      %v1383 = vmul.f32 %v1335, %v1335
      %v1384 = vsel %vm380, %v1376, 0.0
      %v1385 = vsel %vm380, %v1377, 0.0
      %v1386 = vadd.f32 %v1384, %v1385
      %v1387 = vsel %vm380, %v1378, 0.0
      %v1388 = vadd.f32 %v1386, %v1387
      %v1389 = vsel %vm380, %v1379, 0.0
      %v1390 = vadd.f32 %v1388, %v1389
      %v1391 = vsel %vm380, %v1380, 0.0
      %v1392 = vadd.f32 %v1390, %v1391
      %v1393 = vsel %vm380, %v1381, 0.0
      %v1394 = vadd.f32 %v1392, %v1393
      %v1395 = vsel %vm380, %v1382, 0.0
      %v1396 = vadd.f32 %v1394, %v1395
      %v1397 = vsel %vm380, %v1383, 0.0
      %v1398 = vadd.f32 %v1396, %v1397
      %v1399 = vrot.slane %v1398, 4
      %v1400 = vadd.f32 %v1398, %v1399
      %v1401 = vrot.slane %v1400, 2
      %v1402 = vadd.f32 %v1400, %v1401
      %v1403 = vrot.slane %v1402, 1
      %v1404 = vadd.f32 %v1402, %v1403
      %1405 = vst.msk [vmem:[%s181 + $0x1] sm:$0x1] %vm185, %v1404
      %p1406 = scmp.lt.s32.totalorder %s15, 3
      %s1407 = scalar_select %p1406, %s15, 3
      %s1408 = smul.addr %s1407, 8
      %s1409 = smul.addr %s1408, 4
      %s1410 = scalar_lea.vmem %s2, %s1409
      %p1411 = scmp.lt.s32.totalorder %s15, 3
      %s1412 = scalar_select %p1411, %s15, 3
      %s1413 = smul.addr %s1412, 2
      %s1414 = scalar_lea.vmem %s3, %s1413
      // Predicated region
      $region29: #{bottleneck_forward.8} parent=27 // pred_check
        %p1415 = pneg %p80
      $region30: #{bottleneck_forward.8} parent=27 // pred_check_branch
        %1417 = sbr.rel (%p1415) target = $region32
      $region31: #{bottleneck_forward.8} parent=27 // pred_region
        _
      $region32: #{bottleneck_forward.8} parent=27 // pred_fallthru
        _
      // Predicated region
      $region33: #{bottleneck_forward.8} parent=27 // pred_check
        %p1418 = pneg %p106
      $region34: #{bottleneck_forward.8} parent=27 // pred_check_branch
        %1420 = sbr.rel (%p1418) target = $region36
      $region35: #{bottleneck_forward.8} parent=27 // pred_region
        _
      $region36: #{bottleneck_forward.8} parent=27 // pred_fallthru
        _
    $region28: #{bottleneck_forward.8} parent=5 // pred_fallthru
      _
    %p1421 = scmp.le.s32.totalorder 2, %s10
    // Predicated region
    $region37: #{bottleneck_forward.8} parent=5 // pred_check
      %p1422 = pneg %p1421
    $region38: #{bottleneck_forward.8} parent=5 // pred_check_branch
      %1424 = sbr.rel (%p1422) target = $region40
    $region39: #{bottleneck_forward.8} parent=5 // pred_region
      %s1425 = ssub.s32 %s10, 2
      // Predicated region
      $region41: #{bottleneck_forward.8} parent=39 // pred_check
        %p1426 = pneg %p86
      $region42: #{bottleneck_forward.8} parent=39 // pred_check_branch
        %1428 = sbr.rel (%p1426) target = $region44
      $region43: #{bottleneck_forward.8} parent=39 // pred_region
        %p1429 = scmp.lt.s32.totalorder %s16, 3
        %s1430 = scalar_select %p1429, %s16, 3
        %s1431 = smul.addr %s1430, 8
        %s1432 = smul.addr %s1431, 4
        %s1433 = scalar_lea.vmem %s2, %s1432
      $region44: #{bottleneck_forward.8} parent=39 // pred_fallthru
        _
      // Predicated region
      $region45: #{bottleneck_forward.8} parent=39 // pred_check
        %p1434 = pneg %p112
      $region46: #{bottleneck_forward.8} parent=39 // pred_check_branch
        %1436 = sbr.rel (%p1434) target = $region48
      $region47: #{bottleneck_forward.8} parent=39 // pred_region
        %p1437 = scmp.lt.s32.totalorder %s16, 3
        %s1438 = scalar_select %p1437, %s16, 3
        %s1439 = smul.addr %s1438, 2
        %s1440 = scalar_lea.vmem %s3, %s1439
      $region48: #{bottleneck_forward.8} parent=39 // pred_fallthru
        _
    $region40: #{bottleneck_forward.8} parent=5 // pred_fallthru
      _
  $region6: #{bottleneck_forward.8} parent=0 // loop_footer
    %s14 = sadd.s32 1, %s10
  $region7: #{bottleneck_forward.8} parent=0 // loop_footer_branch
    %9 = sbr.rel target = $region3
  $region8: #{bottleneck_forward.8} parent=0 // loop_exit
    _

// kernel: bottleneck_forward.11
$region0: #{bottleneck_forward.11}
  #allocation0 [shape = 'u32[]', space=smem, size = 0x4, offset = 0x4, fixed_abs, tag = 'smem constant byte address 0x4 - core index']
  #allocation1 [shape = 'u32[144,128]{1,0:T(1,128)}', space=vmem, size = 0x12000, scoped, tag = 'internal scratch']
  #allocation2 [shape = 'f32[8,128]{1,0:T(8,128)}', space=vmem, size = 0x1000, scoped, tag = 'scratch operand']
  %s0 = inlined_call_operand.vmem [shape: bf16[2,16,128], index: 0, kind: input, shape index: {}]
  %s1 = inlined_call_operand.vmem [shape: f32[1,128], index: 1, kind: input, shape index: {}]
  %s2 = inlined_call_operand.vmem [shape: f32[1,128], index: 2, kind: input, shape index: {}]
  %s3 = inlined_call_operand.vmem [shape: bf16[2,16,128], index: 3, kind: input, shape index: {}]
  %s4 = inlined_call_operand.vmem [shape: bf16[2,16,128], index: 4, kind: output, shape index: {}]
  %s5 = sld [smem:[#allocation0]]
  $region53: #{bottleneck_forward.11} parent=0
    _
  %s7 = ssub.s32 1, %s5
  %s8 = scalar_select 0, %s7, %s5
  loop: start=0, step=1, limit=6
  $region2: #{bottleneck_forward.11} parent=0 // loop_pre_header
    _
  $region3: #{bottleneck_forward.11} parent=0 // loop_header
    %s10 = sphi 0, %s14
    %p11 = scmp.ge.s32.totalorder %s10, 6
    %s17 = sphi 0, %s29
    %s18 = sphi 0, %s25
    %s19 = sphi 0, %s17
    %s20 = sphi 0, %s18
    %s21 = sphi 0, %s19
    %s22 = sphi 0, %s20
    %s34 = sphi 0, %s36
    %s37 = sphi 0, %s34
    %s38 = sphi 0, %s37
    %s54 = sphi 0, %s38
    %s58 = sphi 0, %s58
    %s60 = sphi 0, %s58
    %s61 = sphi 0, %s60
    %s75 = sphi 0, %s61
    %s79 = sphi 0, %s79
    %s81 = sphi 0, %s79
    %s82 = sphi 0, %s81
    %s96 = sphi 0, %s82
    %s104 = sphi 0, %s106
    %s107 = sphi 0, %s104
    %s108 = sphi 0, %s107
    %s124 = sphi 0, %s108
    %s132 = sphi 0, %s134
    %s135 = sphi 0, %s132
    %s136 = sphi 0, %s135
    %s152 = sphi 0, %s136
  $region4: #{bottleneck_forward.11} parent=0 // loop_header_branch
    %13 = sbr.rel (%p11) target = $region8
  $region5: #{bottleneck_forward.11} parent=0 // loop_body
    %s15 = ssub.s32 %s10, 1
    %s16 = ssub.s32 %s10, 2
    %s23 = sadd.s32 1, %s18
    %p24 = scmp.ge.s32.totalorder %s23, 2
    %s25 = scalar_select %p24, 0, %s23
    %s26 = sadd.s32 1, %s17
    %s27 = scalar_select %p24, %s26, %s17
    %p28 = scmp.ge.s32.totalorder %s27, 2
    %s29 = scalar_select %p28, 0, %s27
    %s30 = ssub.s32 %s18, %s25
    %s31 = ssub.s32 %s17, %s29
    %s32 = sor.u32 %s30, %s31
    %p33 = scmp.eq.s32.totalorder %s32, 0
    %s35 = sadd.s32 %s34, 1
    %s36 = scalar_select %p33, %s34, %s35
    %p39 = pneg %p33
    %p40 = scmp.eq.s32.totalorder %s10, 3
    %p41 = por %p39, %p40
    %p42 = scmp.ne.s32.totalorder %s34, %s37
    %p43 = scmp.eq.s32.totalorder %s10, 0
    %p44 = por %p42, %p43
    %p45 = scmp.ne.s32.totalorder %s34, %s37
    %p46 = scmp.eq.s32.totalorder %s15, 3
    %p47 = por %p45, %p46
    %p48 = scmp.ne.s32.totalorder %s37, %s38
    %p49 = scmp.eq.s32.totalorder %s15, 0
    %p50 = por %p48, %p49
    %p51 = scmp.ne.s32.totalorder %s37, %s38
    %p52 = scmp.eq.s32.totalorder %s16, 3
    %p53 = por %p51, %p52
    %p55 = scmp.ne.s32.totalorder %s38, %s54
    %p56 = scmp.eq.s32.totalorder %s16, 0
    %p57 = por %p55, %p56
    %s59 = sadd.s32 %s58, 1
    %p62 = scmp.eq.s32.totalorder %s10, 3
    %p63 = scmp.ne.s32.totalorder %s58, %s60
    %p64 = scmp.eq.s32.totalorder %s10, 0
    %p65 = por %p63, %p64
    %p66 = scmp.ne.s32.totalorder %s58, %s60
    %p67 = scmp.eq.s32.totalorder %s15, 3
    %p68 = por %p66, %p67
    %p69 = scmp.ne.s32.totalorder %s60, %s61
    %p70 = scmp.eq.s32.totalorder %s15, 0
    %p71 = por %p69, %p70
    %p72 = scmp.ne.s32.totalorder %s60, %s61
    %p73 = scmp.eq.s32.totalorder %s16, 3
    %p74 = por %p72, %p73
    %p76 = scmp.ne.s32.totalorder %s61, %s75
    %p77 = scmp.eq.s32.totalorder %s16, 0
    %p78 = por %p76, %p77
    %s80 = sadd.s32 %s79, 1
    %p83 = scmp.eq.s32.totalorder %s10, 3
    %p84 = scmp.ne.s32.totalorder %s79, %s81
    %p85 = scmp.eq.s32.totalorder %s10, 0
    %p86 = por %p84, %p85
    %p87 = scmp.ne.s32.totalorder %s79, %s81
    %p88 = scmp.eq.s32.totalorder %s15, 3
    %p89 = por %p87, %p88
    %p90 = scmp.ne.s32.totalorder %s81, %s82
    %p91 = scmp.eq.s32.totalorder %s15, 0
    %p92 = por %p90, %p91
    %p93 = scmp.ne.s32.totalorder %s81, %s82
    %p94 = scmp.eq.s32.totalorder %s16, 3
    %p95 = por %p93, %p94
    %p97 = scmp.ne.s32.totalorder %s82, %s96
    %p98 = scmp.eq.s32.totalorder %s16, 0
    %p99 = por %p97, %p98
    %s100 = ssub.s32 %s18, %s25
    %s101 = ssub.s32 %s17, %s29
    %s102 = sor.u32 %s100, %s101
    %p103 = scmp.eq.s32.totalorder %s102, 0
    %s105 = sadd.s32 %s104, 1
    %s106 = scalar_select %p103, %s104, %s105
    %p109 = pneg %p103
    %p110 = scmp.eq.s32.totalorder %s10, 3
    %p111 = por %p109, %p110
    %p112 = scmp.ne.s32.totalorder %s104, %s107
    %p113 = scmp.eq.s32.totalorder %s10, 0
    %p114 = por %p112, %p113
    %p115 = scmp.ne.s32.totalorder %s104, %s107
    %p116 = scmp.eq.s32.totalorder %s15, 3
    %p117 = por %p115, %p116
    %p118 = scmp.ne.s32.totalorder %s107, %s108
    %p119 = scmp.eq.s32.totalorder %s15, 0
    %p120 = por %p118, %p119
    %p121 = scmp.ne.s32.totalorder %s107, %s108
    %p122 = scmp.eq.s32.totalorder %s16, 3
    %p123 = por %p121, %p122
    %p125 = scmp.ne.s32.totalorder %s108, %s124
    %p126 = scmp.eq.s32.totalorder %s16, 0
    %p127 = por %p125, %p126
    %s128 = ssub.s32 %s18, %s25
    %s129 = ssub.s32 %s17, %s29
    %s130 = sor.u32 %s128, %s129
    %p131 = scmp.eq.s32.totalorder %s130, 0
    %s133 = sadd.s32 %s132, 1
    %s134 = scalar_select %p131, %s132, %s133
    %p137 = pneg %p131
    %p138 = scmp.eq.s32.totalorder %s10, 3
    %p139 = por %p137, %p138
    %p140 = scmp.ne.s32.totalorder %s132, %s135
    %p141 = scmp.eq.s32.totalorder %s10, 0
    %p142 = por %p140, %p141
    %p143 = scmp.ne.s32.totalorder %s132, %s135
    %p144 = scmp.eq.s32.totalorder %s15, 3
    %p145 = por %p143, %p144
    %p146 = scmp.ne.s32.totalorder %s135, %s136
    %p147 = scmp.eq.s32.totalorder %s15, 0
    %p148 = por %p146, %p147
    %p149 = scmp.ne.s32.totalorder %s135, %s136
    %p150 = scmp.eq.s32.totalorder %s16, 3
    %p151 = por %p149, %p150
    %p153 = scmp.ne.s32.totalorder %s136, %s152
    %p154 = scmp.eq.s32.totalorder %s16, 0
    %p155 = por %p153, %p154
    %p156 = scmp.le.s32.totalorder 1, %s10
    %p157 = scmp.lt.s32.totalorder %s10, 5
    %p158 = pnand %p156, %p157
    %p159 = pneg %p158
    // Predicated region
    $region9: #{bottleneck_forward.11} parent=5 // pred_check
      _
    $region10: #{bottleneck_forward.11} parent=5 // pred_check_branch
      %161 = sbr.rel (%p158) target = $region12
    $region11: #{bottleneck_forward.11} parent=5 // pred_region
      %s162 = ssub.s32 %s10, 1
      // Predicated region
      $region13: #{bottleneck_forward.11} parent=11 // pred_check
        %p163 = pneg %p71
      $region14: #{bottleneck_forward.11} parent=11 // pred_check_branch
        %165 = sbr.rel (%p163) target = $region16
      $region15: #{bottleneck_forward.11} parent=11 // pred_region
        _
      $region16: #{bottleneck_forward.11} parent=11 // pred_fallthru
        _
      // Predicated region
      $region17: #{bottleneck_forward.11} parent=11 // pred_check
        %p166 = pneg %p92
      $region18: #{bottleneck_forward.11} parent=11 // pred_check_branch
        %168 = sbr.rel (%p166) target = $region20
      $region19: #{bottleneck_forward.11} parent=11 // pred_region
        _
      $region20: #{bottleneck_forward.11} parent=11 // pred_fallthru
        _
    $region12: #{bottleneck_forward.11} parent=5 // pred_fallthru
      _
    %p169 = scmp.lt.s32.totalorder %s10, 4
    // Predicated region
    $region21: #{bottleneck_forward.11} parent=5 // pred_check
      %p170 = pneg %p169
    $region22: #{bottleneck_forward.11} parent=5 // pred_check_branch
      %172 = sbr.rel (%p170) target = $region24
    $region23: #{bottleneck_forward.11} parent=5 // pred_region
      // Predicated region
      $region25: #{bottleneck_forward.11} parent=23 // pred_check
        %p173 = pneg %p44
      $region26: #{bottleneck_forward.11} parent=23 // pred_check_branch
        %175 = sbr.rel (%p173) target = $region28
      $region27: #{bottleneck_forward.11} parent=23 // pred_region
        %p176 = scmp.lt.s32.totalorder %s18, 1
        %s177 = scalar_select %p176, %s18, 1
        %p178 = scmp.lt.s32.totalorder %s17, 1
        %s179 = scalar_select %p178, %s17, 1
        %s180 = smul.addr %s177, 2
        %s181 = sadd.s32 %s179, %s180
        %s182 = smul.addr %s181, 4
        %s183 = scalar_lea.vmem %s0, %s182
      $region28: #{bottleneck_forward.11} parent=23 // pred_fallthru
        _
      // Predicated region
      $region29: #{bottleneck_forward.11} parent=23 // pred_check
        %p184 = pneg %p114
      $region30: #{bottleneck_forward.11} parent=23 // pred_check_branch
        %186 = sbr.rel (%p184) target = $region32
      $region31: #{bottleneck_forward.11} parent=23 // pred_region
        %p187 = scmp.lt.s32.totalorder %s18, 1
        %s188 = scalar_select %p187, %s18, 1
        %p189 = scmp.lt.s32.totalorder %s17, 1
        %s190 = scalar_select %p189, %s17, 1
        %s191 = smul.addr %s188, 2
        %s192 = sadd.s32 %s190, %s191
        %s193 = smul.addr %s192, 4
        %s194 = scalar_lea.vmem %s3, %s193
      $region32: #{bottleneck_forward.11} parent=23 // pred_fallthru
        _
    $region24: #{bottleneck_forward.11} parent=5 // pred_fallthru
      _
    %p195 = scmp.le.s32.totalorder 1, %s10
    %p196 = scmp.lt.s32.totalorder %s10, 5
    %p197 = pnand %p195, %p196
    %p198 = pneg %p197
    // Predicated region
    $region33: #{bottleneck_forward.11} parent=5 // pred_check
      _
    $region34: #{bottleneck_forward.11} parent=5 // pred_check_branch
      %200 = sbr.rel (%p197) target = $region36
    $region35: #{bottleneck_forward.11} parent=5 // pred_region
      %s201 = ssub.s32 %s10, 1
      %p202 = scmp.lt.s32.totalorder %s20, 1
      %s203 = scalar_select %p202, %s20, 1
      %p204 = scmp.lt.s32.totalorder %s19, 1
      %s205 = scalar_select %p204, %s19, 1
      %s206 = smul.addr %s203, 2
      %s207 = sadd.s32 %s205, %s206
      %s208 = smul.addr %s207, 4
      %s209 = scalar_lea.vmem %s0, %s208
      %p210 = pneg %p50
      %p211 = pneg %p47
      %p212 = pneg %p71
      %p213 = pneg %p68
      %p214 = pneg %p92
      %p215 = pneg %p89
      %p216 = scmp.lt.s32.totalorder %s20, 1
      %s217 = scalar_select %p216, %s20, 1
      %p218 = scmp.lt.s32.totalorder %s19, 1
      %s219 = scalar_select %p218, %s19, 1
      %s220 = smul.addr %s217, 2
      %s221 = sadd.s32 %s219, %s220
      %s222 = smul.addr %s221, 4
      %s223 = scalar_lea.vmem %s3, %s222
      %p224 = pneg %p120
      %p225 = pneg %p117
      %p226 = pneg %p148
      %p227 = pneg %p145
      %p228 = scmp.lt.s32.totalorder %s20, 1
      %s229 = scalar_select %p228, %s20, 1
      %p230 = scmp.lt.s32.totalorder %s19, 1
      %s231 = scalar_select %p230, %s19, 1
      %s232 = smul.addr %s229, 2
      %s233 = sadd.s32 %s231, %s232
      %s234 = smul.addr %s233, 4
      %s235 = scalar_lea.vmem %s4, %s234
      %p236 = scmp.lt.s32.totalorder %s20, 1
      %s237 = scalar_select %p236, %s20, 1
      %p238 = scmp.lt.s32.totalorder %s19, 1
      %s239 = scalar_select %p238, %s19, 1
      %s240 = smul.addr %s237, 2
      %s241 = sadd.s32 %s239, %s240
      %s242 = smul.addr %s241, 4
      %s243 = scalar_lea.vmem %s0, %s242
      %p244 = scmp.lt.s32.totalorder %s20, 1
      %s245 = scalar_select %p244, %s20, 1
      %p246 = scmp.lt.s32.totalorder %s19, 1
      %s247 = scalar_select %p246, %s19, 1
      %s248 = smul.addr %s245, 2
      %s249 = sadd.s32 %s247, %s248
      %s250 = smul.addr %s249, 4
      %s251 = scalar_lea.vmem %s3, %s250
      %p252 = scmp.lt.s32.totalorder %s20, 1
      %s253 = scalar_select %p252, %s20, 1
      %p254 = scmp.lt.s32.totalorder %s19, 1
      %s255 = scalar_select %p254, %s19, 1
      %s256 = smul.addr %s253, 2
      %s257 = sadd.s32 %s255, %s256
      %s258 = smul.addr %s257, 4
      %s259 = scalar_lea.vmem %s4, %s258
      %p260 = scmp.eq.s32.totalorder %s20, 0
      // Predicated region
      $region37: #{bottleneck_forward.11} parent=35 // pred_check
        %p261 = pneg %p260
      $region38: #{bottleneck_forward.11} parent=35 // pred_check_branch
        %263 = sbr.rel (%p261) target = $region40
      $region39: #{bottleneck_forward.11} parent=35 // pred_region
        %264 = vst [vmem:[#allocation2] sm:$0xff] 0.0
      $region40: #{bottleneck_forward.11} parent=35 // pred_fallthru
        _
      %v265 = vld [vmem:[%s243] sm:$0xf]
      %v266 = vunpack.c.l.bf16 %v265
      %v267 = vld [vmem:[%s1] sm:$0x1]
      %v269 = vlaneseq
      %v270 = vshrl.u32 %v269, 7
      %v271 = vsub.s32 0, %v270
      %v272 = vrot.slane %v267, %v271
      %v274 = vmul.f32 %v266, %v272
      %v275 = vld [vmem:[%s2] sm:$0x1]
      %v277 = vlaneseq
      %v278 = vshrl.u32 %v277, 7
      %v279 = vsub.s32 0, %v278
      %v280 = vrot.slane %v275, %v279
      %v282 = vadd.f32 %v274, %v280
      %v283 = vld [vmem:[%s251] sm:$0xf]
      %v284 = vunpack.c.l.bf16 %v283
      %v285 = vadd.f32 %v282, %v284
      %v286 = vld [vmem:[#allocation2] sm:$0xff]
      %v287 = vadd.f32 %v286, %v285
      %vm288 = vcmp.ge.f32.partialorder %v287, 1.0
      %v289 = vsel %vm288, 1, 0
      %v290 = vcvt.s32.f32 %v289
      %v291 = vpack.c.bf16 %v290, %v290
      %292 = vst [vmem:[%s259] sm:$0xf] %v291
      %v293 = vsel %vm288, 0.0, %v287
      %294 = vst [vmem:[#allocation2] sm:$0xff] %v293
      %p295 = scmp.lt.s32.totalorder %s20, 1
      %s296 = scalar_select %p295, %s20, 1
      %p297 = scmp.lt.s32.totalorder %s19, 1
      %s298 = scalar_select %p297, %s19, 1
      %s299 = smul.addr %s296, 2
      %s300 = sadd.s32 %s298, %s299
      %s301 = smul.addr %s300, 4
      %s302 = scalar_lea.vmem %s4, %s301
      // Predicated region
      $region41: #{bottleneck_forward.11} parent=35 // pred_check
        %p303 = pneg %p145
      $region42: #{bottleneck_forward.11} parent=35 // pred_check_branch
        %305 = sbr.rel (%p303) target = $region44
      $region43: #{bottleneck_forward.11} parent=35 // pred_region
        _
      $region44: #{bottleneck_forward.11} parent=35 // pred_fallthru
        _
    $region36: #{bottleneck_forward.11} parent=5 // pred_fallthru
      _
    %p306 = scmp.le.s32.totalorder 2, %s10
    // Predicated region
    $region45: #{bottleneck_forward.11} parent=5 // pred_check
      %p307 = pneg %p306
    $region46: #{bottleneck_forward.11} parent=5 // pred_check_branch
      %309 = sbr.rel (%p307) target = $region48
    $region47: #{bottleneck_forward.11} parent=5 // pred_region
      %s310 = ssub.s32 %s10, 2
      // Predicated region
      $region49: #{bottleneck_forward.11} parent=47 // pred_check
        %p311 = pneg %p151
      $region50: #{bottleneck_forward.11} parent=47 // pred_check_branch
        %313 = sbr.rel (%p311) target = $region52
      $region51: #{bottleneck_forward.11} parent=47 // pred_region
        %p314 = scmp.lt.s32.totalorder %s22, 1
        %s315 = scalar_select %p314, %s22, 1
        %p316 = scmp.lt.s32.totalorder %s21, 1
        %s317 = scalar_select %p316, %s21, 1
        %s318 = smul.addr %s315, 2
        %s319 = sadd.s32 %s317, %s318
        %s320 = smul.addr %s319, 4
        %s321 = scalar_lea.vmem %s4, %s320
      $region52: #{bottleneck_forward.11} parent=47 // pred_fallthru
        _
    $region48: #{bottleneck_forward.11} parent=5 // pred_fallthru
      _
  $region6: #{bottleneck_forward.11} parent=0 // loop_footer
    %s14 = sadd.s32 1, %s10
  $region7: #{bottleneck_forward.11} parent=0 // loop_footer_branch
    %9 = sbr.rel target = $region3
  $region8: #{bottleneck_forward.11} parent=0 // loop_exit
    _

</llo_original>
